<compile_context>
chip_gen: v7x
topology: tpu7x:2x2x1
jax: 0.10.0
libtpu: 0.0.40
codegen_flags: <defaults>
</compile_context>

<pallas_src>
import functools

import jax
import jax.numpy as jnp
from jax.experimental import pallas as pl
from jax.experimental.pallas import tpu as pltpu

LANE = 128
NUM_FEATURES = 2048  # resnet50 fc.in_features


# ----------------------------------------------------------------------------
# Fused Pallas kernel: conv-as-matmul + ReLU + global-avg-pool + classifier MLP
# ----------------------------------------------------------------------------
def fused_kernel(p_ref, wc_ref, bc_ref,
                 w1_ref, b1_ref, w2_ref, b2_ref, w3_ref, b3_ref,
                 o_ref, acc_ref, *, inv_hw):
    """One (batch, hw-tile) grid step.

    p_ref : [1, THW, Kp] bf16   im2col patches for this (batch, hw-tile)
    wc_ref: [Kp, F]      bf16   conv weight (flattened, transposed, zero-padded)
    bc_ref: [1, F]       f32    conv bias
    w*_ref: classifier weights (bf16) / biases (f32), w3/b3 padded to 128 lanes
    o_ref : [1, 1, 128]  f32    padded logits for this batch element
    acc_ref: [1, F]      f32    running pooled sum (scratch, resident over t)
    """
    t = pl.program_id(1)

    @pl.when(t == 0)
    def _init():
        acc_ref[...] = jnp.zeros_like(acc_ref)

    # conv as matmul on this HW tile: [THW, Kp] @ [Kp, F] -> [THW, F] f32 (MXU)
    h = jnp.dot(p_ref[0], wc_ref[...], preferred_element_type=jnp.float32)
    h = jnp.maximum(h + bc_ref[...], 0.0)                # bias + ReLU (f32, VPU)
    acc_ref[...] += jnp.sum(h, axis=0, keepdims=True)    # partial pooled sum (XLU)

    @pl.when(t == pl.num_programs(1) - 1)
    def _finalize():
        feats = acc_ref[...] * inv_hw                    # global mean pool [1, F]
        # classifier head (dropout = identity in eval); bf16 MXU, f32 accumulate
        f16 = feats.astype(jnp.bfloat16)
        h1 = jnp.dot(f16, w1_ref[...], preferred_element_type=jnp.float32)
        h1 = jnp.maximum(h1 + b1_ref[...], 0.0).astype(jnp.bfloat16)
        h2 = jnp.dot(h1, w2_ref[...], preferred_element_type=jnp.float32)
        h2 = jnp.maximum(h2 + b2_ref[...], 0.0).astype(jnp.bfloat16)
        logits = jnp.dot(h2, w3_ref[...], preferred_element_type=jnp.float32)
        o_ref[...] = (logits + b3_ref[...]).reshape(o_ref.shape)  # lane-dense store


# ----------------------------------------------------------------------------
# Wrapper
# ----------------------------------------------------------------------------
def im2col(x, k=3, pad=1):
    """x: [B, C, H, W] -> patches [B, H*W, C*k*k] (k*k innermost)."""
    B, C, H, W = x.shape
    xp = jnp.pad(x, ((0, 0), (0, 0), (pad, pad), (pad, pad)))
    cols = []
    for dh in range(k):
        for dw in range(k):
            cols.append(xp[:, :, dh:dh + H, dw:dw + W])
    patches = jnp.stack(cols, axis=-1)                   # [B, C, H, W, k*k]
    patches = patches.transpose(0, 2, 3, 1, 4)           # [B, H, W, C, k*k]
    return patches.reshape(B, H * W, C * k * k)


def _round_up(n, m):
    return (n + m - 1) // m * m


def _pick_hw_tile(hw, max_tile):
    """Largest tile <= max_tile that divides HW (keeps pooling exact, no masks)."""
    for t in (1024, 512, 256, 128, 64, 32, 16, 8):
        if t <= max_tile and hw % t == 0:
            return t
    return hw


def medical_image_classifier(x, conv_w, conv_b, cls_params, num_classes,
                             *, hw_tile=512):
    """x: [B, C, H, W] -> logits [B, num_classes].

    hw_tile: HW-tile size.  512 fits comfortably in VMEM on v5e/v6e; on v7x
    (64 MiB VMEM) the working set here is still only a few MiB, so no
    vmem_limit_bytes override is needed.
    """
    B, C, H, W = x.shape
    F = conv_w.shape[0]
    k = conv_w.shape[2]
    HW = H * W
    THW = _pick_hw_tile(HW, hw_tile)
    T = HW // THW

    # --- im2col + pad contraction K=C*k*k up to a multiple of 8 (>=32) ---
    patches = im2col(x, k=k, pad=k // 2)                 # [B, HW, K] f32
    K = patches.shape[-1]
    Kp = max(_round_up(K, 8), 32)
    patches = jnp.pad(patches, ((0, 0), (0, 0), (0, Kp - K))).astype(jnp.bfloat16)

    wc = conv_w.reshape(F, K).T                          # [K, F]
    wc = jnp.pad(wc, ((0, Kp - K), (0, 0))).astype(jnp.bfloat16)
    bc = conv_b.reshape(1, F).astype(jnp.float32)

    # --- classifier params: bf16 weights, f32 biases, lane-dense 128 output ---
    w1, b1, w2, b2, w3, b3 = cls_params
    NCp = max(_round_up(num_classes, LANE), LANE)
    w3p = jnp.pad(w3, ((0, 0), (0, NCp - num_classes))).astype(jnp.bfloat16)
    b3p = jnp.pad(b3, ((0, 0), (0, NCp - num_classes))).astype(jnp.float32)
    w1 = w1.astype(jnp.bfloat16)
    w2 = w2.astype(jnp.bfloat16)
    b1 = b1.astype(jnp.float32)
    b2 = b2.astype(jnp.float32)
    H1, H2 = w1.shape[1], w2.shape[1]

    kernel = functools.partial(fused_kernel, inv_hw=1.0 / HW)

    flops = 2 * B * HW * Kp * F + 2 * B * (F * H1 + H1 * H2 + H2 * NCp)
    bytes_accessed = (patches.size * 2 + wc.size * 2 + bc.size * 4
                      + w1.size * 2 + b1.size * 4 + w2.size * 2 + b2.size * 4
                      + w3p.size * 2 + b3p.size * 4 + B * NCp * 4)

    grid_spec = pltpu.PrefetchScalarGridSpec(
        num_scalar_prefetch=0,
        grid=(B, T),                                     # (batch, hw-tile)
        in_specs=[
            # per-(batch, hw-tile) patch block -> pipelined patch DMA
            pl.BlockSpec((1, THW, Kp), lambda b, t: (b, t, 0)),
            # weights / biases: constant block index -> resident in VMEM
            pl.BlockSpec((Kp, F), lambda b, t: (0, 0)),
            pl.BlockSpec((1, F), lambda b, t: (0, 0)),
            pl.BlockSpec((F, H1), lambda b, t: (0, 0)),
            pl.BlockSpec((1, H1), lambda b, t: (0, 0)),
            pl.BlockSpec((H1, H2), lambda b, t: (0, 0)),
            pl.BlockSpec((1, H2), lambda b, t: (0, 0)),
            pl.BlockSpec((H2, NCp), lambda b, t: (0, 0)),
            pl.BlockSpec((1, NCp), lambda b, t: (0, 0)),
        ],
        out_specs=pl.BlockSpec((1, 1, NCp), lambda b, t: (b, 0, 0)),
        scratch_shapes=[pltpu.VMEM((1, F), jnp.float32)],  # pooled-sum accumulator
    )

    out = pl.pallas_call(
        kernel,
        out_shape=jax.ShapeDtypeStruct((B, 1, NCp), jnp.float32),
        grid_spec=grid_spec,
        compiler_params=pltpu.CompilerParams(
            # batch axis shards across TensorCores (v7x megacore); the hw-tile
            # axis carries the pooling accumulator + resident output -> arbitrary.
            dimension_semantics=("parallel", "arbitrary"),
        ),
        cost_estimate=pl.CostEstimate(
            flops=flops, transcendentals=0, bytes_accessed=bytes_accessed),
    )(patches, wc, bc, w1, b1, w2, b2, w3p, b3p)

    return out[:, 0, :num_classes]


# ----------------------------------------------------------------------------
# Deterministic parameter init (matches module __init__ semantics)
# ----------------------------------------------------------------------------
def xavier_uniform(key, fan_in, fan_out):
    bound = (6.0 / (fan_in + fan_out)) ** 0.5
    return jax.random.uniform(key, (fan_in, fan_out), jnp.float32, -bound, bound)


def init_params(key, num_features=2048, num_classes=5, in_channels=3, k=3):
    keys = jax.random.split(key, 5)
    conv_w = 0.05 * jax.random.normal(
        keys[0], (num_features, in_channels, k, k), jnp.float32)
    conv_b = jnp.zeros((num_features,), jnp.float32)
    w1 = xavier_uniform(keys[1], num_features, 512)
    b1 = jnp.zeros((1, 512), jnp.float32)
    w2 = xavier_uniform(keys[2], 512, 256)
    b2 = jnp.zeros((1, 256), jnp.float32)
    w3 = xavier_uniform(keys[3], 256, num_classes)
    b3 = jnp.zeros((1, num_classes), jnp.float32)
    return conv_w, conv_b, (w1, b1, w2, b2, w3, b3)


# ----------------------------------------------------------------------------
# Pure-JAX reference (mirrors the kernel's bf16 operand / f32 accumulate math)
# ----------------------------------------------------------------------------
def reference(x, conv_w, conv_b, cls_params):
    B, C, H, W = x.shape
    F, _, k, _ = conv_w.shape

    def bf(a):
        return a.astype(jnp.bfloat16).astype(jnp.float32)

    patches = bf(im2col(x, k=k, pad=k // 2))
    w_flat = bf(conv_w.reshape(F, C * k * k).T)
    h = jnp.einsum('bpk,kf->bpf', patches, w_flat,
                   precision=jax.lax.Precision.HIGHEST) + conv_b
    feats = jnp.mean(jnp.maximum(h, 0.0), axis=1)
    w1, b1, w2, b2, w3, b3 = cls_params
    h1 = jnp.maximum(bf(feats) @ bf(w1) + b1, 0.0)
    h2 = jnp.maximum(bf(h1) @ bf(w2) + b2, 0.0)
    return bf(h2) @ bf(w3) + b3


if __name__ == "__main__":
    key = jax.random.PRNGKey(0)
    k_x, k_p = jax.random.split(key)

    B, C, H, W = 2, 3, 16, 16
    num_classes = 5
    x = jax.random.normal(k_x, (B, C, H, W), jnp.float32)

    conv_w, conv_b, cls_params = init_params(
        k_p, num_features=NUM_FEATURES, num_classes=num_classes,
        in_channels=C, k=3)

    # hw_tile=128 -> 2 HW tiles per 16x16 image, exercising the pooled-sum
    # accumulator / finalize path; realistic images use the default 512.
    out = medical_image_classifier(x, conv_w, conv_b, cls_params,
                                   num_classes, hw_tile=128)
    out = jax.block_until_ready(out)

    ref = reference(x, conv_w, conv_b, cls_params)
    assert out.shape == (B, num_classes), out.shape
    assert bool(jnp.all(jnp.isfinite(out)))
    assert jnp.allclose(out, ref, atol=2e-2, rtol=2e-2), (out, ref)

    print("KERNEL_OK")
</pallas_src>

<mosaic_0001>
module attributes {stable_mosaic.version = 11 : i64} {
  func.func @fused_kernel(%arg0: i32, %arg1: i32, %arg2: memref<1x128x32xbf16, #tpu.memory_space<vmem>>, %arg3: memref<32x2048xbf16, #tpu.memory_space<vmem>>, %arg4: memref<1x2048xf32, #tpu.memory_space<vmem>>, %arg5: memref<2048x512xbf16, #tpu.memory_space<vmem>>, %arg6: memref<1x512xf32, #tpu.memory_space<vmem>>, %arg7: memref<512x256xbf16, #tpu.memory_space<vmem>>, %arg8: memref<1x256xf32, #tpu.memory_space<vmem>>, %arg9: memref<256x128xbf16, #tpu.memory_space<vmem>>, %arg10: memref<1x128xf32, #tpu.memory_space<vmem>>, %arg11: memref<1x1x128xf32, #tpu.memory_space<vmem>>, %arg12: memref<1x2048xf32, #tpu.memory_space<vmem>>) attributes {dimension_semantics = [#tpu.dimension_semantics<parallel>, #tpu.dimension_semantics<arbitrary>], iteration_bounds = array<i64: 2, 2>, scalar_prefetch = 0 : i64, scratch_operands = 1 : i64, tpu.core_type = #tpu.core_type<tc>, window_params = [{transform_indices = @transform_0, window_bounds = array<i64: 1, 128, 32>}, {pipeline_mode = #tpu.pipeline_mode<synchronous>, transform_indices = @transform_1, window_bounds = array<i64: 32, 2048>}, {pipeline_mode = #tpu.pipeline_mode<synchronous>, transform_indices = @transform_2, window_bounds = array<i64: 1, 2048>}, {pipeline_mode = #tpu.pipeline_mode<synchronous>, transform_indices = @transform_3, window_bounds = array<i64: 2048, 512>}, {pipeline_mode = #tpu.pipeline_mode<synchronous>, transform_indices = @transform_4, window_bounds = array<i64: 1, 512>}, {pipeline_mode = #tpu.pipeline_mode<synchronous>, transform_indices = @transform_5, window_bounds = array<i64: 512, 256>}, {pipeline_mode = #tpu.pipeline_mode<synchronous>, transform_indices = @transform_6, window_bounds = array<i64: 1, 256>}, {pipeline_mode = #tpu.pipeline_mode<synchronous>, transform_indices = @transform_7, window_bounds = array<i64: 256, 128>}, {pipeline_mode = #tpu.pipeline_mode<synchronous>, transform_indices = @transform_8, window_bounds = array<i64: 1, 128>}, {transform_indices = @transform_9, window_bounds = array<i64: 1, 1, 128>}]} {
    %c0_i32 = arith.constant 0 : i32
    %0 = arith.cmpi eq, %arg1, %c0_i32 : i32
    %1 = arith.extui %0 : i1 to i32
    %c0_i32_0 = arith.constant 0 : i32
    %2 = arith.cmpi ne, %1, %c0_i32_0 : i32
    scf.if %2 {
      %cst_14 = arith.constant 0.000000e+00 : f32
      %20 = vector.broadcast %cst_14 : f32 to vector<1x2048xf32>
      %c0_15 = arith.constant 0 : index
      %c0_16 = arith.constant 0 : index
      %21 = vector.load %arg12[%c0_15, %c0_16] : memref<1x2048xf32, #tpu.memory_space<vmem>>, vector<1x2048xf32>
      tpu.vector_store %arg12[%c0_15, %c0_16], %20 {strides = array<i32>} : memref<1x2048xf32, #tpu.memory_space<vmem>>, vector<1x2048xf32>,
    } else {
    }
    %c0 = arith.constant 0 : index
    %c0_1 = arith.constant 0 : index
    %c0_2 = arith.constant 0 : index
    %3 = vector.load %arg2[%c0, %c0_1, %c0_2] : memref<1x128x32xbf16, #tpu.memory_space<vmem>>, vector<1x128x32xbf16>
    %4 = vector.shape_cast %3 : vector<1x128x32xbf16> to vector<128x32xbf16>
    %c0_3 = arith.constant 0 : index
    %c0_4 = arith.constant 0 : index
    %5 = vector.load %arg3[%c0_3, %c0_4] : memref<32x2048xbf16, #tpu.memory_space<vmem>>, vector<32x2048xbf16>
    %cst = arith.constant dense<0.000000e+00> : vector<128x2048xf32>
    %6 = tpu.matmul %4, %5, %cst {dimension_numbers = #tpu.dot_dimension_numbers<[1], [0], [0], [1], [0, 0, 1, 1], [], []>} : vector<128x32xbf16>, vector<32x2048xbf16>, vector<128x2048xf32> -> vector<128x2048xf32>
    %c0_5 = arith.constant 0 : index
    %c0_6 = arith.constant 0 : index
    %7 = vector.load %arg4[%c0_5, %c0_6] : memref<1x2048xf32, #tpu.memory_space<vmem>>, vector<1x2048xf32>
    %8 = vector.broadcast %7 : vector<1x2048xf32> to vector<128x2048xf32>
    %9 = arith.addf %6, %8 : vector<128x2048xf32>
    %cst_7 = arith.constant 0.000000e+00 : f32
    %10 = vector.broadcast %cst_7 : f32 to vector<128x2048xf32>
    %11 = arith.maximumf %9, %10 : vector<128x2048xf32>
    %c0_8 = arith.constant 0 : index
    %c0_9 = arith.constant 0 : index
    %12 = vector.load %arg12[%c0_8, %c0_9] : memref<1x2048xf32, #tpu.memory_space<vmem>>, vector<1x2048xf32>
    %cst_10 = arith.constant dense<0.000000e+00> : vector<2048xf32>
    %13 = vector.multi_reduction <add>, %11, %cst_10 [0] : vector<128x2048xf32> to vector<2048xf32>
    %14 = vector.shape_cast %13 : vector<2048xf32> to vector<1x2048xf32>
    %15 = arith.addf %12, %14 : vector<1x2048xf32>
    %c0_11 = arith.constant 0 : index
    %c0_12 = arith.constant 0 : index
    %16 = vector.load %arg12[%c0_11, %c0_12] : memref<1x2048xf32, #tpu.memory_space<vmem>>, vector<1x2048xf32>
    tpu.vector_store %arg12[%c0_11, %c0_12], %15 {strides = array<i32>} : memref<1x2048xf32, #tpu.memory_space<vmem>>, vector<1x2048xf32>,
    %c1_i32 = arith.constant 1 : i32
    %17 = arith.cmpi eq, %arg1, %c1_i32 : i32
    %18 = arith.extui %17 : i1 to i32
    %c0_i32_13 = arith.constant 0 : i32
    %19 = arith.cmpi ne, %18, %c0_i32_13 : i32
    scf.if %19 {
      %c0_14 = arith.constant 0 : index
      %c0_15 = arith.constant 0 : index
      %20 = vector.load %arg12[%c0_14, %c0_15] : memref<1x2048xf32, #tpu.memory_space<vmem>>, vector<1x2048xf32>
      %cst_16 = arith.constant 3.906250e-03 : f32
      %21 = vector.broadcast %cst_16 : f32 to vector<1x2048xf32>
      %22 = arith.mulf %20, %21 : vector<1x2048xf32>
      %23 = arith.truncf %22 : vector<1x2048xf32> to vector<1x2048xbf16>
      %c0_17 = arith.constant 0 : index
      %c0_18 = arith.constant 0 : index
      %24 = vector.load %arg5[%c0_17, %c0_18] : memref<2048x512xbf16, #tpu.memory_space<vmem>>, vector<2048x512xbf16>
      %cst_19 = arith.constant dense<0.000000e+00> : vector<1x512xf32>
      %25 = tpu.matmul %23, %24, %cst_19 {dimension_numbers = #tpu.dot_dimension_numbers<[1], [0], [0], [1], [0, 0, 1, 1], [], []>} : vector<1x2048xbf16>, vector<2048x512xbf16>, vector<1x512xf32> -> vector<1x512xf32>
      %c0_20 = arith.constant 0 : index
      %c0_21 = arith.constant 0 : index
      %26 = vector.load %arg6[%c0_20, %c0_21] : memref<1x512xf32, #tpu.memory_space<vmem>>, vector<1x512xf32>
      %27 = arith.addf %25, %26 : vector<1x512xf32>
      %cst_22 = arith.constant 0.000000e+00 : f32
      %28 = vector.broadcast %cst_22 : f32 to vector<1x512xf32>
      %29 = arith.maximumf %27, %28 : vector<1x512xf32>
      %30 = arith.truncf %29 : vector<1x512xf32> to vector<1x512xbf16>
      %c0_23 = arith.constant 0 : index
      %c0_24 = arith.constant 0 : index
      %31 = vector.load %arg7[%c0_23, %c0_24] : memref<512x256xbf16, #tpu.memory_space<vmem>>, vector<512x256xbf16>
      %cst_25 = arith.constant dense<0.000000e+00> : vector<1x256xf32>
      %32 = tpu.matmul %30, %31, %cst_25 {dimension_numbers = #tpu.dot_dimension_numbers<[1], [0], [0], [1], [0, 0, 1, 1], [], []>} : vector<1x512xbf16>, vector<512x256xbf16>, vector<1x256xf32> -> vector<1x256xf32>
      %c0_26 = arith.constant 0 : index
      %c0_27 = arith.constant 0 : index
      %33 = vector.load %arg8[%c0_26, %c0_27] : memref<1x256xf32, #tpu.memory_space<vmem>>, vector<1x256xf32>
      %34 = arith.addf %32, %33 : vector<1x256xf32>
      %cst_28 = arith.constant 0.000000e+00 : f32
      %35 = vector.broadcast %cst_28 : f32 to vector<1x256xf32>
      %36 = arith.maximumf %34, %35 : vector<1x256xf32>
      %37 = arith.truncf %36 : vector<1x256xf32> to vector<1x256xbf16>
      %c0_29 = arith.constant 0 : index
      %c0_30 = arith.constant 0 : index
      %38 = vector.load %arg9[%c0_29, %c0_30] : memref<256x128xbf16, #tpu.memory_space<vmem>>, vector<256x128xbf16>
      %cst_31 = arith.constant dense<0.000000e+00> : vector<1x128xf32>
      %39 = tpu.matmul %37, %38, %cst_31 {dimension_numbers = #tpu.dot_dimension_numbers<[1], [0], [0], [1], [0, 0, 1, 1], [], []>} : vector<1x256xbf16>, vector<256x128xbf16>, vector<1x128xf32> -> vector<1x128xf32>
      %c0_32 = arith.constant 0 : index
      %c0_33 = arith.constant 0 : index
      %40 = vector.load %arg10[%c0_32, %c0_33] : memref<1x128xf32, #tpu.memory_space<vmem>>, vector<1x128xf32>
      %41 = arith.addf %39, %40 : vector<1x128xf32>
      %42 = vector.shape_cast %41 : vector<1x128xf32> to vector<1x1x128xf32>
      %c0_34 = arith.constant 0 : index
      %c0_35 = arith.constant 0 : index
      %c0_36 = arith.constant 0 : index
      %43 = vector.load %arg11[%c0_34, %c0_35, %c0_36] : memref<1x1x128xf32, #tpu.memory_space<vmem>>, vector<1x1x128xf32>
      tpu.vector_store %arg11[%c0_34, %c0_35, %c0_36], %42 {strides = array<i32>} : memref<1x1x128xf32, #tpu.memory_space<vmem>>, vector<1x1x128xf32>,
    } else {
    }
    return
  }
  func.func @transform_0(%arg0: i32, %arg1: i32) -> (i32, i32, i32) {
    %c0_i32 = arith.constant 0 : i32
    %c0_i32_0 = arith.constant 0 : i32
    return %arg0, %arg1, %c0_i32 : i32, i32, i32
  }
  func.func @transform_1(%arg0: i32, %arg1: i32) -> (i32, i32) {
    %c0_i32 = arith.constant 0 : i32
    %c0_i32_0 = arith.constant 0 : i32
    %c0_i32_1 = arith.constant 0 : i32
    return %c0_i32, %c0_i32_0 : i32, i32
  }
  func.func @transform_2(%arg0: i32, %arg1: i32) -> (i32, i32) {
    %c0_i32 = arith.constant 0 : i32
    %c0_i32_0 = arith.constant 0 : i32
    %c0_i32_1 = arith.constant 0 : i32
    return %c0_i32, %c0_i32_0 : i32, i32
  }
  func.func @transform_3(%arg0: i32, %arg1: i32) -> (i32, i32) {
    %c0_i32 = arith.constant 0 : i32
    %c0_i32_0 = arith.constant 0 : i32
    %c0_i32_1 = arith.constant 0 : i32
    return %c0_i32, %c0_i32_0 : i32, i32
  }
  func.func @transform_4(%arg0: i32, %arg1: i32) -> (i32, i32) {
    %c0_i32 = arith.constant 0 : i32
    %c0_i32_0 = arith.constant 0 : i32
    %c0_i32_1 = arith.constant 0 : i32
    return %c0_i32, %c0_i32_0 : i32, i32
  }
  func.func @transform_5(%arg0: i32, %arg1: i32) -> (i32, i32) {
    %c0_i32 = arith.constant 0 : i32
    %c0_i32_0 = arith.constant 0 : i32
    %c0_i32_1 = arith.constant 0 : i32
    return %c0_i32, %c0_i32_0 : i32, i32
  }
  func.func @transform_6(%arg0: i32, %arg1: i32) -> (i32, i32) {
    %c0_i32 = arith.constant 0 : i32
    %c0_i32_0 = arith.constant 0 : i32
    %c0_i32_1 = arith.constant 0 : i32
    return %c0_i32, %c0_i32_0 : i32, i32
  }
  func.func @transform_7(%arg0: i32, %arg1: i32) -> (i32, i32) {
    %c0_i32 = arith.constant 0 : i32
    %c0_i32_0 = arith.constant 0 : i32
    %c0_i32_1 = arith.constant 0 : i32
    return %c0_i32, %c0_i32_0 : i32, i32
  }
  func.func @transform_8(%arg0: i32, %arg1: i32) -> (i32, i32) {
    %c0_i32 = arith.constant 0 : i32
    %c0_i32_0 = arith.constant 0 : i32
    %c0_i32_1 = arith.constant 0 : i32
    return %c0_i32, %c0_i32_0 : i32, i32
  }
  func.func @transform_9(%arg0: i32, %arg1: i32) -> (i32, i32, i32) {
    %c0_i32 = arith.constant 0 : i32
    %c0_i32_0 = arith.constant 0 : i32
    %c0_i32_1 = arith.constant 0 : i32
    return %arg0, %c0_i32, %c0_i32_0 : i32, i32, i32
  }
}

</mosaic_0001>

<llo_original>
// kernel: tpu_custom_call.1
$region0: #{tpu_custom_call.1}
  #allocation0 [shape = 'u32[]', space=smem, size = 0x4, offset = 0x4, fixed_abs, tag = 'smem constant byte address 0x4 - core index']
  #allocation1 [shape = 'u32[144,128]{1,0:T(1,128)}', space=vmem, size = 0x12000, scoped, tag = 'internal scratch']
  #allocation2 [shape = 'f32[1,2048]{1,0:T(1,128)}', space=vmem, size = 0x2000, scoped, tag = 'scratch operand']
  %s0 = inlined_call_operand.vmem [shape: bf16[2,256,32], index: 0, kind: input, shape index: {}]
  %s1 = inlined_call_operand.hbm [shape: bf16[32,2048], index: 1, kind: input, shape index: {}]
  %s2 = inlined_call_operand.hbm [shape: f32[1,2048], index: 2, kind: input, shape index: {}]
  %s3 = inlined_call_operand.hbm [shape: bf16[2048,512], index: 3, kind: input, shape index: {}]
  %s4 = inlined_call_operand.hbm [shape: f32[1,512], index: 4, kind: input, shape index: {}]
  %s5 = inlined_call_operand.hbm [shape: bf16[512,256], index: 5, kind: input, shape index: {}]
  %s6 = inlined_call_operand.hbm [shape: f32[1,256], index: 6, kind: input, shape index: {}]
  %s7 = inlined_call_operand.hbm [shape: bf16[256,128], index: 7, kind: input, shape index: {}]
  %s8 = inlined_call_operand.hbm [shape: f32[1,128], index: 8, kind: input, shape index: {}]
  %s9 = inlined_call_operand.hbm [shape: f32[2,1,128], index: 9, kind: output, shape index: {}]
  %s10 = sld [smem:[#allocation0]]
  $region109: #{tpu_custom_call.1} parent=0
    _
  %s12 = ssub.s32 1, %s10
  %s13 = scalar_select 0, %s12, %s10
  $region1: #{tpu_custom_call.1} parent=0
    #allocation3 [shape = 'u8[131072]{0}', space=vmem, size = 0x20000, scoped, tag = 'input window, operand 1, single buffered']
    #allocation4 [shape = 's32[2]{0}', space=sflag, size = 0x8, scoped, tag = 'scoped memory for tpu_custom_call.1']
    #allocation5 [shape = 's32[2]{0}', space=sflag, size = 0x8, scoped, tag = 'scoped memory for tpu_custom_call.1']
    #allocation6 [shape = 'u8[8192]{0}', space=vmem, size = 0x2000, scoped, tag = 'input window, operand 2, single buffered']
    #allocation7 [shape = 's32[1]{0}', space=sflag, size = 0x4, scoped, tag = 'scoped memory for tpu_custom_call.1']
    #allocation8 [shape = 'u8[2097152]{0}', space=vmem, size = 0x200000, scoped, tag = 'input window, operand 3, single buffered']
    #allocation9 [shape = 'u8[2048]{0}', space=vmem, size = 0x800, scoped, tag = 'input window, operand 4, single buffered']
    #allocation10 [shape = 's32[1]{0}', space=sflag, size = 0x4, scoped, tag = 'scoped memory for tpu_custom_call.1']
    #allocation11 [shape = 'u8[262144]{0}', space=vmem, size = 0x40000, scoped, tag = 'input window, operand 5, single buffered']
    #allocation12 [shape = 'u8[1024]{0}', space=vmem, size = 0x400, scoped, tag = 'input window, operand 6, single buffered']
    #allocation13 [shape = 's32[1]{0}', space=sflag, size = 0x4, scoped, tag = 'scoped memory for tpu_custom_call.1']
    #allocation14 [shape = 'u8[65536]{0}', space=vmem, size = 0x10000, scoped, tag = 'input window, operand 7, single buffered']
    #allocation15 [shape = 'u8[512]{0}', space=vmem, size = 0x400, scoped, tag = 'input window, operand 8, single buffered']
    #allocation16 [shape = 's32[1]{0}', space=sflag, size = 0x4, scoped, tag = 'scoped memory for tpu_custom_call.1']
    #allocation17 [shape = 'u8[1024]{0}', space=vmem, size = 0x400, scoped, tag = 'output window, operand 0']
    %14 = vsyncpa [#allocation4], 0
    %15 = vsyncpa [#allocation7], 0
    %16 = vsyncpa [#allocation10], 0
    %17 = vsyncpa [#allocation13], 0
    %18 = vsyncpa [#allocation16], 0
    %19 = vsyncpa [#allocation5], 0
    %s20 = scalar_lea.sflag [#allocation5], 1
    %21 = vsyncpa %s20, 0
    loop: start=0, step=1, limit=6
    $region2: #{tpu_custom_call.1} parent=1 // loop_pre_header
      _
    $region3: #{tpu_custom_call.1} parent=1 // loop_header
      %s23 = sphi 0, %s27
      %p24 = scmp.ge.s32.totalorder %s23, 6
      %s30 = sphi 0, %s42
      %s31 = sphi 0, %s38
      %s32 = sphi 0, %s30
      %s33 = sphi 0, %s31
      %s34 = sphi 0, %s32
      %s35 = sphi 0, %s33
      %s47 = sphi 0, %s49
      %s50 = sphi 0, %s47
      %s51 = sphi 0, %s50
      %s67 = sphi 0, %s51
      %s71 = sphi 0, %s71
      %s73 = sphi 0, %s71
      %s74 = sphi 0, %s73
      %s88 = sphi 0, %s74
      %s92 = sphi 0, %s92
      %s94 = sphi 0, %s92
      %s95 = sphi 0, %s94
      %s109 = sphi 0, %s95
      %s113 = sphi 0, %s113
      %s115 = sphi 0, %s113
      %s116 = sphi 0, %s115
      %s130 = sphi 0, %s116
      %s134 = sphi 0, %s134
      %s136 = sphi 0, %s134
      %s137 = sphi 0, %s136
      %s151 = sphi 0, %s137
      %s155 = sphi 0, %s155
      %s157 = sphi 0, %s155
      %s158 = sphi 0, %s157
      %s172 = sphi 0, %s158
      %s176 = sphi 0, %s176
      %s178 = sphi 0, %s176
      %s179 = sphi 0, %s178
      %s193 = sphi 0, %s179
      %s197 = sphi 0, %s197
      %s199 = sphi 0, %s197
      %s200 = sphi 0, %s199
      %s214 = sphi 0, %s200
      %s218 = sphi 0, %s218
      %s220 = sphi 0, %s218
      %s221 = sphi 0, %s220
      %s235 = sphi 0, %s221
      %s241 = sphi 0, %s243
      %s244 = sphi 0, %s241
      %s245 = sphi 0, %s244
      %s261 = sphi 0, %s245
    $region4: #{tpu_custom_call.1} parent=1 // loop_header_branch
      %26 = sbr.rel (%p24) target = $region8
    $region5: #{tpu_custom_call.1} parent=1 // loop_body
      %s28 = ssub.s32 %s23, 1
      %s29 = ssub.s32 %s23, 2
      %s36 = sadd.s32 1, %s31
      %p37 = scmp.ge.s32.totalorder %s36, 2
      %s38 = scalar_select %p37, 0, %s36
      %s39 = sadd.s32 1, %s30
      %s40 = scalar_select %p37, %s39, %s30
      %p41 = scmp.ge.s32.totalorder %s40, 2
      %s42 = scalar_select %p41, 0, %s40
      %s43 = ssub.s32 %s30, %s42
      %s44 = ssub.s32 %s31, %s38
      %s45 = sor.u32 %s43, %s44
      %p46 = scmp.eq.s32.totalorder %s45, 0
      %s48 = sadd.s32 %s47, 1
      %s49 = scalar_select %p46, %s47, %s48
      %p52 = pneg %p46
      %p53 = scmp.eq.s32.totalorder %s23, 3
      %p54 = por %p52, %p53
      %p55 = scmp.ne.s32.totalorder %s47, %s50
      %p56 = scmp.eq.s32.totalorder %s23, 0
      %p57 = por %p55, %p56
      %p58 = scmp.ne.s32.totalorder %s47, %s50
      %p59 = scmp.eq.s32.totalorder %s28, 3
      %p60 = por %p58, %p59
      %p61 = scmp.ne.s32.totalorder %s50, %s51
      %p62 = scmp.eq.s32.totalorder %s28, 0
      %p63 = por %p61, %p62
      %p64 = scmp.ne.s32.totalorder %s50, %s51
      %p65 = scmp.eq.s32.totalorder %s29, 3
      %p66 = por %p64, %p65
      %p68 = scmp.ne.s32.totalorder %s51, %s67
      %p69 = scmp.eq.s32.totalorder %s29, 0
      %p70 = por %p68, %p69
      %s72 = sadd.s32 %s71, 1
      %p75 = scmp.eq.s32.totalorder %s23, 3
      %p76 = scmp.ne.s32.totalorder %s71, %s73
      %p77 = scmp.eq.s32.totalorder %s23, 0
      %p78 = por %p76, %p77
      %p79 = scmp.ne.s32.totalorder %s71, %s73
      %p80 = scmp.eq.s32.totalorder %s28, 3
      %p81 = por %p79, %p80
      %p82 = scmp.ne.s32.totalorder %s73, %s74
      %p83 = scmp.eq.s32.totalorder %s28, 0
      %p84 = por %p82, %p83
      %p85 = scmp.ne.s32.totalorder %s73, %s74
      %p86 = scmp.eq.s32.totalorder %s29, 3
      %p87 = por %p85, %p86
      %p89 = scmp.ne.s32.totalorder %s74, %s88
      %p90 = scmp.eq.s32.totalorder %s29, 0
      %p91 = por %p89, %p90
      %s93 = sadd.s32 %s92, 1
      %p96 = scmp.eq.s32.totalorder %s23, 3
      %p97 = scmp.ne.s32.totalorder %s92, %s94
      %p98 = scmp.eq.s32.totalorder %s23, 0
      %p99 = por %p97, %p98
      %p100 = scmp.ne.s32.totalorder %s92, %s94
      %p101 = scmp.eq.s32.totalorder %s28, 3
      %p102 = por %p100, %p101
      %p103 = scmp.ne.s32.totalorder %s94, %s95
      %p104 = scmp.eq.s32.totalorder %s28, 0
      %p105 = por %p103, %p104
      %p106 = scmp.ne.s32.totalorder %s94, %s95
      %p107 = scmp.eq.s32.totalorder %s29, 3
      %p108 = por %p106, %p107
      %p110 = scmp.ne.s32.totalorder %s95, %s109
      %p111 = scmp.eq.s32.totalorder %s29, 0
      %p112 = por %p110, %p111
      %s114 = sadd.s32 %s113, 1
      %p117 = scmp.eq.s32.totalorder %s23, 3
      %p118 = scmp.ne.s32.totalorder %s113, %s115
      %p119 = scmp.eq.s32.totalorder %s23, 0
      %p120 = por %p118, %p119
      %p121 = scmp.ne.s32.totalorder %s113, %s115
      %p122 = scmp.eq.s32.totalorder %s28, 3
      %p123 = por %p121, %p122
      %p124 = scmp.ne.s32.totalorder %s115, %s116
      %p125 = scmp.eq.s32.totalorder %s28, 0
      %p126 = por %p124, %p125
      %p127 = scmp.ne.s32.totalorder %s115, %s116
      %p128 = scmp.eq.s32.totalorder %s29, 3
      %p129 = por %p127, %p128
      %p131 = scmp.ne.s32.totalorder %s116, %s130
      %p132 = scmp.eq.s32.totalorder %s29, 0
      %p133 = por %p131, %p132
      %s135 = sadd.s32 %s134, 1
      %p138 = scmp.eq.s32.totalorder %s23, 3
      %p139 = scmp.ne.s32.totalorder %s134, %s136
      %p140 = scmp.eq.s32.totalorder %s23, 0
      %p141 = por %p139, %p140
      %p142 = scmp.ne.s32.totalorder %s134, %s136
      %p143 = scmp.eq.s32.totalorder %s28, 3
      %p144 = por %p142, %p143
      %p145 = scmp.ne.s32.totalorder %s136, %s137
      %p146 = scmp.eq.s32.totalorder %s28, 0
      %p147 = por %p145, %p146
      %p148 = scmp.ne.s32.totalorder %s136, %s137
      %p149 = scmp.eq.s32.totalorder %s29, 3
      %p150 = por %p148, %p149
      %p152 = scmp.ne.s32.totalorder %s137, %s151
      %p153 = scmp.eq.s32.totalorder %s29, 0
      %p154 = por %p152, %p153
      %s156 = sadd.s32 %s155, 1
      %p159 = scmp.eq.s32.totalorder %s23, 3
      %p160 = scmp.ne.s32.totalorder %s155, %s157
      %p161 = scmp.eq.s32.totalorder %s23, 0
      %p162 = por %p160, %p161
      %p163 = scmp.ne.s32.totalorder %s155, %s157
      %p164 = scmp.eq.s32.totalorder %s28, 3
      %p165 = por %p163, %p164
      %p166 = scmp.ne.s32.totalorder %s157, %s158
      %p167 = scmp.eq.s32.totalorder %s28, 0
      %p168 = por %p166, %p167
      %p169 = scmp.ne.s32.totalorder %s157, %s158
      %p170 = scmp.eq.s32.totalorder %s29, 3
      %p171 = por %p169, %p170
      %p173 = scmp.ne.s32.totalorder %s158, %s172
      %p174 = scmp.eq.s32.totalorder %s29, 0
      %p175 = por %p173, %p174
      %s177 = sadd.s32 %s176, 1
      %p180 = scmp.eq.s32.totalorder %s23, 3
      %p181 = scmp.ne.s32.totalorder %s176, %s178
      %p182 = scmp.eq.s32.totalorder %s23, 0
      %p183 = por %p181, %p182
      %p184 = scmp.ne.s32.totalorder %s176, %s178
      %p185 = scmp.eq.s32.totalorder %s28, 3
      %p186 = por %p184, %p185
      %p187 = scmp.ne.s32.totalorder %s178, %s179
      %p188 = scmp.eq.s32.totalorder %s28, 0
      %p189 = por %p187, %p188
      %p190 = scmp.ne.s32.totalorder %s178, %s179
      %p191 = scmp.eq.s32.totalorder %s29, 3
      %p192 = por %p190, %p191
      %p194 = scmp.ne.s32.totalorder %s179, %s193
      %p195 = scmp.eq.s32.totalorder %s29, 0
      %p196 = por %p194, %p195
      %s198 = sadd.s32 %s197, 1
      %p201 = scmp.eq.s32.totalorder %s23, 3
      %p202 = scmp.ne.s32.totalorder %s197, %s199
      %p203 = scmp.eq.s32.totalorder %s23, 0
      %p204 = por %p202, %p203
      %p205 = scmp.ne.s32.totalorder %s197, %s199
      %p206 = scmp.eq.s32.totalorder %s28, 3
      %p207 = por %p205, %p206
      %p208 = scmp.ne.s32.totalorder %s199, %s200
      %p209 = scmp.eq.s32.totalorder %s28, 0
      %p210 = por %p208, %p209
      %p211 = scmp.ne.s32.totalorder %s199, %s200
      %p212 = scmp.eq.s32.totalorder %s29, 3
      %p213 = por %p211, %p212
      %p215 = scmp.ne.s32.totalorder %s200, %s214
      %p216 = scmp.eq.s32.totalorder %s29, 0
      %p217 = por %p215, %p216
      %s219 = sadd.s32 %s218, 1
      %p222 = scmp.eq.s32.totalorder %s23, 3
      %p223 = scmp.ne.s32.totalorder %s218, %s220
      %p224 = scmp.eq.s32.totalorder %s23, 0
      %p225 = por %p223, %p224
      %p226 = scmp.ne.s32.totalorder %s218, %s220
      %p227 = scmp.eq.s32.totalorder %s28, 3
      %p228 = por %p226, %p227
      %p229 = scmp.ne.s32.totalorder %s220, %s221
      %p230 = scmp.eq.s32.totalorder %s28, 0
      %p231 = por %p229, %p230
      %p232 = scmp.ne.s32.totalorder %s220, %s221
      %p233 = scmp.eq.s32.totalorder %s29, 3
      %p234 = por %p232, %p233
      %p236 = scmp.ne.s32.totalorder %s221, %s235
      %p237 = scmp.eq.s32.totalorder %s29, 0
      %p238 = por %p236, %p237
      %s239 = ssub.s32 %s30, %s42
      %p240 = scmp.eq.s32.totalorder %s239, 0
      %s242 = sadd.s32 %s241, 1
      %s243 = scalar_select %p240, %s241, %s242
      %p246 = pneg %p240
      %p247 = scmp.eq.s32.totalorder %s23, 3
      %p248 = por %p246, %p247
      %p249 = scmp.ne.s32.totalorder %s241, %s244
      %p250 = scmp.eq.s32.totalorder %s23, 0
      %p251 = por %p249, %p250
      %p252 = scmp.ne.s32.totalorder %s241, %s244
      %p253 = scmp.eq.s32.totalorder %s28, 3
      %p254 = por %p252, %p253
      %p255 = scmp.ne.s32.totalorder %s244, %s245
      %p256 = scmp.eq.s32.totalorder %s28, 0
      %p257 = por %p255, %p256
      %p258 = scmp.ne.s32.totalorder %s244, %s245
      %p259 = scmp.eq.s32.totalorder %s29, 3
      %p260 = por %p258, %p259
      %p262 = scmp.ne.s32.totalorder %s245, %s261
      %p263 = scmp.eq.s32.totalorder %s29, 0
      %p264 = por %p262, %p263
      %p265 = scmp.le.s32.totalorder 1, %s23
      %p266 = scmp.lt.s32.totalorder %s23, 5
      %p267 = pnand %p265, %p266
      %p268 = pneg %p267
      // Predicated region
      $region9: #{tpu_custom_call.1} parent=5 // pred_check
        _
      $region10: #{tpu_custom_call.1} parent=5 // pred_check_branch
        %270 = sbr.rel (%p267) target = $region12
      $region11: #{tpu_custom_call.1} parent=5 // pred_region
        %s271 = ssub.s32 %s23, 1
        // Predicated region
        $region13: #{tpu_custom_call.1} parent=11 // pred_check
          %p272 = pneg %p84
        $region14: #{tpu_custom_call.1} parent=11 // pred_check_branch
          %274 = sbr.rel (%p272) target = $region16
        $region15: #{tpu_custom_call.1} parent=11 // pred_region
          %s276 = ssub.s32 4096, 4096
          %277 = vsyncadd [#allocation4], %s276
          %s278 = sshll.u32 [#allocation3], 4
          %s279 = int_to_ptr.vmem [resolvable:$true] %s278
          %284 = dma.hbm_to_vmem [thread:$0]  %s1, 4096, %s279, [#allocation4], 1024, 1024, 64
        $region16: #{tpu_custom_call.1} parent=11 // pred_fallthru
          _
        // Predicated region
        $region17: #{tpu_custom_call.1} parent=11 // pred_check
          %p285 = pneg %p105
        $region18: #{tpu_custom_call.1} parent=11 // pred_check_branch
          %287 = sbr.rel (%p285) target = $region20
        $region19: #{tpu_custom_call.1} parent=11 // pred_region
          %s289 = ssub.s32 256, 256
          %290 = vsyncadd [#allocation7], %s289
          %s292 = sshll.u32 [#allocation6], 4
          %s293 = int_to_ptr.vmem [resolvable:$true] %s292
          %295 = dma.hbm_to_vmem [thread:$0]  %s2, 256, %s293, [#allocation7]
        $region20: #{tpu_custom_call.1} parent=11 // pred_fallthru
          _
        // Predicated region
        $region21: #{tpu_custom_call.1} parent=11 // pred_check
          %p296 = pneg %p126
        $region22: #{tpu_custom_call.1} parent=11 // pred_check_branch
          %298 = sbr.rel (%p296) target = $region24
        $region23: #{tpu_custom_call.1} parent=11 // pred_region
          %s300 = ssub.s32 65536, 65536
          %301 = vsyncadd [#allocation7], %s300
          %s302 = sshll.u32 [#allocation8], 4
          %s303 = int_to_ptr.vmem [resolvable:$true] %s302
          %308 = dma.hbm_to_vmem [thread:$0]  %s3, 65536, %s303, [#allocation7], 256, 256, 16
        $region24: #{tpu_custom_call.1} parent=11 // pred_fallthru
          _
        // Predicated region
        $region25: #{tpu_custom_call.1} parent=11 // pred_check
          %p309 = pneg %p147
        $region26: #{tpu_custom_call.1} parent=11 // pred_check_branch
          %311 = sbr.rel (%p309) target = $region28
        $region27: #{tpu_custom_call.1} parent=11 // pred_region
          %s313 = ssub.s32 64, 64
          %314 = vsyncadd [#allocation10], %s313
          %s316 = sshll.u32 [#allocation9], 4
          %s317 = int_to_ptr.vmem [resolvable:$true] %s316
          %319 = dma.hbm_to_vmem [thread:$0]  %s4, 64, %s317, [#allocation10]
        $region28: #{tpu_custom_call.1} parent=11 // pred_fallthru
          _
        // Predicated region
        $region29: #{tpu_custom_call.1} parent=11 // pred_check
          %p320 = pneg %p168
        $region30: #{tpu_custom_call.1} parent=11 // pred_check_branch
          %322 = sbr.rel (%p320) target = $region32
        $region31: #{tpu_custom_call.1} parent=11 // pred_region
          %s324 = ssub.s32 8192, 8192
          %325 = vsyncadd [#allocation10], %s324
          %s326 = sshll.u32 [#allocation11], 4
          %s327 = int_to_ptr.vmem [resolvable:$true] %s326
          %332 = dma.hbm_to_vmem [thread:$0]  %s5, 8192, %s327, [#allocation10], 128, 128, 8
        $region32: #{tpu_custom_call.1} parent=11 // pred_fallthru
          _
        // Predicated region
        $region33: #{tpu_custom_call.1} parent=11 // pred_check
          %p333 = pneg %p189
        $region34: #{tpu_custom_call.1} parent=11 // pred_check_branch
          %335 = sbr.rel (%p333) target = $region36
        $region35: #{tpu_custom_call.1} parent=11 // pred_region
          %s337 = ssub.s32 32, 32
          %338 = vsyncadd [#allocation13], %s337
          %s340 = sshll.u32 [#allocation12], 4
          %s341 = int_to_ptr.vmem [resolvable:$true] %s340
          %343 = dma.hbm_to_vmem [thread:$0]  %s6, 32, %s341, [#allocation13]
        $region36: #{tpu_custom_call.1} parent=11 // pred_fallthru
          _
        // Predicated region
        $region37: #{tpu_custom_call.1} parent=11 // pred_check
          %p344 = pneg %p210
        $region38: #{tpu_custom_call.1} parent=11 // pred_check_branch
          %346 = sbr.rel (%p344) target = $region40
        $region39: #{tpu_custom_call.1} parent=11 // pred_region
          %s348 = ssub.s32 2048, 2048
          %349 = vsyncadd [#allocation13], %s348
          %s350 = sshll.u32 [#allocation14], 4
          %s351 = int_to_ptr.vmem [resolvable:$true] %s350
          %356 = dma.hbm_to_vmem [thread:$0]  %s7, 2048, %s351, [#allocation13], 64, 64, 4
        $region40: #{tpu_custom_call.1} parent=11 // pred_fallthru
          _
        // Predicated region
        $region41: #{tpu_custom_call.1} parent=11 // pred_check
          %p357 = pneg %p231
        $region42: #{tpu_custom_call.1} parent=11 // pred_check_branch
          %359 = sbr.rel (%p357) target = $region44
        $region43: #{tpu_custom_call.1} parent=11 // pred_region
          %s361 = ssub.s32 16, 16
          %362 = vsyncadd [#allocation16], %s361
          %s364 = sshll.u32 [#allocation15], 4
          %s365 = int_to_ptr.vmem [resolvable:$true] %s364
          %367 = dma.hbm_to_vmem [thread:$0]  %s8, 16, %s365, [#allocation16]
        $region44: #{tpu_custom_call.1} parent=11 // pred_fallthru
          _
      $region12: #{tpu_custom_call.1} parent=5 // pred_fallthru
        _
      %p368 = scmp.lt.s32.totalorder %s23, 4
      // Predicated region
      $region45: #{tpu_custom_call.1} parent=5 // pred_check
        %p369 = pneg %p368
      $region46: #{tpu_custom_call.1} parent=5 // pred_check_branch
        %371 = sbr.rel (%p369) target = $region48
      $region47: #{tpu_custom_call.1} parent=5 // pred_region
        // Predicated region
        $region49: #{tpu_custom_call.1} parent=47 // pred_check
          %p372 = pneg %p57
        $region50: #{tpu_custom_call.1} parent=47 // pred_check_branch
          %374 = sbr.rel (%p372) target = $region52
        $region51: #{tpu_custom_call.1} parent=47 // pred_region
          %s375 = smul.u32 16, %s31
          %p376 = scmp.lt.s32.totalorder %s30, 1
          %s377 = scalar_select %p376, %s30, 1
          %p378 = scmp.lt.s32.totalorder %s375, 31
          %s379 = scalar_select %p378, %s375, 31
          %s380 = smul.addr %s377, 32
          %s381 = sadd.s32 %s379, %s380
          %s382 = smul.addr %s381, 4
          %s383 = scalar_lea.vmem %s0, %s382
          %s384 = smul.u32 16, %s31
        $region52: #{tpu_custom_call.1} parent=47 // pred_fallthru
          _
      $region48: #{tpu_custom_call.1} parent=5 // pred_fallthru
        _
      %p385 = scmp.le.s32.totalorder 1, %s23
      %p386 = scmp.lt.s32.totalorder %s23, 5
      %p387 = pnand %p385, %p386
      %p388 = pneg %p387
      // Predicated region
      $region53: #{tpu_custom_call.1} parent=5 // pred_check
        _
      $region54: #{tpu_custom_call.1} parent=5 // pred_check_branch
        %390 = sbr.rel (%p387) target = $region56
      $region55: #{tpu_custom_call.1} parent=5 // pred_region
        %s391 = ssub.s32 %s23, 1
        // Predicated region
        $region57: #{tpu_custom_call.1} parent=55 // pred_check
          %p392 = pneg %p84
        $region58: #{tpu_custom_call.1} parent=55 // pred_check_branch
          %394 = sbr.rel (%p392) target = $region60
        $region59: #{tpu_custom_call.1} parent=55 // pred_region
          %395 = dma.done [#allocation4], 4096
        $region60: #{tpu_custom_call.1} parent=55 // pred_fallthru
          _
        // Predicated region
        $region61: #{tpu_custom_call.1} parent=55 // pred_check
          %p396 = pneg %p105
        $region62: #{tpu_custom_call.1} parent=55 // pred_check_branch
          %398 = sbr.rel (%p396) target = $region64
        $region63: #{tpu_custom_call.1} parent=55 // pred_region
          %399 = dma.done [#allocation7], 256
        $region64: #{tpu_custom_call.1} parent=55 // pred_fallthru
          _
        // Predicated region
        $region65: #{tpu_custom_call.1} parent=55 // pred_check
          %p400 = pneg %p126
        $region66: #{tpu_custom_call.1} parent=55 // pred_check_branch
          %402 = sbr.rel (%p400) target = $region68
        $region67: #{tpu_custom_call.1} parent=55 // pred_region
          %403 = dma.done [#allocation7], 65536
        $region68: #{tpu_custom_call.1} parent=55 // pred_fallthru
          _
        // Predicated region
        $region69: #{tpu_custom_call.1} parent=55 // pred_check
          %p404 = pneg %p147
        $region70: #{tpu_custom_call.1} parent=55 // pred_check_branch
          %406 = sbr.rel (%p404) target = $region72
        $region71: #{tpu_custom_call.1} parent=55 // pred_region
          %407 = dma.done [#allocation10], 64
        $region72: #{tpu_custom_call.1} parent=55 // pred_fallthru
          _
        // Predicated region
        $region73: #{tpu_custom_call.1} parent=55 // pred_check
          %p408 = pneg %p168
        $region74: #{tpu_custom_call.1} parent=55 // pred_check_branch
          %410 = sbr.rel (%p408) target = $region76
        $region75: #{tpu_custom_call.1} parent=55 // pred_region
          %411 = dma.done [#allocation10], 8192
        $region76: #{tpu_custom_call.1} parent=55 // pred_fallthru
          _
        // Predicated region
        $region77: #{tpu_custom_call.1} parent=55 // pred_check
          %p412 = pneg %p189
        $region78: #{tpu_custom_call.1} parent=55 // pred_check_branch
          %414 = sbr.rel (%p412) target = $region80
        $region79: #{tpu_custom_call.1} parent=55 // pred_region
          %415 = dma.done [#allocation13], 32
        $region80: #{tpu_custom_call.1} parent=55 // pred_fallthru
          _
        // Predicated region
        $region81: #{tpu_custom_call.1} parent=55 // pred_check
          %p416 = pneg %p210
        $region82: #{tpu_custom_call.1} parent=55 // pred_check_branch
          %418 = sbr.rel (%p416) target = $region84
        $region83: #{tpu_custom_call.1} parent=55 // pred_region
          %419 = dma.done [#allocation13], 2048
        $region84: #{tpu_custom_call.1} parent=55 // pred_fallthru
          _
        // Predicated region
        $region85: #{tpu_custom_call.1} parent=55 // pred_check
          %p420 = pneg %p231
        $region86: #{tpu_custom_call.1} parent=55 // pred_check_branch
          %422 = sbr.rel (%p420) target = $region88
        $region87: #{tpu_custom_call.1} parent=55 // pred_region
          %423 = dma.done [#allocation16], 16
        $region88: #{tpu_custom_call.1} parent=55 // pred_fallthru
          _
        %s424 = smul.u32 16, %s33
        %p425 = scmp.lt.s32.totalorder %s32, 1
        %s426 = scalar_select %p425, %s32, 1
        %p427 = scmp.lt.s32.totalorder %s424, 31
        %s428 = scalar_select %p427, %s424, 31
        %s429 = smul.addr %s426, 32
        %s430 = sadd.s32 %s428, %s429
        %s431 = smul.addr %s430, 4
        %s432 = scalar_lea.vmem %s0, %s431
        %p433 = pneg %p63
        %p434 = pneg %p60
        %p435 = pneg %p84
        %p436 = pneg %p81
        %p437 = pneg %p105
        %p438 = pneg %p102
        %p439 = pneg %p126
        %p440 = pneg %p123
        %p441 = pneg %p147
        %p442 = pneg %p144
        %p443 = pneg %p168
        %p444 = pneg %p165
        %p445 = pneg %p189
        %p446 = pneg %p186
        %p447 = pneg %p210
        %p448 = pneg %p207
        %p449 = pneg %p231
        %p450 = pneg %p228
        %p451 = pneg %p257
        %p452 = pneg %p254
        %s453 = sand.u32 %s244, 1
        %s454 = scalar_lea.sflag [#allocation5], %s453
        %s455 = sand.u32 %s244, 1
        %s456 = scalar_lea.vmem [#allocation17], %s455
        %s457 = smul.u32 16, %s33
        %p458 = scmp.lt.s32.totalorder %s32, 1
        %s459 = scalar_select %p458, %s32, 1
        %p460 = scmp.lt.s32.totalorder %s457, 31
        %s461 = scalar_select %p460, %s457, 31
        %s462 = smul.addr %s459, 32
        %s463 = sadd.s32 %s461, %s462
        %s464 = smul.addr %s463, 4
        %s465 = scalar_lea.vmem %s0, %s464
        %s466 = smul.u32 16, %s33
        %p468 = scmp.eq.s32.totalorder %s33, 0
        // Predicated region
        $region89: #{tpu_custom_call.1} parent=55 // pred_check
          %p469 = pneg %p468
        $region90: #{tpu_custom_call.1} parent=55 // pred_check_branch
          %471 = sbr.rel (%p469) target = $region92
        $region91: #{tpu_custom_call.1} parent=55 // pred_region
          %472 = vst [vmem:[#allocation2] sm:$0xff] 0.0
          %473 = vst [vmem:[#allocation2 + $0x8] sm:$0xff] 0.0
        $region92: #{tpu_custom_call.1} parent=55 // pred_fallthru
          _
        %v474 = vld [vmem:[%s465] sm:$0xf]
        %v475 = vld [vmem:[%s465 + $0x4] sm:$0xf]
        %v476 = vld [vmem:[%s465 + $0x8] sm:$0xf]
        %v477 = vld [vmem:[%s465 + $0xc] sm:$0xf]
        %v478 = vld [vmem:[%s465 + $0x10] sm:$0xf]
        %v479 = vld [vmem:[%s465 + $0x14] sm:$0xf]
        %v480 = vld [vmem:[%s465 + $0x18] sm:$0xf]
        %v481 = vld [vmem:[%s465 + $0x1c] sm:$0xf]
        %v482 = vld [vmem:[%s465 + $0x20] sm:$0xf]
        %v483 = vld [vmem:[%s465 + $0x24] sm:$0xf]
        %v484 = vld [vmem:[%s465 + $0x28] sm:$0xf]
        %v485 = vld [vmem:[%s465 + $0x2c] sm:$0xf]
        %v486 = vld [vmem:[%s465 + $0x30] sm:$0xf]
        %v487 = vld [vmem:[%s465 + $0x34] sm:$0xf]
        %v488 = vld [vmem:[%s465 + $0x38] sm:$0xf]
        %v489 = vld [vmem:[%s465 + $0x3c] sm:$0xf]
        %v490 = vld [vmem:[#allocation3] sm:$0xff]
        %v491 = vld [vmem:[#allocation3 + $0x8] sm:$0xff]
        %v492 = vld [vmem:[#allocation3 + $0x10] sm:$0xff]
        %v493 = vld [vmem:[#allocation3 + $0x18] sm:$0xff]
        %v494 = vld [vmem:[#allocation3 + $0x20] sm:$0xff]
        %v495 = vld [vmem:[#allocation3 + $0x28] sm:$0xff]
        %v496 = vld [vmem:[#allocation3 + $0x30] sm:$0xff]
        %v497 = vld [vmem:[#allocation3 + $0x38] sm:$0xff]
        %v498 = vld [vmem:[#allocation3 + $0x40] sm:$0xff]
        %v499 = vld [vmem:[#allocation3 + $0x48] sm:$0xff]
        %v500 = vld [vmem:[#allocation3 + $0x50] sm:$0xff]
        %v501 = vld [vmem:[#allocation3 + $0x58] sm:$0xff]
        %v502 = vld [vmem:[#allocation3 + $0x60] sm:$0xff]
        %v503 = vld [vmem:[#allocation3 + $0x68] sm:$0xff]
        %v504 = vld [vmem:[#allocation3 + $0x70] sm:$0xff]
        %v505 = vld [vmem:[#allocation3 + $0x78] sm:$0xff]
        %v506 = vld [vmem:[#allocation3 + $0x80] sm:$0xff]
        %v507 = vld [vmem:[#allocation3 + $0x88] sm:$0xff]
        %v508 = vld [vmem:[#allocation3 + $0x90] sm:$0xff]
        %v509 = vld [vmem:[#allocation3 + $0x98] sm:$0xff]
        %v510 = vld [vmem:[#allocation3 + $0xa0] sm:$0xff]
        %v511 = vld [vmem:[#allocation3 + $0xa8] sm:$0xff]
        %v512 = vld [vmem:[#allocation3 + $0xb0] sm:$0xff]
        %v513 = vld [vmem:[#allocation3 + $0xb8] sm:$0xff]
        %v514 = vld [vmem:[#allocation3 + $0xc0] sm:$0xff]
        %v515 = vld [vmem:[#allocation3 + $0xc8] sm:$0xff]
        %v516 = vld [vmem:[#allocation3 + $0xd0] sm:$0xff]
        %v517 = vld [vmem:[#allocation3 + $0xd8] sm:$0xff]
        %v518 = vld [vmem:[#allocation3 + $0xe0] sm:$0xff]
        %v519 = vld [vmem:[#allocation3 + $0xe8] sm:$0xff]
        %v520 = vld [vmem:[#allocation3 + $0xf0] sm:$0xff]
        %v521 = vld [vmem:[#allocation3 + $0xf8] sm:$0xff]
        %v522 = vld [vmem:[#allocation6] sm:$0xff]
        %v523 = vld [vmem:[#allocation6 + $0x8] sm:$0xff]
        %v526 = vlaneseq
        %v527 = vshrl.u32 %v526, 7
        %v528 = vsub.s32 0, %v527
        %v529 = vrot.slane %v522, %v528
        %v530 = vlaneseq
        %v531 = vshrl.u32 %v530, 7
        %v532 = vsub.s32 1, %v531
        %v533 = vrot.slane %v522, %v532
        %v534 = vlaneseq
        %v535 = vshrl.u32 %v534, 7
        %v536 = vsub.s32 2, %v535
        %v537 = vrot.slane %v522, %v536
        %v538 = vlaneseq
        %v539 = vshrl.u32 %v538, 7
        %v540 = vsub.s32 3, %v539
        %v541 = vrot.slane %v522, %v540
        %v542 = vlaneseq
        %v543 = vshrl.u32 %v542, 7
        %v544 = vsub.s32 4, %v543
        %v545 = vrot.slane %v522, %v544
        %v546 = vlaneseq
        %v547 = vshrl.u32 %v546, 7
        %v548 = vsub.s32 5, %v547
        %v549 = vrot.slane %v522, %v548
        %v550 = vlaneseq
        %v551 = vshrl.u32 %v550, 7
        %v552 = vsub.s32 6, %v551
        %v553 = vrot.slane %v522, %v552
        %v554 = vlaneseq
        %v555 = vshrl.u32 %v554, 7
        %v556 = vsub.s32 7, %v555
        %v557 = vrot.slane %v522, %v556
        %v558 = vlaneseq
        %v559 = vshrl.u32 %v558, 7
        %v560 = vsub.s32 0, %v559
        %v561 = vrot.slane %v523, %v560
        %v562 = vlaneseq
        %v563 = vshrl.u32 %v562, 7
        %v564 = vsub.s32 1, %v563
        %v565 = vrot.slane %v523, %v564
        %v566 = vlaneseq
        %v567 = vshrl.u32 %v566, 7
        %v568 = vsub.s32 2, %v567
        %v569 = vrot.slane %v523, %v568
        %v570 = vlaneseq
        %v571 = vshrl.u32 %v570, 7
        %v572 = vsub.s32 3, %v571
        %v573 = vrot.slane %v523, %v572
        %v574 = vlaneseq
        %v575 = vshrl.u32 %v574, 7
        %v576 = vsub.s32 4, %v575
        %v577 = vrot.slane %v523, %v576
        %v578 = vlaneseq
        %v579 = vshrl.u32 %v578, 7
        %v580 = vsub.s32 5, %v579
        %v581 = vrot.slane %v523, %v580
        %v582 = vlaneseq
        %v583 = vshrl.u32 %v582, 7
        %v584 = vsub.s32 6, %v583
        %v585 = vrot.slane %v523, %v584
        %v586 = vlaneseq
        %v587 = vshrl.u32 %v586, 7
        %v588 = vsub.s32 7, %v587
        %v589 = vrot.slane %v523, %v588
        %v622 = vunpack.c.l.b16 %v474
        %v623 = vunpack.c.l.b16 %v475
        %v624 = vunpack.c.l.b16 %v476
        %v625 = vunpack.c.l.b16 %v477
        %v626 = vunpack.c.l.b16 %v478
        %v627 = vunpack.c.l.b16 %v479
        %v628 = vunpack.c.l.b16 %v480
        %v629 = vunpack.c.l.b16 %v481
        %v630 = vunpack.c.l.b16 %v482
        %v631 = vunpack.c.l.b16 %v483
        %v632 = vunpack.c.l.b16 %v484
        %v633 = vunpack.c.l.b16 %v485
        %v634 = vunpack.c.l.b16 %v486
        %v635 = vunpack.c.l.b16 %v487
        %v636 = vunpack.c.l.b16 %v488
        %v637 = vunpack.c.l.b16 %v489
        %v638 = vpack.c.b16 %v623, %v622
        %v639 = vpack.c.b16 %v625, %v624
        %v640 = vpack.c.b16 %v627, %v626
        %v641 = vpack.c.b16 %v629, %v628
        %v642 = vpack.c.b16 %v631, %v630
        %v643 = vpack.c.b16 %v633, %v632
        %v644 = vpack.c.b16 %v635, %v634
        %v645 = vpack.c.b16 %v637, %v636
        %v678 = vunpack.c.l.b16 %v490
        %v679 = vunpack.c.h.b16 %v490
        %v680 = vunpack.c.l.b16 %v491
        %v681 = vunpack.c.h.b16 %v491
        %v682 = vunpack.c.l.b16 %v492
        %v683 = vunpack.c.h.b16 %v492
        %v684 = vunpack.c.l.b16 %v493
        %v685 = vunpack.c.h.b16 %v493
        %v686 = vunpack.c.l.b16 %v494
        %v687 = vunpack.c.h.b16 %v494
        %v688 = vunpack.c.l.b16 %v495
        %v689 = vunpack.c.h.b16 %v495
        %v690 = vunpack.c.l.b16 %v496
        %v691 = vunpack.c.h.b16 %v496
        %v692 = vunpack.c.l.b16 %v497
        %v693 = vunpack.c.h.b16 %v497
        %v694 = vunpack.c.l.b16 %v498
        %v695 = vunpack.c.h.b16 %v498
        %v696 = vunpack.c.l.b16 %v499
        %v697 = vunpack.c.h.b16 %v499
        %v698 = vunpack.c.l.b16 %v500
        %v699 = vunpack.c.h.b16 %v500
        %v700 = vunpack.c.l.b16 %v501
        %v701 = vunpack.c.h.b16 %v501
        %v702 = vunpack.c.l.b16 %v502
        %v703 = vunpack.c.h.b16 %v502
        %v704 = vunpack.c.l.b16 %v503
        %v705 = vunpack.c.h.b16 %v503
        %v706 = vunpack.c.l.b16 %v504
        %v707 = vunpack.c.h.b16 %v504
        %v708 = vunpack.c.l.b16 %v505
        %v709 = vunpack.c.h.b16 %v505
        %v710 = vunpack.c.l.b16 %v506
        %v711 = vunpack.c.h.b16 %v506
        %v712 = vunpack.c.l.b16 %v507
        %v713 = vunpack.c.h.b16 %v507
        %v714 = vunpack.c.l.b16 %v508
        %v715 = vunpack.c.h.b16 %v508
        %v716 = vunpack.c.l.b16 %v509
        %v717 = vunpack.c.h.b16 %v509
        %v718 = vunpack.c.l.b16 %v510
        %v719 = vunpack.c.h.b16 %v510
        %v720 = vunpack.c.l.b16 %v511
        %v721 = vunpack.c.h.b16 %v511
        %v722 = vunpack.c.l.b16 %v512
        %v723 = vunpack.c.h.b16 %v512
        %v724 = vunpack.c.l.b16 %v513
        %v725 = vunpack.c.h.b16 %v513
        %v726 = vunpack.c.l.b16 %v514
        %v727 = vunpack.c.h.b16 %v514
        %v728 = vunpack.c.l.b16 %v515
        %v729 = vunpack.c.h.b16 %v515
        %v730 = vunpack.c.l.b16 %v516
        %v731 = vunpack.c.h.b16 %v516
        %v732 = vunpack.c.l.b16 %v517
        %v733 = vunpack.c.h.b16 %v517
        %v734 = vunpack.c.l.b16 %v518
        %v735 = vunpack.c.h.b16 %v518
        %v736 = vunpack.c.l.b16 %v519
        %v737 = vunpack.c.h.b16 %v519
        %v738 = vunpack.c.l.b16 %v520
        %v739 = vunpack.c.h.b16 %v520
        %v740 = vunpack.c.l.b16 %v521
        %v741 = vunpack.c.h.b16 %v521
        %v742 = vpack.c.b16 %v694, %v678
        %v743 = vpack.c.b16 %v695, %v679
        %v744 = vpack.c.b16 %v696, %v680
        %v745 = vpack.c.b16 %v697, %v681
        %v746 = vpack.c.b16 %v698, %v682
        %v747 = vpack.c.b16 %v699, %v683
        %v748 = vpack.c.b16 %v700, %v684
        %v749 = vpack.c.b16 %v701, %v685
        %v750 = vpack.c.b16 %v702, %v686
        %v751 = vpack.c.b16 %v703, %v687
        %v752 = vpack.c.b16 %v704, %v688
        %v753 = vpack.c.b16 %v705, %v689
        %v754 = vpack.c.b16 %v706, %v690
        %v755 = vpack.c.b16 %v707, %v691
        %v756 = vpack.c.b16 %v708, %v692
        %v757 = vpack.c.b16 %v709, %v693
        %v758 = vpack.c.b16 %v726, %v710
        %v759 = vpack.c.b16 %v727, %v711
        %v760 = vpack.c.b16 %v728, %v712
        %v761 = vpack.c.b16 %v729, %v713
        %v762 = vpack.c.b16 %v730, %v714
        %v763 = vpack.c.b16 %v731, %v715
        %v764 = vpack.c.b16 %v732, %v716
        %v765 = vpack.c.b16 %v733, %v717
        %v766 = vpack.c.b16 %v734, %v718
        %v767 = vpack.c.b16 %v735, %v719
        %v768 = vpack.c.b16 %v736, %v720
        %v769 = vpack.c.b16 %v737, %v721
        %v770 = vpack.c.b16 %v738, %v722
        %v771 = vpack.c.b16 %v739, %v723
        %v772 = vpack.c.b16 %v740, %v724
        %v773 = vpack.c.b16 %v741, %v725
        %vm806 = vcmask 261120
        %v808 = vsel %vm806, %v638, 0
        %v811 = vsel %vm806, %v639, 0
        %v814 = vsel %vm806, %v640, 0
        %v817 = vsel %vm806, %v641, 0
        %v820 = vsel %vm806, %v642, 0
        %v823 = vsel %vm806, %v643, 0
        %v826 = vsel %vm806, %v644, 0
        %v829 = vsel %vm806, %v645, 0
        %831 = vmatprep.subr.bf16.mxu0 %v743
        %832 = vmatpush1.bf16.msra.mxu0 %v742
        %833 = vmatprep.subr.bf16.mxu0 %v759
        %834 = vmatpush1.bf16.msra.mxu0 %v758
        %835 = vmatprep.subr.bf16.mxu0 0
        %836 = vmatpush1.bf16.msra.mxu0 0
        %837 = vmatprep.subr.bf16.mxu0 0
        %838 = vmatpush1.bf16.msra.mxu0 0
        %839 = vmatprep.subr.bf16.mxu0 0
        %840 = vmatpush1.bf16.msra.mxu0 0
        %841 = vmatprep.subr.bf16.mxu0 0
        %842 = vmatpush1.bf16.msra.mxu0 0
        %843 = vmatprep.subr.bf16.mxu0 0
        %844 = vmatpush1.bf16.msra.mxu0 0
        %845 = vmatprep.subr.bf16.mxu0 0
        %846 = vmatpush1.bf16.msra.mxu0 0
        %847 = vmatprep.subr.bf16.mxu0 0
        %848 = vmatpush1.bf16.msra.mxu0 0
        %849 = vmatprep.subr.bf16.mxu0 0
        %850 = vmatpush1.bf16.msra.mxu0 0
        %851 = vmatprep.subr.bf16.mxu0 0
        %852 = vmatpush1.bf16.msra.mxu0 0
        %853 = vmatprep.subr.bf16.mxu0 0
        %854 = vmatpush1.bf16.msra.mxu0 0
        %855 = vmatprep.subr.bf16.mxu0 0
        %856 = vmatpush1.bf16.msra.mxu0 0
        %857 = vmatprep.subr.bf16.mxu0 0
        %858 = vmatpush1.bf16.msra.mxu0 0
        %859 = vmatprep.subr.bf16.mxu0 0
        %860 = vmatpush1.bf16.msra.mxu0 0
        %861 = vmatprep.subr.bf16.mxu0 0
        %862 = vmatpush1.bf16.msra.mxu0 0
        %863 = vmatprep.mubr.bf16.mxu0 0
        %864 = vmatmul.mubr.bf16.gmra.mrb[0].mxu0 %v808
        %v865 = vpop.f32.mrb[0].mxu0
        %v866 = vadd.f32 %v529, %v865
        %v867 = vpop.f32.mrb[0].mxu0
        %v868 = vadd.f32 %v533, %v867
        %v869 = vpop.f32.mrb[0].mxu0
        %v870 = vadd.f32 %v529, %v869
        %v871 = vpop.f32.mrb[0].mxu0
        %v872 = vadd.f32 %v533, %v871
        %873 = vmatprep.mubr.bf16.mxu0 0
        %874 = vmatmul.mubr.bf16.gmra.mrb[0].mxu0 %v811
        %v875 = vpop.f32.mrb[0].mxu0
        %v876 = vadd.f32 %v529, %v875
        %v877 = vpop.f32.mrb[0].mxu0
        %v878 = vadd.f32 %v533, %v877
        %v879 = vpop.f32.mrb[0].mxu0
        %v880 = vadd.f32 %v529, %v879
        %v881 = vpop.f32.mrb[0].mxu0
        %v882 = vadd.f32 %v533, %v881
        %883 = vmatprep.mubr.bf16.mxu0 0
        %884 = vmatmul.mubr.bf16.gmra.mrb[0].mxu0 %v814
        %v885 = vpop.f32.mrb[0].mxu0
        %v886 = vadd.f32 %v529, %v885
        %v887 = vpop.f32.mrb[0].mxu0
        %v888 = vadd.f32 %v533, %v887
        %v889 = vpop.f32.mrb[0].mxu0
        %v890 = vadd.f32 %v529, %v889
        %v891 = vpop.f32.mrb[0].mxu0
        %v892 = vadd.f32 %v533, %v891
        %893 = vmatprep.mubr.bf16.mxu0 0
        %894 = vmatmul.mubr.bf16.gmra.mrb[0].mxu0 %v817
        %v895 = vpop.f32.mrb[0].mxu0
        %v896 = vadd.f32 %v529, %v895
        %v897 = vpop.f32.mrb[0].mxu0
        %v898 = vadd.f32 %v533, %v897
        %v899 = vpop.f32.mrb[0].mxu0
        %v900 = vadd.f32 %v529, %v899
        %v901 = vpop.f32.mrb[0].mxu0
        %v902 = vadd.f32 %v533, %v901
        %903 = vmatprep.mubr.bf16.mxu0 0
        %904 = vmatmul.mubr.bf16.gmra.mrb[0].mxu0 %v820
        %v905 = vpop.f32.mrb[0].mxu0
        %v906 = vadd.f32 %v529, %v905
        %v907 = vpop.f32.mrb[0].mxu0
        %v908 = vadd.f32 %v533, %v907
        %v909 = vpop.f32.mrb[0].mxu0
        %v910 = vadd.f32 %v529, %v909
        %v911 = vpop.f32.mrb[0].mxu0
        %v912 = vadd.f32 %v533, %v911
        %913 = vmatprep.mubr.bf16.mxu0 0
        %914 = vmatmul.mubr.bf16.gmra.mrb[0].mxu0 %v823
        %v915 = vpop.f32.mrb[0].mxu0
        %v916 = vadd.f32 %v529, %v915
        %v917 = vpop.f32.mrb[0].mxu0
        %v918 = vadd.f32 %v533, %v917
        %v919 = vpop.f32.mrb[0].mxu0
        %v920 = vadd.f32 %v529, %v919
        %v921 = vpop.f32.mrb[0].mxu0
        %v922 = vadd.f32 %v533, %v921
        %923 = vmatprep.mubr.bf16.mxu0 0
        %924 = vmatmul.mubr.bf16.gmra.mrb[0].mxu0 %v826
        %v925 = vpop.f32.mrb[0].mxu0
        %v926 = vadd.f32 %v529, %v925
        %v927 = vpop.f32.mrb[0].mxu0
        %v928 = vadd.f32 %v533, %v927
        %v929 = vpop.f32.mrb[0].mxu0
        %v930 = vadd.f32 %v529, %v929
        %v931 = vpop.f32.mrb[0].mxu0
        %v932 = vadd.f32 %v533, %v931
        %933 = vmatprep.mubr.bf16.mxu0 0
        %934 = vmatmul.mubr.bf16.gmra.mrb[0].mxu0 %v829
        %v935 = vpop.f32.mrb[0].mxu0
        %v936 = vadd.f32 %v529, %v935
        %v937 = vpop.f32.mrb[0].mxu0
        %v938 = vadd.f32 %v533, %v937
        %v939 = vpop.f32.mrb[0].mxu0
        %v940 = vadd.f32 %v529, %v939
        %v941 = vpop.f32.mrb[0].mxu0
        %v942 = vadd.f32 %v533, %v941
        %943 = vdwg.mxu0
        %944 = vmatprep.subr.bf16.mxu0 %v745
        %945 = vmatpush1.bf16.msra.mxu0 %v744
        %946 = vmatprep.subr.bf16.mxu0 %v761
        %947 = vmatpush1.bf16.msra.mxu0 %v760
        %948 = vmatprep.subr.bf16.mxu0 0
        %949 = vmatpush1.bf16.msra.mxu0 0
        %950 = vmatprep.subr.bf16.mxu0 0
        %951 = vmatpush1.bf16.msra.mxu0 0
        %952 = vmatprep.subr.bf16.mxu0 0
        %953 = vmatpush1.bf16.msra.mxu0 0
        %954 = vmatprep.subr.bf16.mxu0 0
        %955 = vmatpush1.bf16.msra.mxu0 0
        %956 = vmatprep.subr.bf16.mxu0 0
        %957 = vmatpush1.bf16.msra.mxu0 0
        %958 = vmatprep.subr.bf16.mxu0 0
        %959 = vmatpush1.bf16.msra.mxu0 0
        %960 = vmatprep.subr.bf16.mxu0 0
        %961 = vmatpush1.bf16.msra.mxu0 0
        %962 = vmatprep.subr.bf16.mxu0 0
        %963 = vmatpush1.bf16.msra.mxu0 0
        %964 = vmatprep.subr.bf16.mxu0 0
        %965 = vmatpush1.bf16.msra.mxu0 0
        %966 = vmatprep.subr.bf16.mxu0 0
        %967 = vmatpush1.bf16.msra.mxu0 0
        %968 = vmatprep.subr.bf16.mxu0 0
        %969 = vmatpush1.bf16.msra.mxu0 0
        %970 = vmatprep.subr.bf16.mxu0 0
        %971 = vmatpush1.bf16.msra.mxu0 0
        %972 = vmatprep.subr.bf16.mxu0 0
        %973 = vmatpush1.bf16.msra.mxu0 0
        %974 = vmatprep.subr.bf16.mxu0 0
        %975 = vmatpush1.bf16.msra.mxu0 0
        %976 = vmatprep.mubr.bf16.mxu0 0
        %977 = vmatmul.mubr.bf16.gmra.mrb[0].mxu0 %v808
        %v978 = vpop.f32.mrb[0].mxu0
        %v979 = vadd.f32 %v537, %v978
        %v980 = vpop.f32.mrb[0].mxu0
        %v981 = vadd.f32 %v541, %v980
        %v982 = vpop.f32.mrb[0].mxu0
        %v983 = vadd.f32 %v537, %v982
        %v984 = vpop.f32.mrb[0].mxu0
        %v985 = vadd.f32 %v541, %v984
        %986 = vmatprep.mubr.bf16.mxu0 0
        %987 = vmatmul.mubr.bf16.gmra.mrb[0].mxu0 %v811
        %v988 = vpop.f32.mrb[0].mxu0
        %v989 = vadd.f32 %v537, %v988
        %v990 = vpop.f32.mrb[0].mxu0
        %v991 = vadd.f32 %v541, %v990
        %v992 = vpop.f32.mrb[0].mxu0
        %v993 = vadd.f32 %v537, %v992
        %v994 = vpop.f32.mrb[0].mxu0
        %v995 = vadd.f32 %v541, %v994
        %996 = vmatprep.mubr.bf16.mxu0 0
        %997 = vmatmul.mubr.bf16.gmra.mrb[0].mxu0 %v814
        %v998 = vpop.f32.mrb[0].mxu0
        %v999 = vadd.f32 %v537, %v998
        %v1000 = vpop.f32.mrb[0].mxu0
        %v1001 = vadd.f32 %v541, %v1000
        %v1002 = vpop.f32.mrb[0].mxu0
        %v1003 = vadd.f32 %v537, %v1002
        %v1004 = vpop.f32.mrb[0].mxu0
        %v1005 = vadd.f32 %v541, %v1004
        %1006 = vmatprep.mubr.bf16.mxu0 0
        %1007 = vmatmul.mubr.bf16.gmra.mrb[0].mxu0 %v817
        %v1008 = vpop.f32.mrb[0].mxu0
        %v1009 = vadd.f32 %v537, %v1008
        %v1010 = vpop.f32.mrb[0].mxu0
        %v1011 = vadd.f32 %v541, %v1010
        %v1012 = vpop.f32.mrb[0].mxu0
        %v1013 = vadd.f32 %v537, %v1012
        %v1014 = vpop.f32.mrb[0].mxu0
        %v1015 = vadd.f32 %v541, %v1014
        %1016 = vmatprep.mubr.bf16.mxu0 0
        %1017 = vmatmul.mubr.bf16.gmra.mrb[0].mxu0 %v820
        %v1018 = vpop.f32.mrb[0].mxu0
        %v1019 = vadd.f32 %v537, %v1018
        %v1020 = vpop.f32.mrb[0].mxu0
        %v1021 = vadd.f32 %v541, %v1020
        %v1022 = vpop.f32.mrb[0].mxu0
        %v1023 = vadd.f32 %v537, %v1022
        %v1024 = vpop.f32.mrb[0].mxu0
        %v1025 = vadd.f32 %v541, %v1024
        %1026 = vmatprep.mubr.bf16.mxu0 0
        %1027 = vmatmul.mubr.bf16.gmra.mrb[0].mxu0 %v823
        %v1028 = vpop.f32.mrb[0].mxu0
        %v1029 = vadd.f32 %v537, %v1028
        %v1030 = vpop.f32.mrb[0].mxu0
        %v1031 = vadd.f32 %v541, %v1030
        %v1032 = vpop.f32.mrb[0].mxu0
        %v1033 = vadd.f32 %v537, %v1032
        %v1034 = vpop.f32.mrb[0].mxu0
        %v1035 = vadd.f32 %v541, %v1034
        %1036 = vmatprep.mubr.bf16.mxu0 0
        %1037 = vmatmul.mubr.bf16.gmra.mrb[0].mxu0 %v826
        %v1038 = vpop.f32.mrb[0].mxu0
        %v1039 = vadd.f32 %v537, %v1038
        %v1040 = vpop.f32.mrb[0].mxu0
        %v1041 = vadd.f32 %v541, %v1040
        %v1042 = vpop.f32.mrb[0].mxu0
        %v1043 = vadd.f32 %v537, %v1042
        %v1044 = vpop.f32.mrb[0].mxu0
        %v1045 = vadd.f32 %v541, %v1044
        %1046 = vmatprep.mubr.bf16.mxu0 0
        %1047 = vmatmul.mubr.bf16.gmra.mrb[0].mxu0 %v829
        %v1048 = vpop.f32.mrb[0].mxu0
        %v1049 = vadd.f32 %v537, %v1048
        %v1050 = vpop.f32.mrb[0].mxu0
        %v1051 = vadd.f32 %v541, %v1050
        %v1052 = vpop.f32.mrb[0].mxu0
        %v1053 = vadd.f32 %v537, %v1052
        %v1054 = vpop.f32.mrb[0].mxu0
        %v1055 = vadd.f32 %v541, %v1054
        %1056 = vdwg.mxu0
        %1057 = vmatprep.subr.bf16.mxu0 %v747
        %1058 = vmatpush1.bf16.msra.mxu0 %v746
        %1059 = vmatprep.subr.bf16.mxu0 %v763
        %1060 = vmatpush1.bf16.msra.mxu0 %v762
        %1061 = vmatprep.subr.bf16.mxu0 0
        %1062 = vmatpush1.bf16.msra.mxu0 0
        %1063 = vmatprep.subr.bf16.mxu0 0
        %1064 = vmatpush1.bf16.msra.mxu0 0
        %1065 = vmatprep.subr.bf16.mxu0 0
        %1066 = vmatpush1.bf16.msra.mxu0 0
        %1067 = vmatprep.subr.bf16.mxu0 0
        %1068 = vmatpush1.bf16.msra.mxu0 0
        %1069 = vmatprep.subr.bf16.mxu0 0
        %1070 = vmatpush1.bf16.msra.mxu0 0
        %1071 = vmatprep.subr.bf16.mxu0 0
        %1072 = vmatpush1.bf16.msra.mxu0 0
        %1073 = vmatprep.subr.bf16.mxu0 0
        %1074 = vmatpush1.bf16.msra.mxu0 0
        %1075 = vmatprep.subr.bf16.mxu0 0
        %1076 = vmatpush1.bf16.msra.mxu0 0
        %1077 = vmatprep.subr.bf16.mxu0 0
        %1078 = vmatpush1.bf16.msra.mxu0 0
        %1079 = vmatprep.subr.bf16.mxu0 0
        %1080 = vmatpush1.bf16.msra.mxu0 0
        %1081 = vmatprep.subr.bf16.mxu0 0
        %1082 = vmatpush1.bf16.msra.mxu0 0
        %1083 = vmatprep.subr.bf16.mxu0 0
        %1084 = vmatpush1.bf16.msra.mxu0 0
        %1085 = vmatprep.subr.bf16.mxu0 0
        %1086 = vmatpush1.bf16.msra.mxu0 0
        %1087 = vmatprep.subr.bf16.mxu0 0
        %1088 = vmatpush1.bf16.msra.mxu0 0
        %1089 = vmatprep.mubr.bf16.mxu0 0
        %1090 = vmatmul.mubr.bf16.gmra.mrb[0].mxu0 %v808
        %v1091 = vpop.f32.mrb[0].mxu0
        %v1092 = vadd.f32 %v545, %v1091
        %v1093 = vpop.f32.mrb[0].mxu0
        %v1094 = vadd.f32 %v549, %v1093
        %v1095 = vpop.f32.mrb[0].mxu0
        %v1096 = vadd.f32 %v545, %v1095
        %v1097 = vpop.f32.mrb[0].mxu0
        %v1098 = vadd.f32 %v549, %v1097
        %1099 = vmatprep.mubr.bf16.mxu0 0
        %1100 = vmatmul.mubr.bf16.gmra.mrb[0].mxu0 %v811
        %v1101 = vpop.f32.mrb[0].mxu0
        %v1102 = vadd.f32 %v545, %v1101
        %v1103 = vpop.f32.mrb[0].mxu0
        %v1104 = vadd.f32 %v549, %v1103
        %v1105 = vpop.f32.mrb[0].mxu0
        %v1106 = vadd.f32 %v545, %v1105
        %v1107 = vpop.f32.mrb[0].mxu0
        %v1108 = vadd.f32 %v549, %v1107
        %1109 = vmatprep.mubr.bf16.mxu0 0
        %1110 = vmatmul.mubr.bf16.gmra.mrb[0].mxu0 %v814
        %v1111 = vpop.f32.mrb[0].mxu0
        %v1112 = vadd.f32 %v545, %v1111
        %v1113 = vpop.f32.mrb[0].mxu0
        %v1114 = vadd.f32 %v549, %v1113
        %v1115 = vpop.f32.mrb[0].mxu0
        %v1116 = vadd.f32 %v545, %v1115
        %v1117 = vpop.f32.mrb[0].mxu0
        %v1118 = vadd.f32 %v549, %v1117
        %1119 = vmatprep.mubr.bf16.mxu0 0
        %1120 = vmatmul.mubr.bf16.gmra.mrb[0].mxu0 %v817
        %v1121 = vpop.f32.mrb[0].mxu0
        %v1122 = vadd.f32 %v545, %v1121
        %v1123 = vpop.f32.mrb[0].mxu0
        %v1124 = vadd.f32 %v549, %v1123
        %v1125 = vpop.f32.mrb[0].mxu0
        %v1126 = vadd.f32 %v545, %v1125
        %v1127 = vpop.f32.mrb[0].mxu0
        %v1128 = vadd.f32 %v549, %v1127
        %1129 = vmatprep.mubr.bf16.mxu0 0
        %1130 = vmatmul.mubr.bf16.gmra.mrb[0].mxu0 %v820
        %v1131 = vpop.f32.mrb[0].mxu0
        %v1132 = vadd.f32 %v545, %v1131
        %v1133 = vpop.f32.mrb[0].mxu0
        %v1134 = vadd.f32 %v549, %v1133
        %v1135 = vpop.f32.mrb[0].mxu0
        %v1136 = vadd.f32 %v545, %v1135
        %v1137 = vpop.f32.mrb[0].mxu0
        %v1138 = vadd.f32 %v549, %v1137
        %1139 = vmatprep.mubr.bf16.mxu0 0
        %1140 = vmatmul.mubr.bf16.gmra.mrb[0].mxu0 %v823
        %v1141 = vpop.f32.mrb[0].mxu0
        %v1142 = vadd.f32 %v545, %v1141
        %v1143 = vpop.f32.mrb[0].mxu0
        %v1144 = vadd.f32 %v549, %v1143
        %v1145 = vpop.f32.mrb[0].mxu0
        %v1146 = vadd.f32 %v545, %v1145
        %v1147 = vpop.f32.mrb[0].mxu0
        %v1148 = vadd.f32 %v549, %v1147
        %1149 = vmatprep.mubr.bf16.mxu0 0
        %1150 = vmatmul.mubr.bf16.gmra.mrb[0].mxu0 %v826
        %v1151 = vpop.f32.mrb[0].mxu0
        %v1152 = vadd.f32 %v545, %v1151
        %v1153 = vpop.f32.mrb[0].mxu0
        %v1154 = vadd.f32 %v549, %v1153
        %v1155 = vpop.f32.mrb[0].mxu0
        %v1156 = vadd.f32 %v545, %v1155
        %v1157 = vpop.f32.mrb[0].mxu0
        %v1158 = vadd.f32 %v549, %v1157
        %1159 = vmatprep.mubr.bf16.mxu0 0
        %1160 = vmatmul.mubr.bf16.gmra.mrb[0].mxu0 %v829
        %v1161 = vpop.f32.mrb[0].mxu0
        %v1162 = vadd.f32 %v545, %v1161
        %v1163 = vpop.f32.mrb[0].mxu0
        %v1164 = vadd.f32 %v549, %v1163
        %v1165 = vpop.f32.mrb[0].mxu0
        %v1166 = vadd.f32 %v545, %v1165
        %v1167 = vpop.f32.mrb[0].mxu0
        %v1168 = vadd.f32 %v549, %v1167
        %1169 = vdwg.mxu0
        %1170 = vmatprep.subr.bf16.mxu0 %v749
        %1171 = vmatpush1.bf16.msra.mxu0 %v748
        %1172 = vmatprep.subr.bf16.mxu0 %v765
        %1173 = vmatpush1.bf16.msra.mxu0 %v764
        %1174 = vmatprep.subr.bf16.mxu0 0
        %1175 = vmatpush1.bf16.msra.mxu0 0
        %1176 = vmatprep.subr.bf16.mxu0 0
        %1177 = vmatpush1.bf16.msra.mxu0 0
        %1178 = vmatprep.subr.bf16.mxu0 0
        %1179 = vmatpush1.bf16.msra.mxu0 0
        %1180 = vmatprep.subr.bf16.mxu0 0
        %1181 = vmatpush1.bf16.msra.mxu0 0
        %1182 = vmatprep.subr.bf16.mxu0 0
        %1183 = vmatpush1.bf16.msra.mxu0 0
        %1184 = vmatprep.subr.bf16.mxu0 0
        %1185 = vmatpush1.bf16.msra.mxu0 0
        %1186 = vmatprep.subr.bf16.mxu0 0
        %1187 = vmatpush1.bf16.msra.mxu0 0
        %1188 = vmatprep.subr.bf16.mxu0 0
        %1189 = vmatpush1.bf16.msra.mxu0 0
        %1190 = vmatprep.subr.bf16.mxu0 0
        %1191 = vmatpush1.bf16.msra.mxu0 0
        %1192 = vmatprep.subr.bf16.mxu0 0
        %1193 = vmatpush1.bf16.msra.mxu0 0
        %1194 = vmatprep.subr.bf16.mxu0 0
        %1195 = vmatpush1.bf16.msra.mxu0 0
        %1196 = vmatprep.subr.bf16.mxu0 0
        %1197 = vmatpush1.bf16.msra.mxu0 0
        %1198 = vmatprep.subr.bf16.mxu0 0
        %1199 = vmatpush1.bf16.msra.mxu0 0
        %1200 = vmatprep.subr.bf16.mxu0 0
        %1201 = vmatpush1.bf16.msra.mxu0 0
        %1202 = vmatprep.mubr.bf16.mxu0 0
        %1203 = vmatmul.mubr.bf16.gmra.mrb[0].mxu0 %v808
        %v1204 = vpop.f32.mrb[0].mxu0
        %v1205 = vadd.f32 %v553, %v1204
        %v1206 = vpop.f32.mrb[0].mxu0
        %v1207 = vadd.f32 %v557, %v1206
        %v1208 = vpop.f32.mrb[0].mxu0
        %v1209 = vadd.f32 %v553, %v1208
        %v1210 = vpop.f32.mrb[0].mxu0
        %v1211 = vadd.f32 %v557, %v1210
        %1212 = vmatprep.mubr.bf16.mxu0 0
        %1213 = vmatmul.mubr.bf16.gmra.mrb[0].mxu0 %v811
        %v1214 = vpop.f32.mrb[0].mxu0
        %v1215 = vadd.f32 %v553, %v1214
        %v1216 = vpop.f32.mrb[0].mxu0
        %v1217 = vadd.f32 %v557, %v1216
        %v1218 = vpop.f32.mrb[0].mxu0
        %v1219 = vadd.f32 %v553, %v1218
        %v1220 = vpop.f32.mrb[0].mxu0
        %v1221 = vadd.f32 %v557, %v1220
        %1222 = vmatprep.mubr.bf16.mxu0 0
        %1223 = vmatmul.mubr.bf16.gmra.mrb[0].mxu0 %v814
        %v1224 = vpop.f32.mrb[0].mxu0
        %v1225 = vadd.f32 %v553, %v1224
        %v1226 = vpop.f32.mrb[0].mxu0
        %v1227 = vadd.f32 %v557, %v1226
        %v1228 = vpop.f32.mrb[0].mxu0
        %v1229 = vadd.f32 %v553, %v1228
        %v1230 = vpop.f32.mrb[0].mxu0
        %v1231 = vadd.f32 %v557, %v1230
        %1232 = vmatprep.mubr.bf16.mxu0 0
        %1233 = vmatmul.mubr.bf16.gmra.mrb[0].mxu0 %v817
        %v1234 = vpop.f32.mrb[0].mxu0
        %v1235 = vadd.f32 %v553, %v1234
        %v1236 = vpop.f32.mrb[0].mxu0
        %v1237 = vadd.f32 %v557, %v1236
        %v1238 = vpop.f32.mrb[0].mxu0
        %v1239 = vadd.f32 %v553, %v1238
        %v1240 = vpop.f32.mrb[0].mxu0
        %v1241 = vadd.f32 %v557, %v1240
        %1242 = vmatprep.mubr.bf16.mxu0 0
        %1243 = vmatmul.mubr.bf16.gmra.mrb[0].mxu0 %v820
        %v1244 = vpop.f32.mrb[0].mxu0
        %v1245 = vadd.f32 %v553, %v1244
        %v1246 = vpop.f32.mrb[0].mxu0
        %v1247 = vadd.f32 %v557, %v1246
        %v1248 = vpop.f32.mrb[0].mxu0
        %v1249 = vadd.f32 %v553, %v1248
        %v1250 = vpop.f32.mrb[0].mxu0
        %v1251 = vadd.f32 %v557, %v1250
        %1252 = vmatprep.mubr.bf16.mxu0 0
        %1253 = vmatmul.mubr.bf16.gmra.mrb[0].mxu0 %v823
        %v1254 = vpop.f32.mrb[0].mxu0
        %v1255 = vadd.f32 %v553, %v1254
        %v1256 = vpop.f32.mrb[0].mxu0
        %v1257 = vadd.f32 %v557, %v1256
        %v1258 = vpop.f32.mrb[0].mxu0
        %v1259 = vadd.f32 %v553, %v1258
        %v1260 = vpop.f32.mrb[0].mxu0
        %v1261 = vadd.f32 %v557, %v1260
        %1262 = vmatprep.mubr.bf16.mxu0 0
        %1263 = vmatmul.mubr.bf16.gmra.mrb[0].mxu0 %v826
        %v1264 = vpop.f32.mrb[0].mxu0
        %v1265 = vadd.f32 %v553, %v1264
        %v1266 = vpop.f32.mrb[0].mxu0
        %v1267 = vadd.f32 %v557, %v1266
        %v1268 = vpop.f32.mrb[0].mxu0
        %v1269 = vadd.f32 %v553, %v1268
        %v1270 = vpop.f32.mrb[0].mxu0
        %v1271 = vadd.f32 %v557, %v1270
        %1272 = vmatprep.mubr.bf16.mxu0 0
        %1273 = vmatmul.mubr.bf16.gmra.mrb[0].mxu0 %v829
        %v1274 = vpop.f32.mrb[0].mxu0
        %v1275 = vadd.f32 %v553, %v1274
        %v1276 = vpop.f32.mrb[0].mxu0
        %v1277 = vadd.f32 %v557, %v1276
        %v1278 = vpop.f32.mrb[0].mxu0
        %v1279 = vadd.f32 %v553, %v1278
        %v1280 = vpop.f32.mrb[0].mxu0
        %v1281 = vadd.f32 %v557, %v1280
        %1282 = vdwg.mxu0
        %1283 = vmatprep.subr.bf16.mxu0 %v751
        %1284 = vmatpush1.bf16.msra.mxu0 %v750
        %1285 = vmatprep.subr.bf16.mxu0 %v767
        %1286 = vmatpush1.bf16.msra.mxu0 %v766
        %1287 = vmatprep.subr.bf16.mxu0 0
        %1288 = vmatpush1.bf16.msra.mxu0 0
        %1289 = vmatprep.subr.bf16.mxu0 0
        %1290 = vmatpush1.bf16.msra.mxu0 0
        %1291 = vmatprep.subr.bf16.mxu0 0
        %1292 = vmatpush1.bf16.msra.mxu0 0
        %1293 = vmatprep.subr.bf16.mxu0 0
        %1294 = vmatpush1.bf16.msra.mxu0 0
        %1295 = vmatprep.subr.bf16.mxu0 0
        %1296 = vmatpush1.bf16.msra.mxu0 0
        %1297 = vmatprep.subr.bf16.mxu0 0
        %1298 = vmatpush1.bf16.msra.mxu0 0
        %1299 = vmatprep.subr.bf16.mxu0 0
        %1300 = vmatpush1.bf16.msra.mxu0 0
        %1301 = vmatprep.subr.bf16.mxu0 0
        %1302 = vmatpush1.bf16.msra.mxu0 0
        %1303 = vmatprep.subr.bf16.mxu0 0
        %1304 = vmatpush1.bf16.msra.mxu0 0
        %1305 = vmatprep.subr.bf16.mxu0 0
        %1306 = vmatpush1.bf16.msra.mxu0 0
        %1307 = vmatprep.subr.bf16.mxu0 0
        %1308 = vmatpush1.bf16.msra.mxu0 0
        %1309 = vmatprep.subr.bf16.mxu0 0
        %1310 = vmatpush1.bf16.msra.mxu0 0
        %1311 = vmatprep.subr.bf16.mxu0 0
        %1312 = vmatpush1.bf16.msra.mxu0 0
        %1313 = vmatprep.subr.bf16.mxu0 0
        %1314 = vmatpush1.bf16.msra.mxu0 0
        %1315 = vmatprep.mubr.bf16.mxu0 0
        %1316 = vmatmul.mubr.bf16.gmra.mrb[0].mxu0 %v808
        %v1317 = vpop.f32.mrb[0].mxu0
        %v1318 = vadd.f32 %v561, %v1317
        %v1319 = vpop.f32.mrb[0].mxu0
        %v1320 = vadd.f32 %v565, %v1319
        %v1321 = vpop.f32.mrb[0].mxu0
        %v1322 = vadd.f32 %v561, %v1321
        %v1323 = vpop.f32.mrb[0].mxu0
        %v1324 = vadd.f32 %v565, %v1323
        %1325 = vmatprep.mubr.bf16.mxu0 0
        %1326 = vmatmul.mubr.bf16.gmra.mrb[0].mxu0 %v811
        %v1327 = vpop.f32.mrb[0].mxu0
        %v1328 = vadd.f32 %v561, %v1327
        %v1329 = vpop.f32.mrb[0].mxu0
        %v1330 = vadd.f32 %v565, %v1329
        %v1331 = vpop.f32.mrb[0].mxu0
        %v1332 = vadd.f32 %v561, %v1331
        %v1333 = vpop.f32.mrb[0].mxu0
        %v1334 = vadd.f32 %v565, %v1333
        %1335 = vmatprep.mubr.bf16.mxu0 0
        %1336 = vmatmul.mubr.bf16.gmra.mrb[0].mxu0 %v814
        %v1337 = vpop.f32.mrb[0].mxu0
        %v1338 = vadd.f32 %v561, %v1337
        %v1339 = vpop.f32.mrb[0].mxu0
        %v1340 = vadd.f32 %v565, %v1339
        %v1341 = vpop.f32.mrb[0].mxu0
        %v1342 = vadd.f32 %v561, %v1341
        %v1343 = vpop.f32.mrb[0].mxu0
        %v1344 = vadd.f32 %v565, %v1343
        %1345 = vmatprep.mubr.bf16.mxu0 0
        %1346 = vmatmul.mubr.bf16.gmra.mrb[0].mxu0 %v817
        %v1347 = vpop.f32.mrb[0].mxu0
        %v1348 = vadd.f32 %v561, %v1347
        %v1349 = vpop.f32.mrb[0].mxu0
        %v1350 = vadd.f32 %v565, %v1349
        %v1351 = vpop.f32.mrb[0].mxu0
        %v1352 = vadd.f32 %v561, %v1351
        %v1353 = vpop.f32.mrb[0].mxu0
        %v1354 = vadd.f32 %v565, %v1353
        %1355 = vmatprep.mubr.bf16.mxu0 0
        %1356 = vmatmul.mubr.bf16.gmra.mrb[0].mxu0 %v820
        %v1357 = vpop.f32.mrb[0].mxu0
        %v1358 = vadd.f32 %v561, %v1357
        %v1359 = vpop.f32.mrb[0].mxu0
        %v1360 = vadd.f32 %v565, %v1359
        %v1361 = vpop.f32.mrb[0].mxu0
        %v1362 = vadd.f32 %v561, %v1361
        %v1363 = vpop.f32.mrb[0].mxu0
        %v1364 = vadd.f32 %v565, %v1363
        %1365 = vmatprep.mubr.bf16.mxu0 0
        %1366 = vmatmul.mubr.bf16.gmra.mrb[0].mxu0 %v823
        %v1367 = vpop.f32.mrb[0].mxu0
        %v1368 = vadd.f32 %v561, %v1367
        %v1369 = vpop.f32.mrb[0].mxu0
        %v1370 = vadd.f32 %v565, %v1369
        %v1371 = vpop.f32.mrb[0].mxu0
        %v1372 = vadd.f32 %v561, %v1371
        %v1373 = vpop.f32.mrb[0].mxu0
        %v1374 = vadd.f32 %v565, %v1373
        %1375 = vmatprep.mubr.bf16.mxu0 0
        %1376 = vmatmul.mubr.bf16.gmra.mrb[0].mxu0 %v826
        %v1377 = vpop.f32.mrb[0].mxu0
        %v1378 = vadd.f32 %v561, %v1377
        %v1379 = vpop.f32.mrb[0].mxu0
        %v1380 = vadd.f32 %v565, %v1379
        %v1381 = vpop.f32.mrb[0].mxu0
        %v1382 = vadd.f32 %v561, %v1381
        %v1383 = vpop.f32.mrb[0].mxu0
        %v1384 = vadd.f32 %v565, %v1383
        %1385 = vmatprep.mubr.bf16.mxu0 0
        %1386 = vmatmul.mubr.bf16.gmra.mrb[0].mxu0 %v829
        %v1387 = vpop.f32.mrb[0].mxu0
        %v1388 = vadd.f32 %v561, %v1387
        %v1389 = vpop.f32.mrb[0].mxu0
        %v1390 = vadd.f32 %v565, %v1389
        %v1391 = vpop.f32.mrb[0].mxu0
        %v1392 = vadd.f32 %v561, %v1391
        %v1393 = vpop.f32.mrb[0].mxu0
        %v1394 = vadd.f32 %v565, %v1393
        %1395 = vdwg.mxu0
        %1396 = vmatprep.subr.bf16.mxu0 %v753
        %1397 = vmatpush1.bf16.msra.mxu0 %v752
        %1398 = vmatprep.subr.bf16.mxu0 %v769
        %1399 = vmatpush1.bf16.msra.mxu0 %v768
        %1400 = vmatprep.subr.bf16.mxu0 0
        %1401 = vmatpush1.bf16.msra.mxu0 0
        %1402 = vmatprep.subr.bf16.mxu0 0
        %1403 = vmatpush1.bf16.msra.mxu0 0
        %1404 = vmatprep.subr.bf16.mxu0 0
        %1405 = vmatpush1.bf16.msra.mxu0 0
        %1406 = vmatprep.subr.bf16.mxu0 0
        %1407 = vmatpush1.bf16.msra.mxu0 0
        %1408 = vmatprep.subr.bf16.mxu0 0
        %1409 = vmatpush1.bf16.msra.mxu0 0
        %1410 = vmatprep.subr.bf16.mxu0 0
        %1411 = vmatpush1.bf16.msra.mxu0 0
        %1412 = vmatprep.subr.bf16.mxu0 0
        %1413 = vmatpush1.bf16.msra.mxu0 0
        %1414 = vmatprep.subr.bf16.mxu0 0
        %1415 = vmatpush1.bf16.msra.mxu0 0
        %1416 = vmatprep.subr.bf16.mxu0 0
        %1417 = vmatpush1.bf16.msra.mxu0 0
        %1418 = vmatprep.subr.bf16.mxu0 0
        %1419 = vmatpush1.bf16.msra.mxu0 0
        %1420 = vmatprep.subr.bf16.mxu0 0
        %1421 = vmatpush1.bf16.msra.mxu0 0
        %1422 = vmatprep.subr.bf16.mxu0 0
        %1423 = vmatpush1.bf16.msra.mxu0 0
        %1424 = vmatprep.subr.bf16.mxu0 0
        %1425 = vmatpush1.bf16.msra.mxu0 0
        %1426 = vmatprep.subr.bf16.mxu0 0
        %1427 = vmatpush1.bf16.msra.mxu0 0
        %1428 = vmatprep.mubr.bf16.mxu0 0
        %1429 = vmatmul.mubr.bf16.gmra.mrb[0].mxu0 %v808
        %v1430 = vpop.f32.mrb[0].mxu0
        %v1431 = vadd.f32 %v569, %v1430
        %v1432 = vpop.f32.mrb[0].mxu0
        %v1433 = vadd.f32 %v573, %v1432
        %v1434 = vpop.f32.mrb[0].mxu0
        %v1435 = vadd.f32 %v569, %v1434
        %v1436 = vpop.f32.mrb[0].mxu0
        %v1437 = vadd.f32 %v573, %v1436
        %1438 = vmatprep.mubr.bf16.mxu0 0
        %1439 = vmatmul.mubr.bf16.gmra.mrb[0].mxu0 %v811
        %v1440 = vpop.f32.mrb[0].mxu0
        %v1441 = vadd.f32 %v569, %v1440
        %v1442 = vpop.f32.mrb[0].mxu0
        %v1443 = vadd.f32 %v573, %v1442
        %v1444 = vpop.f32.mrb[0].mxu0
        %v1445 = vadd.f32 %v569, %v1444
        %v1446 = vpop.f32.mrb[0].mxu0
        %v1447 = vadd.f32 %v573, %v1446
        %1448 = vmatprep.mubr.bf16.mxu0 0
        %1449 = vmatmul.mubr.bf16.gmra.mrb[0].mxu0 %v814
        %v1450 = vpop.f32.mrb[0].mxu0
        %v1451 = vadd.f32 %v569, %v1450
        %v1452 = vpop.f32.mrb[0].mxu0
        %v1453 = vadd.f32 %v573, %v1452
        %v1454 = vpop.f32.mrb[0].mxu0
        %v1455 = vadd.f32 %v569, %v1454
        %v1456 = vpop.f32.mrb[0].mxu0
        %v1457 = vadd.f32 %v573, %v1456
        %1458 = vmatprep.mubr.bf16.mxu0 0
        %1459 = vmatmul.mubr.bf16.gmra.mrb[0].mxu0 %v817
        %v1460 = vpop.f32.mrb[0].mxu0
        %v1461 = vadd.f32 %v569, %v1460
        %v1462 = vpop.f32.mrb[0].mxu0
        %v1463 = vadd.f32 %v573, %v1462
        %v1464 = vpop.f32.mrb[0].mxu0
        %v1465 = vadd.f32 %v569, %v1464
        %v1466 = vpop.f32.mrb[0].mxu0
        %v1467 = vadd.f32 %v573, %v1466
        %1468 = vmatprep.mubr.bf16.mxu0 0
        %1469 = vmatmul.mubr.bf16.gmra.mrb[0].mxu0 %v820
        %v1470 = vpop.f32.mrb[0].mxu0
        %v1471 = vadd.f32 %v569, %v1470
        %v1472 = vpop.f32.mrb[0].mxu0
        %v1473 = vadd.f32 %v573, %v1472
        %v1474 = vpop.f32.mrb[0].mxu0
        %v1475 = vadd.f32 %v569, %v1474
        %v1476 = vpop.f32.mrb[0].mxu0
        %v1477 = vadd.f32 %v573, %v1476
        %1478 = vmatprep.mubr.bf16.mxu0 0
        %1479 = vmatmul.mubr.bf16.gmra.mrb[0].mxu0 %v823
        %v1480 = vpop.f32.mrb[0].mxu0
        %v1481 = vadd.f32 %v569, %v1480
        %v1482 = vpop.f32.mrb[0].mxu0
        %v1483 = vadd.f32 %v573, %v1482
        %v1484 = vpop.f32.mrb[0].mxu0
        %v1485 = vadd.f32 %v569, %v1484
        %v1486 = vpop.f32.mrb[0].mxu0
        %v1487 = vadd.f32 %v573, %v1486
        %1488 = vmatprep.mubr.bf16.mxu0 0
        %1489 = vmatmul.mubr.bf16.gmra.mrb[0].mxu0 %v826
        %v1490 = vpop.f32.mrb[0].mxu0
        %v1491 = vadd.f32 %v569, %v1490
        %v1492 = vpop.f32.mrb[0].mxu0
        %v1493 = vadd.f32 %v573, %v1492
        %v1494 = vpop.f32.mrb[0].mxu0
        %v1495 = vadd.f32 %v569, %v1494
        %v1496 = vpop.f32.mrb[0].mxu0
        %v1497 = vadd.f32 %v573, %v1496
        %1498 = vmatprep.mubr.bf16.mxu0 0
        %1499 = vmatmul.mubr.bf16.gmra.mrb[0].mxu0 %v829
        %v1500 = vpop.f32.mrb[0].mxu0
        %v1501 = vadd.f32 %v569, %v1500
        %v1502 = vpop.f32.mrb[0].mxu0
        %v1503 = vadd.f32 %v573, %v1502
        %v1504 = vpop.f32.mrb[0].mxu0
        %v1505 = vadd.f32 %v569, %v1504
        %v1506 = vpop.f32.mrb[0].mxu0
        %v1507 = vadd.f32 %v573, %v1506
        %1508 = vdwg.mxu0
        %1509 = vmatprep.subr.bf16.mxu0 %v755
        %1510 = vmatpush1.bf16.msra.mxu0 %v754
        %1511 = vmatprep.subr.bf16.mxu0 %v771
        %1512 = vmatpush1.bf16.msra.mxu0 %v770
        %1513 = vmatprep.subr.bf16.mxu0 0
        %1514 = vmatpush1.bf16.msra.mxu0 0
        %1515 = vmatprep.subr.bf16.mxu0 0
        %1516 = vmatpush1.bf16.msra.mxu0 0
        %1517 = vmatprep.subr.bf16.mxu0 0
        %1518 = vmatpush1.bf16.msra.mxu0 0
        %1519 = vmatprep.subr.bf16.mxu0 0
        %1520 = vmatpush1.bf16.msra.mxu0 0
        %1521 = vmatprep.subr.bf16.mxu0 0
        %1522 = vmatpush1.bf16.msra.mxu0 0
        %1523 = vmatprep.subr.bf16.mxu0 0
        %1524 = vmatpush1.bf16.msra.mxu0 0
        %1525 = vmatprep.subr.bf16.mxu0 0
        %1526 = vmatpush1.bf16.msra.mxu0 0
        %1527 = vmatprep.subr.bf16.mxu0 0
        %1528 = vmatpush1.bf16.msra.mxu0 0
        %1529 = vmatprep.subr.bf16.mxu0 0
        %1530 = vmatpush1.bf16.msra.mxu0 0
        %1531 = vmatprep.subr.bf16.mxu0 0
        %1532 = vmatpush1.bf16.msra.mxu0 0
        %1533 = vmatprep.subr.bf16.mxu0 0
        %1534 = vmatpush1.bf16.msra.mxu0 0
        %1535 = vmatprep.subr.bf16.mxu0 0
        %1536 = vmatpush1.bf16.msra.mxu0 0
        %1537 = vmatprep.subr.bf16.mxu0 0
        %1538 = vmatpush1.bf16.msra.mxu0 0
        %1539 = vmatprep.subr.bf16.mxu0 0
        %1540 = vmatpush1.bf16.msra.mxu0 0
        %1541 = vmatprep.mubr.bf16.mxu0 0
        %1542 = vmatmul.mubr.bf16.gmra.mrb[0].mxu0 %v808
        %v1543 = vpop.f32.mrb[0].mxu0
        %v1544 = vadd.f32 %v577, %v1543
        %v1545 = vpop.f32.mrb[0].mxu0
        %v1546 = vadd.f32 %v581, %v1545
        %v1547 = vpop.f32.mrb[0].mxu0
        %v1548 = vadd.f32 %v577, %v1547
        %v1549 = vpop.f32.mrb[0].mxu0
        %v1550 = vadd.f32 %v581, %v1549
        %1551 = vmatprep.mubr.bf16.mxu0 0
        %1552 = vmatmul.mubr.bf16.gmra.mrb[0].mxu0 %v811
        %v1553 = vpop.f32.mrb[0].mxu0
        %v1554 = vadd.f32 %v577, %v1553
        %v1555 = vpop.f32.mrb[0].mxu0
        %v1556 = vadd.f32 %v581, %v1555
        %v1557 = vpop.f32.mrb[0].mxu0
        %v1558 = vadd.f32 %v577, %v1557
        %v1559 = vpop.f32.mrb[0].mxu0
        %v1560 = vadd.f32 %v581, %v1559
        %1561 = vmatprep.mubr.bf16.mxu0 0
        %1562 = vmatmul.mubr.bf16.gmra.mrb[0].mxu0 %v814
        %v1563 = vpop.f32.mrb[0].mxu0
        %v1564 = vadd.f32 %v577, %v1563
        %v1565 = vpop.f32.mrb[0].mxu0
        %v1566 = vadd.f32 %v581, %v1565
        %v1567 = vpop.f32.mrb[0].mxu0
        %v1568 = vadd.f32 %v577, %v1567
        %v1569 = vpop.f32.mrb[0].mxu0
        %v1570 = vadd.f32 %v581, %v1569
        %1571 = vmatprep.mubr.bf16.mxu0 0
        %1572 = vmatmul.mubr.bf16.gmra.mrb[0].mxu0 %v817
        %v1573 = vpop.f32.mrb[0].mxu0
        %v1574 = vadd.f32 %v577, %v1573
        %v1575 = vpop.f32.mrb[0].mxu0
        %v1576 = vadd.f32 %v581, %v1575
        %v1577 = vpop.f32.mrb[0].mxu0
        %v1578 = vadd.f32 %v577, %v1577
        %v1579 = vpop.f32.mrb[0].mxu0
        %v1580 = vadd.f32 %v581, %v1579
        %1581 = vmatprep.mubr.bf16.mxu0 0
        %1582 = vmatmul.mubr.bf16.gmra.mrb[0].mxu0 %v820
        %v1583 = vpop.f32.mrb[0].mxu0
        %v1584 = vadd.f32 %v577, %v1583
        %v1585 = vpop.f32.mrb[0].mxu0
        %v1586 = vadd.f32 %v581, %v1585
        %v1587 = vpop.f32.mrb[0].mxu0
        %v1588 = vadd.f32 %v577, %v1587
        %v1589 = vpop.f32.mrb[0].mxu0
        %v1590 = vadd.f32 %v581, %v1589
        %1591 = vmatprep.mubr.bf16.mxu0 0
        %1592 = vmatmul.mubr.bf16.gmra.mrb[0].mxu0 %v823
        %v1593 = vpop.f32.mrb[0].mxu0
        %v1594 = vadd.f32 %v577, %v1593
        %v1595 = vpop.f32.mrb[0].mxu0
        %v1596 = vadd.f32 %v581, %v1595
        %v1597 = vpop.f32.mrb[0].mxu0
        %v1598 = vadd.f32 %v577, %v1597
        %v1599 = vpop.f32.mrb[0].mxu0
        %v1600 = vadd.f32 %v581, %v1599
        %1601 = vmatprep.mubr.bf16.mxu0 0
        %1602 = vmatmul.mubr.bf16.gmra.mrb[0].mxu0 %v826
        %v1603 = vpop.f32.mrb[0].mxu0
        %v1604 = vadd.f32 %v577, %v1603
        %v1605 = vpop.f32.mrb[0].mxu0
        %v1606 = vadd.f32 %v581, %v1605
        %v1607 = vpop.f32.mrb[0].mxu0
        %v1608 = vadd.f32 %v577, %v1607
        %v1609 = vpop.f32.mrb[0].mxu0
        %v1610 = vadd.f32 %v581, %v1609
        %1611 = vmatprep.mubr.bf16.mxu0 0
        %1612 = vmatmul.mubr.bf16.gmra.mrb[0].mxu0 %v829
        %v1613 = vpop.f32.mrb[0].mxu0
        %v1614 = vadd.f32 %v577, %v1613
        %v1615 = vpop.f32.mrb[0].mxu0
        %v1616 = vadd.f32 %v581, %v1615
        %v1617 = vpop.f32.mrb[0].mxu0
        %v1618 = vadd.f32 %v577, %v1617
        %v1619 = vpop.f32.mrb[0].mxu0
        %v1620 = vadd.f32 %v581, %v1619
        %1621 = vdwg.mxu0
        %1622 = vmatprep.subr.bf16.mxu0 %v757
        %1623 = vmatpush1.bf16.msra.mxu0 %v756
        %1624 = vmatprep.subr.bf16.mxu0 %v773
        %1625 = vmatpush1.bf16.msra.mxu0 %v772
        %1626 = vmatprep.subr.bf16.mxu0 0
        %1627 = vmatpush1.bf16.msra.mxu0 0
        %1628 = vmatprep.subr.bf16.mxu0 0
        %1629 = vmatpush1.bf16.msra.mxu0 0
        %1630 = vmatprep.subr.bf16.mxu0 0
        %1631 = vmatpush1.bf16.msra.mxu0 0
        %1632 = vmatprep.subr.bf16.mxu0 0
        %1633 = vmatpush1.bf16.msra.mxu0 0
        %1634 = vmatprep.subr.bf16.mxu0 0
        %1635 = vmatpush1.bf16.msra.mxu0 0
        %1636 = vmatprep.subr.bf16.mxu0 0
        %1637 = vmatpush1.bf16.msra.mxu0 0
        %1638 = vmatprep.subr.bf16.mxu0 0
        %1639 = vmatpush1.bf16.msra.mxu0 0
        %1640 = vmatprep.subr.bf16.mxu0 0
        %1641 = vmatpush1.bf16.msra.mxu0 0
        %1642 = vmatprep.subr.bf16.mxu0 0
        %1643 = vmatpush1.bf16.msra.mxu0 0
        %1644 = vmatprep.subr.bf16.mxu0 0
        %1645 = vmatpush1.bf16.msra.mxu0 0
        %1646 = vmatprep.subr.bf16.mxu0 0
        %1647 = vmatpush1.bf16.msra.mxu0 0
        %1648 = vmatprep.subr.bf16.mxu0 0
        %1649 = vmatpush1.bf16.msra.mxu0 0
        %1650 = vmatprep.subr.bf16.mxu0 0
        %1651 = vmatpush1.bf16.msra.mxu0 0
        %1652 = vmatprep.subr.bf16.mxu0 0
        %1653 = vmatpush1.bf16.msra.mxu0 0
        %1654 = vmatprep.mubr.bf16.mxu0 0
        %1655 = vmatmul.mubr.bf16.gmra.mrb[0].mxu0 %v808
        %v1656 = vpop.f32.mrb[0].mxu0
        %v1657 = vadd.f32 %v585, %v1656
        %v1658 = vpop.f32.mrb[0].mxu0
        %v1659 = vadd.f32 %v589, %v1658
        %v1660 = vpop.f32.mrb[0].mxu0
        %v1661 = vadd.f32 %v585, %v1660
        %v1662 = vpop.f32.mrb[0].mxu0
        %v1663 = vadd.f32 %v589, %v1662
        %1664 = vmatprep.mubr.bf16.mxu0 0
        %1665 = vmatmul.mubr.bf16.gmra.mrb[0].mxu0 %v811
        %v1666 = vpop.f32.mrb[0].mxu0
        %v1667 = vadd.f32 %v585, %v1666
        %v1668 = vpop.f32.mrb[0].mxu0
        %v1669 = vadd.f32 %v589, %v1668
        %v1670 = vpop.f32.mrb[0].mxu0
        %v1671 = vadd.f32 %v585, %v1670
        %v1672 = vpop.f32.mrb[0].mxu0
        %v1673 = vadd.f32 %v589, %v1672
        %1674 = vmatprep.mubr.bf16.mxu0 0
        %1675 = vmatmul.mubr.bf16.gmra.mrb[0].mxu0 %v814
        %v1676 = vpop.f32.mrb[0].mxu0
        %v1677 = vadd.f32 %v585, %v1676
        %v1678 = vpop.f32.mrb[0].mxu0
        %v1679 = vadd.f32 %v589, %v1678
        %v1680 = vpop.f32.mrb[0].mxu0
        %v1681 = vadd.f32 %v585, %v1680
        %v1682 = vpop.f32.mrb[0].mxu0
        %v1683 = vadd.f32 %v589, %v1682
        %1684 = vmatprep.mubr.bf16.mxu0 0
        %1685 = vmatmul.mubr.bf16.gmra.mrb[0].mxu0 %v817
        %v1686 = vpop.f32.mrb[0].mxu0
        %v1687 = vadd.f32 %v585, %v1686
        %v1688 = vpop.f32.mrb[0].mxu0
        %v1689 = vadd.f32 %v589, %v1688
        %v1690 = vpop.f32.mrb[0].mxu0
        %v1691 = vadd.f32 %v585, %v1690
        %v1692 = vpop.f32.mrb[0].mxu0
        %v1693 = vadd.f32 %v589, %v1692
        %1694 = vmatprep.mubr.bf16.mxu0 0
        %1695 = vmatmul.mubr.bf16.gmra.mrb[0].mxu0 %v820
        %v1696 = vpop.f32.mrb[0].mxu0
        %v1697 = vadd.f32 %v585, %v1696
        %v1698 = vpop.f32.mrb[0].mxu0
        %v1699 = vadd.f32 %v589, %v1698
        %v1700 = vpop.f32.mrb[0].mxu0
        %v1701 = vadd.f32 %v585, %v1700
        %v1702 = vpop.f32.mrb[0].mxu0
        %v1703 = vadd.f32 %v589, %v1702
        %1704 = vmatprep.mubr.bf16.mxu0 0
        %1705 = vmatmul.mubr.bf16.gmra.mrb[0].mxu0 %v823
        %v1706 = vpop.f32.mrb[0].mxu0
        %v1707 = vadd.f32 %v585, %v1706
        %v1708 = vpop.f32.mrb[0].mxu0
        %v1709 = vadd.f32 %v589, %v1708
        %v1710 = vpop.f32.mrb[0].mxu0
        %v1711 = vadd.f32 %v585, %v1710
        %v1712 = vpop.f32.mrb[0].mxu0
        %v1713 = vadd.f32 %v589, %v1712
        %1714 = vmatprep.mubr.bf16.mxu0 0
        %1715 = vmatmul.mubr.bf16.gmra.mrb[0].mxu0 %v826
        %v1716 = vpop.f32.mrb[0].mxu0
        %v1717 = vadd.f32 %v585, %v1716
        %v1718 = vpop.f32.mrb[0].mxu0
        %v1719 = vadd.f32 %v589, %v1718
        %v1720 = vpop.f32.mrb[0].mxu0
        %v1721 = vadd.f32 %v585, %v1720
        %v1722 = vpop.f32.mrb[0].mxu0
        %v1723 = vadd.f32 %v589, %v1722
        %1724 = vmatprep.mubr.bf16.mxu0 0
        %1725 = vmatmul.mubr.bf16.gmra.mrb[0].mxu0 %v829
        %v1726 = vpop.f32.mrb[0].mxu0
        %v1727 = vadd.f32 %v585, %v1726
        %v1728 = vpop.f32.mrb[0].mxu0
        %v1729 = vadd.f32 %v589, %v1728
        %v1730 = vpop.f32.mrb[0].mxu0
        %v1731 = vadd.f32 %v585, %v1730
        %v1732 = vpop.f32.mrb[0].mxu0
        %v1733 = vadd.f32 %v589, %v1732
        %1734 = vdwg.mxu0
        %v1735 = vmax.f32 %v866, 0.0
        %v1736 = vmax.f32 %v868, 0.0
        %v1737 = vmax.f32 %v979, 0.0
        %v1738 = vmax.f32 %v981, 0.0
        %v1739 = vmax.f32 %v1092, 0.0
        %v1740 = vmax.f32 %v1094, 0.0
        %v1741 = vmax.f32 %v1205, 0.0
        %v1742 = vmax.f32 %v1207, 0.0
        %v1743 = vmax.f32 %v1318, 0.0
        %v1744 = vmax.f32 %v1320, 0.0
        %v1745 = vmax.f32 %v1431, 0.0
        %v1746 = vmax.f32 %v1433, 0.0
        %v1747 = vmax.f32 %v1544, 0.0
        %v1748 = vmax.f32 %v1546, 0.0
        %v1749 = vmax.f32 %v1657, 0.0
        %v1750 = vmax.f32 %v1659, 0.0
        %v1751 = vmax.f32 %v870, 0.0
        %v1752 = vmax.f32 %v872, 0.0
        %v1753 = vmax.f32 %v983, 0.0
        %v1754 = vmax.f32 %v985, 0.0
        %v1755 = vmax.f32 %v1096, 0.0
        %v1756 = vmax.f32 %v1098, 0.0
        %v1757 = vmax.f32 %v1209, 0.0
        %v1758 = vmax.f32 %v1211, 0.0
        %v1759 = vmax.f32 %v1322, 0.0
        %v1760 = vmax.f32 %v1324, 0.0
        %v1761 = vmax.f32 %v1435, 0.0
        %v1762 = vmax.f32 %v1437, 0.0
        %v1763 = vmax.f32 %v1548, 0.0
        %v1764 = vmax.f32 %v1550, 0.0
        %v1765 = vmax.f32 %v1661, 0.0
        %v1766 = vmax.f32 %v1663, 0.0
        %v1767 = vmax.f32 %v876, 0.0
        %v1768 = vmax.f32 %v878, 0.0
        %v1769 = vmax.f32 %v989, 0.0
        %v1770 = vmax.f32 %v991, 0.0
        %v1771 = vmax.f32 %v1102, 0.0
        %v1772 = vmax.f32 %v1104, 0.0
        %v1773 = vmax.f32 %v1215, 0.0
        %v1774 = vmax.f32 %v1217, 0.0
        %v1775 = vmax.f32 %v1328, 0.0
        %v1776 = vmax.f32 %v1330, 0.0
        %v1777 = vmax.f32 %v1441, 0.0
        %v1778 = vmax.f32 %v1443, 0.0
        %v1779 = vmax.f32 %v1554, 0.0
        %v1780 = vmax.f32 %v1556, 0.0
        %v1781 = vmax.f32 %v1667, 0.0
        %v1782 = vmax.f32 %v1669, 0.0
        %v1783 = vmax.f32 %v880, 0.0
        %v1784 = vmax.f32 %v882, 0.0
        %v1785 = vmax.f32 %v993, 0.0
        %v1786 = vmax.f32 %v995, 0.0
        %v1787 = vmax.f32 %v1106, 0.0
        %v1788 = vmax.f32 %v1108, 0.0
        %v1789 = vmax.f32 %v1219, 0.0
        %v1790 = vmax.f32 %v1221, 0.0
        %v1791 = vmax.f32 %v1332, 0.0
        %v1792 = vmax.f32 %v1334, 0.0
        %v1793 = vmax.f32 %v1445, 0.0
        %v1794 = vmax.f32 %v1447, 0.0
        %v1795 = vmax.f32 %v1558, 0.0
        %v1796 = vmax.f32 %v1560, 0.0
        %v1797 = vmax.f32 %v1671, 0.0
        %v1798 = vmax.f32 %v1673, 0.0
        %v1799 = vmax.f32 %v886, 0.0
        %v1800 = vmax.f32 %v888, 0.0
        %v1801 = vmax.f32 %v999, 0.0
        %v1802 = vmax.f32 %v1001, 0.0
        %v1803 = vmax.f32 %v1112, 0.0
        %v1804 = vmax.f32 %v1114, 0.0
        %v1805 = vmax.f32 %v1225, 0.0
        %v1806 = vmax.f32 %v1227, 0.0
        %v1807 = vmax.f32 %v1338, 0.0
        %v1808 = vmax.f32 %v1340, 0.0
        %v1809 = vmax.f32 %v1451, 0.0
        %v1810 = vmax.f32 %v1453, 0.0
        %v1811 = vmax.f32 %v1564, 0.0
        %v1812 = vmax.f32 %v1566, 0.0
        %v1813 = vmax.f32 %v1677, 0.0
        %v1814 = vmax.f32 %v1679, 0.0
        %v1815 = vmax.f32 %v890, 0.0
        %v1816 = vmax.f32 %v892, 0.0
        %v1817 = vmax.f32 %v1003, 0.0
        %v1818 = vmax.f32 %v1005, 0.0
        %v1819 = vmax.f32 %v1116, 0.0
        %v1820 = vmax.f32 %v1118, 0.0
        %v1821 = vmax.f32 %v1229, 0.0
        %v1822 = vmax.f32 %v1231, 0.0
        %v1823 = vmax.f32 %v1342, 0.0
        %v1824 = vmax.f32 %v1344, 0.0
        %v1825 = vmax.f32 %v1455, 0.0
        %v1826 = vmax.f32 %v1457, 0.0
        %v1827 = vmax.f32 %v1568, 0.0
        %v1828 = vmax.f32 %v1570, 0.0
        %v1829 = vmax.f32 %v1681, 0.0
        %v1830 = vmax.f32 %v1683, 0.0
        %v1831 = vmax.f32 %v896, 0.0
        %v1832 = vmax.f32 %v898, 0.0
        %v1833 = vmax.f32 %v1009, 0.0
        %v1834 = vmax.f32 %v1011, 0.0
        %v1835 = vmax.f32 %v1122, 0.0
        %v1836 = vmax.f32 %v1124, 0.0
        %v1837 = vmax.f32 %v1235, 0.0
        %v1838 = vmax.f32 %v1237, 0.0
        %v1839 = vmax.f32 %v1348, 0.0
        %v1840 = vmax.f32 %v1350, 0.0
        %v1841 = vmax.f32 %v1461, 0.0
        %v1842 = vmax.f32 %v1463, 0.0
        %v1843 = vmax.f32 %v1574, 0.0
        %v1844 = vmax.f32 %v1576, 0.0
        %v1845 = vmax.f32 %v1687, 0.0
        %v1846 = vmax.f32 %v1689, 0.0
        %v1847 = vmax.f32 %v900, 0.0
        %v1848 = vmax.f32 %v902, 0.0
        %v1849 = vmax.f32 %v1013, 0.0
        %v1850 = vmax.f32 %v1015, 0.0
        %v1851 = vmax.f32 %v1126, 0.0
        %v1852 = vmax.f32 %v1128, 0.0
        %v1853 = vmax.f32 %v1239, 0.0
        %v1854 = vmax.f32 %v1241, 0.0
        %v1855 = vmax.f32 %v1352, 0.0
        %v1856 = vmax.f32 %v1354, 0.0
        %v1857 = vmax.f32 %v1465, 0.0
        %v1858 = vmax.f32 %v1467, 0.0
        %v1859 = vmax.f32 %v1578, 0.0
        %v1860 = vmax.f32 %v1580, 0.0
        %v1861 = vmax.f32 %v1691, 0.0
        %v1862 = vmax.f32 %v1693, 0.0
        %v1863 = vmax.f32 %v906, 0.0
        %v1864 = vmax.f32 %v908, 0.0
        %v1865 = vmax.f32 %v1019, 0.0
        %v1866 = vmax.f32 %v1021, 0.0
        %v1867 = vmax.f32 %v1132, 0.0
        %v1868 = vmax.f32 %v1134, 0.0
        %v1869 = vmax.f32 %v1245, 0.0
        %v1870 = vmax.f32 %v1247, 0.0
        %v1871 = vmax.f32 %v1358, 0.0
        %v1872 = vmax.f32 %v1360, 0.0
        %v1873 = vmax.f32 %v1471, 0.0
        %v1874 = vmax.f32 %v1473, 0.0
        %v1875 = vmax.f32 %v1584, 0.0
        %v1876 = vmax.f32 %v1586, 0.0
        %v1877 = vmax.f32 %v1697, 0.0
        %v1878 = vmax.f32 %v1699, 0.0
        %v1879 = vmax.f32 %v910, 0.0
        %v1880 = vmax.f32 %v912, 0.0
        %v1881 = vmax.f32 %v1023, 0.0
        %v1882 = vmax.f32 %v1025, 0.0
        %v1883 = vmax.f32 %v1136, 0.0
        %v1884 = vmax.f32 %v1138, 0.0
        %v1885 = vmax.f32 %v1249, 0.0
        %v1886 = vmax.f32 %v1251, 0.0
        %v1887 = vmax.f32 %v1362, 0.0
        %v1888 = vmax.f32 %v1364, 0.0
        %v1889 = vmax.f32 %v1475, 0.0
        %v1890 = vmax.f32 %v1477, 0.0
        %v1891 = vmax.f32 %v1588, 0.0
        %v1892 = vmax.f32 %v1590, 0.0
        %v1893 = vmax.f32 %v1701, 0.0
        %v1894 = vmax.f32 %v1703, 0.0
        %v1895 = vmax.f32 %v916, 0.0
        %v1896 = vmax.f32 %v918, 0.0
        %v1897 = vmax.f32 %v1029, 0.0
        %v1898 = vmax.f32 %v1031, 0.0
        %v1899 = vmax.f32 %v1142, 0.0
        %v1900 = vmax.f32 %v1144, 0.0
        %v1901 = vmax.f32 %v1255, 0.0
        %v1902 = vmax.f32 %v1257, 0.0
        %v1903 = vmax.f32 %v1368, 0.0
        %v1904 = vmax.f32 %v1370, 0.0
        %v1905 = vmax.f32 %v1481, 0.0
        %v1906 = vmax.f32 %v1483, 0.0
        %v1907 = vmax.f32 %v1594, 0.0
        %v1908 = vmax.f32 %v1596, 0.0
        %v1909 = vmax.f32 %v1707, 0.0
        %v1910 = vmax.f32 %v1709, 0.0
        %v1911 = vmax.f32 %v920, 0.0
        %v1912 = vmax.f32 %v922, 0.0
        %v1913 = vmax.f32 %v1033, 0.0
        %v1914 = vmax.f32 %v1035, 0.0
        %v1915 = vmax.f32 %v1146, 0.0
        %v1916 = vmax.f32 %v1148, 0.0
        %v1917 = vmax.f32 %v1259, 0.0
        %v1918 = vmax.f32 %v1261, 0.0
        %v1919 = vmax.f32 %v1372, 0.0
        %v1920 = vmax.f32 %v1374, 0.0
        %v1921 = vmax.f32 %v1485, 0.0
        %v1922 = vmax.f32 %v1487, 0.0
        %v1923 = vmax.f32 %v1598, 0.0
        %v1924 = vmax.f32 %v1600, 0.0
        %v1925 = vmax.f32 %v1711, 0.0
        %v1926 = vmax.f32 %v1713, 0.0
        %v1927 = vmax.f32 %v926, 0.0
        %v1928 = vmax.f32 %v928, 0.0
        %v1929 = vmax.f32 %v1039, 0.0
        %v1930 = vmax.f32 %v1041, 0.0
        %v1931 = vmax.f32 %v1152, 0.0
        %v1932 = vmax.f32 %v1154, 0.0
        %v1933 = vmax.f32 %v1265, 0.0
        %v1934 = vmax.f32 %v1267, 0.0
        %v1935 = vmax.f32 %v1378, 0.0
        %v1936 = vmax.f32 %v1380, 0.0
        %v1937 = vmax.f32 %v1491, 0.0
        %v1938 = vmax.f32 %v1493, 0.0
        %v1939 = vmax.f32 %v1604, 0.0
        %v1940 = vmax.f32 %v1606, 0.0
        %v1941 = vmax.f32 %v1717, 0.0
        %v1942 = vmax.f32 %v1719, 0.0
        %v1943 = vmax.f32 %v930, 0.0
        %v1944 = vmax.f32 %v932, 0.0
        %v1945 = vmax.f32 %v1043, 0.0
        %v1946 = vmax.f32 %v1045, 0.0
        %v1947 = vmax.f32 %v1156, 0.0
        %v1948 = vmax.f32 %v1158, 0.0
        %v1949 = vmax.f32 %v1269, 0.0
        %v1950 = vmax.f32 %v1271, 0.0
        %v1951 = vmax.f32 %v1382, 0.0
        %v1952 = vmax.f32 %v1384, 0.0
        %v1953 = vmax.f32 %v1495, 0.0
        %v1954 = vmax.f32 %v1497, 0.0
        %v1955 = vmax.f32 %v1608, 0.0
        %v1956 = vmax.f32 %v1610, 0.0
        %v1957 = vmax.f32 %v1721, 0.0
        %v1958 = vmax.f32 %v1723, 0.0
        %v1959 = vmax.f32 %v936, 0.0
        %v1960 = vmax.f32 %v938, 0.0
        %v1961 = vmax.f32 %v1049, 0.0
        %v1962 = vmax.f32 %v1051, 0.0
        %v1963 = vmax.f32 %v1162, 0.0
        %v1964 = vmax.f32 %v1164, 0.0
        %v1965 = vmax.f32 %v1275, 0.0
        %v1966 = vmax.f32 %v1277, 0.0
        %v1967 = vmax.f32 %v1388, 0.0
        %v1968 = vmax.f32 %v1390, 0.0
        %v1969 = vmax.f32 %v1501, 0.0
        %v1970 = vmax.f32 %v1503, 0.0
        %v1971 = vmax.f32 %v1614, 0.0
        %v1972 = vmax.f32 %v1616, 0.0
        %v1973 = vmax.f32 %v1727, 0.0
        %v1974 = vmax.f32 %v1729, 0.0
        %v1975 = vmax.f32 %v940, 0.0
        %v1976 = vmax.f32 %v942, 0.0
        %v1977 = vmax.f32 %v1053, 0.0
        %v1978 = vmax.f32 %v1055, 0.0
        %v1979 = vmax.f32 %v1166, 0.0
        %v1980 = vmax.f32 %v1168, 0.0
        %v1981 = vmax.f32 %v1279, 0.0
        %v1982 = vmax.f32 %v1281, 0.0
        %v1983 = vmax.f32 %v1392, 0.0
        %v1984 = vmax.f32 %v1394, 0.0
        %v1985 = vmax.f32 %v1505, 0.0
        %v1986 = vmax.f32 %v1507, 0.0
        %v1987 = vmax.f32 %v1618, 0.0
        %v1988 = vmax.f32 %v1620, 0.0
        %v1989 = vmax.f32 %v1731, 0.0
        %v1990 = vmax.f32 %v1733, 0.0
        %v1991 = vld [vmem:[#allocation2] sm:$0xff]
        %v1992 = vld [vmem:[#allocation2 + $0x8] sm:$0xff]
        %v1993 = vadd.f32 %v1735, %v1751
        %v1994 = vadd.f32 %v1993, %v1767
        %v1995 = vadd.f32 %v1994, %v1783
        %v1996 = vadd.f32 %v1995, %v1799
        %v1997 = vadd.f32 %v1996, %v1815
        %v1998 = vadd.f32 %v1997, %v1831
        %v1999 = vadd.f32 %v1998, %v1847
        %v2000 = vadd.f32 %v1999, %v1863
        %v2001 = vadd.f32 %v2000, %v1879
        %v2002 = vadd.f32 %v2001, %v1895
        %v2003 = vadd.f32 %v2002, %v1911
        %v2004 = vadd.f32 %v2003, %v1927
        %v2005 = vadd.f32 %v2004, %v1943
        %v2006 = vadd.f32 %v2005, %v1959
        %v2007 = vadd.f32 %v2006, %v1975
        %v2008 = vrot.slane %v2007, 4
        %v2009 = vadd.f32 %v2007, %v2008
        %v2010 = vrot.slane %v2009, 2
        %v2011 = vadd.f32 %v2009, %v2010
        %v2012 = vrot.slane %v2011, 1
        %v2013 = vadd.f32 %v2011, %v2012
        %v2014 = vadd.f32 %v1736, %v1752
        %v2015 = vadd.f32 %v2014, %v1768
        %v2016 = vadd.f32 %v2015, %v1784
        %v2017 = vadd.f32 %v2016, %v1800
        %v2018 = vadd.f32 %v2017, %v1816
        %v2019 = vadd.f32 %v2018, %v1832
        %v2020 = vadd.f32 %v2019, %v1848
        %v2021 = vadd.f32 %v2020, %v1864
        %v2022 = vadd.f32 %v2021, %v1880
        %v2023 = vadd.f32 %v2022, %v1896
        %v2024 = vadd.f32 %v2023, %v1912
        %v2025 = vadd.f32 %v2024, %v1928
        %v2026 = vadd.f32 %v2025, %v1944
        %v2027 = vadd.f32 %v2026, %v1960
        %v2028 = vadd.f32 %v2027, %v1976
        %v2029 = vrot.slane %v2028, 4
        %v2030 = vadd.f32 %v2028, %v2029
        %v2031 = vrot.slane %v2030, 2
        %v2032 = vadd.f32 %v2030, %v2031
        %v2033 = vrot.slane %v2032, 1
        %v2034 = vadd.f32 %v2032, %v2033
        %v2035 = vadd.f32 %v1737, %v1753
        %v2036 = vadd.f32 %v2035, %v1769
        %v2037 = vadd.f32 %v2036, %v1785
        %v2038 = vadd.f32 %v2037, %v1801
        %v2039 = vadd.f32 %v2038, %v1817
        %v2040 = vadd.f32 %v2039, %v1833
        %v2041 = vadd.f32 %v2040, %v1849
        %v2042 = vadd.f32 %v2041, %v1865
        %v2043 = vadd.f32 %v2042, %v1881
        %v2044 = vadd.f32 %v2043, %v1897
        %v2045 = vadd.f32 %v2044, %v1913
        %v2046 = vadd.f32 %v2045, %v1929
        %v2047 = vadd.f32 %v2046, %v1945
        %v2048 = vadd.f32 %v2047, %v1961
        %v2049 = vadd.f32 %v2048, %v1977
        %v2050 = vrot.slane %v2049, 4
        %v2051 = vadd.f32 %v2049, %v2050
        %v2052 = vrot.slane %v2051, 2
        %v2053 = vadd.f32 %v2051, %v2052
        %v2054 = vrot.slane %v2053, 1
        %v2055 = vadd.f32 %v2053, %v2054
        %v2056 = vadd.f32 %v1738, %v1754
        %v2057 = vadd.f32 %v2056, %v1770
        %v2058 = vadd.f32 %v2057, %v1786
        %v2059 = vadd.f32 %v2058, %v1802
        %v2060 = vadd.f32 %v2059, %v1818
        %v2061 = vadd.f32 %v2060, %v1834
        %v2062 = vadd.f32 %v2061, %v1850
        %v2063 = vadd.f32 %v2062, %v1866
        %v2064 = vadd.f32 %v2063, %v1882
        %v2065 = vadd.f32 %v2064, %v1898
        %v2066 = vadd.f32 %v2065, %v1914
        %v2067 = vadd.f32 %v2066, %v1930
        %v2068 = vadd.f32 %v2067, %v1946
        %v2069 = vadd.f32 %v2068, %v1962
        %v2070 = vadd.f32 %v2069, %v1978
        %v2071 = vrot.slane %v2070, 4
        %v2072 = vadd.f32 %v2070, %v2071
        %v2073 = vrot.slane %v2072, 2
        %v2074 = vadd.f32 %v2072, %v2073
        %v2075 = vrot.slane %v2074, 1
        %v2076 = vadd.f32 %v2074, %v2075
        %v2077 = vadd.f32 %v1739, %v1755
        %v2078 = vadd.f32 %v2077, %v1771
        %v2079 = vadd.f32 %v2078, %v1787
        %v2080 = vadd.f32 %v2079, %v1803
        %v2081 = vadd.f32 %v2080, %v1819
        %v2082 = vadd.f32 %v2081, %v1835
        %v2083 = vadd.f32 %v2082, %v1851
        %v2084 = vadd.f32 %v2083, %v1867
        %v2085 = vadd.f32 %v2084, %v1883
        %v2086 = vadd.f32 %v2085, %v1899
        %v2087 = vadd.f32 %v2086, %v1915
        %v2088 = vadd.f32 %v2087, %v1931
        %v2089 = vadd.f32 %v2088, %v1947
        %v2090 = vadd.f32 %v2089, %v1963
        %v2091 = vadd.f32 %v2090, %v1979
        %v2092 = vrot.slane %v2091, 4
        %v2093 = vadd.f32 %v2091, %v2092
        %v2094 = vrot.slane %v2093, 2
        %v2095 = vadd.f32 %v2093, %v2094
        %v2096 = vrot.slane %v2095, 1
        %v2097 = vadd.f32 %v2095, %v2096
        %v2098 = vadd.f32 %v1740, %v1756
        %v2099 = vadd.f32 %v2098, %v1772
        %v2100 = vadd.f32 %v2099, %v1788
        %v2101 = vadd.f32 %v2100, %v1804
        %v2102 = vadd.f32 %v2101, %v1820
        %v2103 = vadd.f32 %v2102, %v1836
        %v2104 = vadd.f32 %v2103, %v1852
        %v2105 = vadd.f32 %v2104, %v1868
        %v2106 = vadd.f32 %v2105, %v1884
        %v2107 = vadd.f32 %v2106, %v1900
        %v2108 = vadd.f32 %v2107, %v1916
        %v2109 = vadd.f32 %v2108, %v1932
        %v2110 = vadd.f32 %v2109, %v1948
        %v2111 = vadd.f32 %v2110, %v1964
        %v2112 = vadd.f32 %v2111, %v1980
        %v2113 = vrot.slane %v2112, 4
        %v2114 = vadd.f32 %v2112, %v2113
        %v2115 = vrot.slane %v2114, 2
        %v2116 = vadd.f32 %v2114, %v2115
        %v2117 = vrot.slane %v2116, 1
        %v2118 = vadd.f32 %v2116, %v2117
        %v2119 = vadd.f32 %v1741, %v1757
        %v2120 = vadd.f32 %v2119, %v1773
        %v2121 = vadd.f32 %v2120, %v1789
        %v2122 = vadd.f32 %v2121, %v1805
        %v2123 = vadd.f32 %v2122, %v1821
        %v2124 = vadd.f32 %v2123, %v1837
        %v2125 = vadd.f32 %v2124, %v1853
        %v2126 = vadd.f32 %v2125, %v1869
        %v2127 = vadd.f32 %v2126, %v1885
        %v2128 = vadd.f32 %v2127, %v1901
        %v2129 = vadd.f32 %v2128, %v1917
        %v2130 = vadd.f32 %v2129, %v1933
        %v2131 = vadd.f32 %v2130, %v1949
        %v2132 = vadd.f32 %v2131, %v1965
        %v2133 = vadd.f32 %v2132, %v1981
        %v2134 = vrot.slane %v2133, 4
        %v2135 = vadd.f32 %v2133, %v2134
        %v2136 = vrot.slane %v2135, 2
        %v2137 = vadd.f32 %v2135, %v2136
        %v2138 = vrot.slane %v2137, 1
        %v2139 = vadd.f32 %v2137, %v2138
        %v2140 = vadd.f32 %v1742, %v1758
        %v2141 = vadd.f32 %v2140, %v1774
        %v2142 = vadd.f32 %v2141, %v1790
        %v2143 = vadd.f32 %v2142, %v1806
        %v2144 = vadd.f32 %v2143, %v1822
        %v2145 = vadd.f32 %v2144, %v1838
        %v2146 = vadd.f32 %v2145, %v1854
        %v2147 = vadd.f32 %v2146, %v1870
        %v2148 = vadd.f32 %v2147, %v1886
        %v2149 = vadd.f32 %v2148, %v1902
        %v2150 = vadd.f32 %v2149, %v1918
        %v2151 = vadd.f32 %v2150, %v1934
        %v2152 = vadd.f32 %v2151, %v1950
        %v2153 = vadd.f32 %v2152, %v1966
        %v2154 = vadd.f32 %v2153, %v1982
        %v2155 = vrot.slane %v2154, 4
        %v2156 = vadd.f32 %v2154, %v2155
        %v2157 = vrot.slane %v2156, 2
        %v2158 = vadd.f32 %v2156, %v2157
        %v2159 = vrot.slane %v2158, 1
        %v2160 = vadd.f32 %v2158, %v2159
        %v2161 = vadd.f32 %v1743, %v1759
        %v2162 = vadd.f32 %v2161, %v1775
        %v2163 = vadd.f32 %v2162, %v1791
        %v2164 = vadd.f32 %v2163, %v1807
        %v2165 = vadd.f32 %v2164, %v1823
        %v2166 = vadd.f32 %v2165, %v1839
        %v2167 = vadd.f32 %v2166, %v1855
        %v2168 = vadd.f32 %v2167, %v1871
        %v2169 = vadd.f32 %v2168, %v1887
        %v2170 = vadd.f32 %v2169, %v1903
        %v2171 = vadd.f32 %v2170, %v1919
        %v2172 = vadd.f32 %v2171, %v1935
        %v2173 = vadd.f32 %v2172, %v1951
        %v2174 = vadd.f32 %v2173, %v1967
        %v2175 = vadd.f32 %v2174, %v1983
        %v2176 = vrot.slane %v2175, 4
        %v2177 = vadd.f32 %v2175, %v2176
        %v2178 = vrot.slane %v2177, 2
        %v2179 = vadd.f32 %v2177, %v2178
        %v2180 = vrot.slane %v2179, 1
        %v2181 = vadd.f32 %v2179, %v2180
        %v2182 = vadd.f32 %v1744, %v1760
        %v2183 = vadd.f32 %v2182, %v1776
        %v2184 = vadd.f32 %v2183, %v1792
        %v2185 = vadd.f32 %v2184, %v1808
        %v2186 = vadd.f32 %v2185, %v1824
        %v2187 = vadd.f32 %v2186, %v1840
        %v2188 = vadd.f32 %v2187, %v1856
        %v2189 = vadd.f32 %v2188, %v1872
        %v2190 = vadd.f32 %v2189, %v1888
        %v2191 = vadd.f32 %v2190, %v1904
        %v2192 = vadd.f32 %v2191, %v1920
        %v2193 = vadd.f32 %v2192, %v1936
        %v2194 = vadd.f32 %v2193, %v1952
        %v2195 = vadd.f32 %v2194, %v1968
        %v2196 = vadd.f32 %v2195, %v1984
        %v2197 = vrot.slane %v2196, 4
        %v2198 = vadd.f32 %v2196, %v2197
        %v2199 = vrot.slane %v2198, 2
        %v2200 = vadd.f32 %v2198, %v2199
        %v2201 = vrot.slane %v2200, 1
        %v2202 = vadd.f32 %v2200, %v2201
        %v2203 = vadd.f32 %v1745, %v1761
        %v2204 = vadd.f32 %v2203, %v1777
        %v2205 = vadd.f32 %v2204, %v1793
        %v2206 = vadd.f32 %v2205, %v1809
        %v2207 = vadd.f32 %v2206, %v1825
        %v2208 = vadd.f32 %v2207, %v1841
        %v2209 = vadd.f32 %v2208, %v1857
        %v2210 = vadd.f32 %v2209, %v1873
        %v2211 = vadd.f32 %v2210, %v1889
        %v2212 = vadd.f32 %v2211, %v1905
        %v2213 = vadd.f32 %v2212, %v1921
        %v2214 = vadd.f32 %v2213, %v1937
        %v2215 = vadd.f32 %v2214, %v1953
        %v2216 = vadd.f32 %v2215, %v1969
        %v2217 = vadd.f32 %v2216, %v1985
        %v2218 = vrot.slane %v2217, 4
        %v2219 = vadd.f32 %v2217, %v2218
        %v2220 = vrot.slane %v2219, 2
        %v2221 = vadd.f32 %v2219, %v2220
        %v2222 = vrot.slane %v2221, 1
        %v2223 = vadd.f32 %v2221, %v2222
        %v2224 = vadd.f32 %v1746, %v1762
        %v2225 = vadd.f32 %v2224, %v1778
        %v2226 = vadd.f32 %v2225, %v1794
        %v2227 = vadd.f32 %v2226, %v1810
        %v2228 = vadd.f32 %v2227, %v1826
        %v2229 = vadd.f32 %v2228, %v1842
        %v2230 = vadd.f32 %v2229, %v1858
        %v2231 = vadd.f32 %v2230, %v1874
        %v2232 = vadd.f32 %v2231, %v1890
        %v2233 = vadd.f32 %v2232, %v1906
        %v2234 = vadd.f32 %v2233, %v1922
        %v2235 = vadd.f32 %v2234, %v1938
        %v2236 = vadd.f32 %v2235, %v1954
        %v2237 = vadd.f32 %v2236, %v1970
        %v2238 = vadd.f32 %v2237, %v1986
        %v2239 = vrot.slane %v2238, 4
        %v2240 = vadd.f32 %v2238, %v2239
        %v2241 = vrot.slane %v2240, 2
        %v2242 = vadd.f32 %v2240, %v2241
        %v2243 = vrot.slane %v2242, 1
        %v2244 = vadd.f32 %v2242, %v2243
        %v2245 = vadd.f32 %v1747, %v1763
        %v2246 = vadd.f32 %v2245, %v1779
        %v2247 = vadd.f32 %v2246, %v1795
        %v2248 = vadd.f32 %v2247, %v1811
        %v2249 = vadd.f32 %v2248, %v1827
        %v2250 = vadd.f32 %v2249, %v1843
        %v2251 = vadd.f32 %v2250, %v1859
        %v2252 = vadd.f32 %v2251, %v1875
        %v2253 = vadd.f32 %v2252, %v1891
        %v2254 = vadd.f32 %v2253, %v1907
        %v2255 = vadd.f32 %v2254, %v1923
        %v2256 = vadd.f32 %v2255, %v1939
        %v2257 = vadd.f32 %v2256, %v1955
        %v2258 = vadd.f32 %v2257, %v1971
        %v2259 = vadd.f32 %v2258, %v1987
        %v2260 = vrot.slane %v2259, 4
        %v2261 = vadd.f32 %v2259, %v2260
        %v2262 = vrot.slane %v2261, 2
        %v2263 = vadd.f32 %v2261, %v2262
        %v2264 = vrot.slane %v2263, 1
        %v2265 = vadd.f32 %v2263, %v2264
        %v2266 = vadd.f32 %v1748, %v1764
        %v2267 = vadd.f32 %v2266, %v1780
        %v2268 = vadd.f32 %v2267, %v1796
        %v2269 = vadd.f32 %v2268, %v1812
        %v2270 = vadd.f32 %v2269, %v1828
        %v2271 = vadd.f32 %v2270, %v1844
        %v2272 = vadd.f32 %v2271, %v1860
        %v2273 = vadd.f32 %v2272, %v1876
        %v2274 = vadd.f32 %v2273, %v1892
        %v2275 = vadd.f32 %v2274, %v1908
        %v2276 = vadd.f32 %v2275, %v1924
        %v2277 = vadd.f32 %v2276, %v1940
        %v2278 = vadd.f32 %v2277, %v1956
        %v2279 = vadd.f32 %v2278, %v1972
        %v2280 = vadd.f32 %v2279, %v1988
        %v2281 = vrot.slane %v2280, 4
        %v2282 = vadd.f32 %v2280, %v2281
        %v2283 = vrot.slane %v2282, 2
        %v2284 = vadd.f32 %v2282, %v2283
        %v2285 = vrot.slane %v2284, 1
        %v2286 = vadd.f32 %v2284, %v2285
        %v2287 = vadd.f32 %v1749, %v1765
        %v2288 = vadd.f32 %v2287, %v1781
        %v2289 = vadd.f32 %v2288, %v1797
        %v2290 = vadd.f32 %v2289, %v1813
        %v2291 = vadd.f32 %v2290, %v1829
        %v2292 = vadd.f32 %v2291, %v1845
        %v2293 = vadd.f32 %v2292, %v1861
        %v2294 = vadd.f32 %v2293, %v1877
        %v2295 = vadd.f32 %v2294, %v1893
        %v2296 = vadd.f32 %v2295, %v1909
        %v2297 = vadd.f32 %v2296, %v1925
        %v2298 = vadd.f32 %v2297, %v1941
        %v2299 = vadd.f32 %v2298, %v1957
        %v2300 = vadd.f32 %v2299, %v1973
        %v2301 = vadd.f32 %v2300, %v1989
        %v2302 = vrot.slane %v2301, 4
        %v2303 = vadd.f32 %v2301, %v2302
        %v2304 = vrot.slane %v2303, 2
        %v2305 = vadd.f32 %v2303, %v2304
        %v2306 = vrot.slane %v2305, 1
        %v2307 = vadd.f32 %v2305, %v2306
        %v2308 = vadd.f32 %v1750, %v1766
        %v2309 = vadd.f32 %v2308, %v1782
        %v2310 = vadd.f32 %v2309, %v1798
        %v2311 = vadd.f32 %v2310, %v1814
        %v2312 = vadd.f32 %v2311, %v1830
        %v2313 = vadd.f32 %v2312, %v1846
        %v2314 = vadd.f32 %v2313, %v1862
        %v2315 = vadd.f32 %v2314, %v1878
        %v2316 = vadd.f32 %v2315, %v1894
        %v2317 = vadd.f32 %v2316, %v1910
        %v2318 = vadd.f32 %v2317, %v1926
        %v2319 = vadd.f32 %v2318, %v1942
        %v2320 = vadd.f32 %v2319, %v1958
        %v2321 = vadd.f32 %v2320, %v1974
        %v2322 = vadd.f32 %v2321, %v1990
        %v2323 = vrot.slane %v2322, 4
        %v2324 = vadd.f32 %v2322, %v2323
        %v2325 = vrot.slane %v2324, 2
        %v2326 = vadd.f32 %v2324, %v2325
        %v2327 = vrot.slane %v2326, 1
        %v2328 = vadd.f32 %v2326, %v2327
        %v2345 = vcombine.low %v2013, %v2034
        %v2346 = vcombine.low %v2055, %v2076
        %v2347 = vcombine.low %v2097, %v2118
        %v2348 = vcombine.low %v2139, %v2160
        %v2350 = vunpack.c.l.s4 1966171168
        %v2351 = vunpack.c.0.s8 %v2350
        %v2352 = vlaneseq
        %v2353 = vshrl.u32 %v2352, 7
        %v2354 = vsub.s32 %v2351, %v2353
        %v2355 = vrot.slane %v2345, %v2354
        %v2357 = vunpack.c.l.s4 1966171168
        %v2358 = vunpack.c.0.s8 %v2357
        %v2359 = vlaneseq
        %v2360 = vshrl.u32 %v2359, 7
        %v2361 = vsub.s32 %v2358, %v2360
        %v2362 = vrot.slane %v2346, %v2361
        %v2364 = vunpack.c.l.s4 1966171168
        %v2365 = vunpack.c.0.s8 %v2364
        %v2366 = vlaneseq
        %v2367 = vshrl.u32 %v2366, 7
        %v2368 = vsub.s32 %v2365, %v2367
        %v2369 = vrot.slane %v2347, %v2368
        %v2371 = vunpack.c.l.s4 1966171168
        %v2372 = vunpack.c.0.s8 %v2371
        %v2373 = vlaneseq
        %v2374 = vshrl.u32 %v2373, 7
        %v2375 = vsub.s32 %v2372, %v2374
        %v2376 = vrot.slane %v2348, %v2375
        %v2377 = vcombine.low %v2355, %v2362
        %v2378 = vcombine.low %v2369, %v2376
        %v2380 = vunpack.c.l.s4 1966171168
        %v2381 = vunpack.c.0.s8 %v2380
        %v2382 = vlaneseq
        %v2383 = vshrl.u32 %v2382, 7
        %v2384 = vsub.s32 %v2381, %v2383
        %v2385 = vrot.slane %v2377, %v2384
        %v2387 = vunpack.c.l.s4 1966171168
        %v2388 = vunpack.c.0.s8 %v2387
        %v2389 = vlaneseq
        %v2390 = vshrl.u32 %v2389, 7
        %v2391 = vsub.s32 %v2388, %v2390
        %v2392 = vrot.slane %v2378, %v2391
        %v2393 = vcombine.low %v2385, %v2392
        %v2394 = vcombine.low %v2181, %v2202
        %v2395 = vcombine.low %v2223, %v2244
        %v2396 = vcombine.low %v2265, %v2286
        %v2397 = vcombine.low %v2307, %v2328
        %v2399 = vunpack.c.l.s4 1966171168
        %v2400 = vunpack.c.0.s8 %v2399
        %v2401 = vlaneseq
        %v2402 = vshrl.u32 %v2401, 7
        %v2403 = vsub.s32 %v2400, %v2402
        %v2404 = vrot.slane %v2394, %v2403
        %v2406 = vunpack.c.l.s4 1966171168
        %v2407 = vunpack.c.0.s8 %v2406
        %v2408 = vlaneseq
        %v2409 = vshrl.u32 %v2408, 7
        %v2410 = vsub.s32 %v2407, %v2409
        %v2411 = vrot.slane %v2395, %v2410
        %v2413 = vunpack.c.l.s4 1966171168
        %v2414 = vunpack.c.0.s8 %v2413
        %v2415 = vlaneseq
        %v2416 = vshrl.u32 %v2415, 7
        %v2417 = vsub.s32 %v2414, %v2416
        %v2418 = vrot.slane %v2396, %v2417
        %v2420 = vunpack.c.l.s4 1966171168
        %v2421 = vunpack.c.0.s8 %v2420
        %v2422 = vlaneseq
        %v2423 = vshrl.u32 %v2422, 7
        %v2424 = vsub.s32 %v2421, %v2423
        %v2425 = vrot.slane %v2397, %v2424
        %v2426 = vcombine.low %v2404, %v2411
        %v2427 = vcombine.low %v2418, %v2425
        %v2429 = vunpack.c.l.s4 1966171168
        %v2430 = vunpack.c.0.s8 %v2429
        %v2431 = vlaneseq
        %v2432 = vshrl.u32 %v2431, 7
        %v2433 = vsub.s32 %v2430, %v2432
        %v2434 = vrot.slane %v2426, %v2433
        %v2436 = vunpack.c.l.s4 1966171168
        %v2437 = vunpack.c.0.s8 %v2436
        %v2438 = vlaneseq
        %v2439 = vshrl.u32 %v2438, 7
        %v2440 = vsub.s32 %v2437, %v2439
        %v2441 = vrot.slane %v2427, %v2440
        %v2442 = vcombine.low %v2434, %v2441
        %v2445 = vadd.f32 %v1991, %v2393
        %v2446 = vadd.f32 %v1992, %v2442
        %2447 = vst [vmem:[#allocation2] sm:$0xff] %v2445
        %2448 = vst [vmem:[#allocation2 + $0x8] sm:$0xff] %v2446
        %p2449 = scmp.eq.s32.totalorder %s33, 1
        // Predicated region
        $region93: #{tpu_custom_call.1} parent=55 // pred_check
          %p2450 = pneg %p2449
        $region94: #{tpu_custom_call.1} parent=55 // pred_check_branch
          %2452 = sbr.rel (%p2450) target = $region96
        $region95: #{tpu_custom_call.1} parent=55 // pred_region
          %v2453 = vld [vmem:[#allocation2] sm:$0xff]
          %v2454 = vld [vmem:[#allocation2 + $0x8] sm:$0xff]
          %v2455 = vmul.f32 %v2453, 0.00390625
          %v2456 = vmul.f32 %v2454, 0.00390625
          %v2459 = vlaneseq
          %v2460 = vshrl.u32 %v2459, 7
          %v2461 = vsub.s32 0, %v2460
          %v2462 = vrot.slane %v2455, %v2461
          %v2463 = vlaneseq
          %v2464 = vshrl.u32 %v2463, 7
          %v2465 = vsub.s32 1, %v2464
          %v2466 = vrot.slane %v2455, %v2465
          %v2467 = vlaneseq
          %v2468 = vshrl.u32 %v2467, 7
          %v2469 = vsub.s32 2, %v2468
          %v2470 = vrot.slane %v2455, %v2469
          %v2471 = vlaneseq
          %v2472 = vshrl.u32 %v2471, 7
          %v2473 = vsub.s32 3, %v2472
          %v2474 = vrot.slane %v2455, %v2473
          %v2475 = vlaneseq
          %v2476 = vshrl.u32 %v2475, 7
          %v2477 = vsub.s32 4, %v2476
          %v2478 = vrot.slane %v2455, %v2477
          %v2479 = vlaneseq
          %v2480 = vshrl.u32 %v2479, 7
          %v2481 = vsub.s32 5, %v2480
          %v2482 = vrot.slane %v2455, %v2481
          %v2483 = vlaneseq
          %v2484 = vshrl.u32 %v2483, 7
          %v2485 = vsub.s32 6, %v2484
          %v2486 = vrot.slane %v2455, %v2485
          %v2487 = vlaneseq
          %v2488 = vshrl.u32 %v2487, 7
          %v2489 = vsub.s32 7, %v2488
          %v2490 = vrot.slane %v2455, %v2489
          %v2491 = vlaneseq
          %v2492 = vshrl.u32 %v2491, 7
          %v2493 = vsub.s32 0, %v2492
          %v2494 = vrot.slane %v2456, %v2493
          %v2495 = vlaneseq
          %v2496 = vshrl.u32 %v2495, 7
          %v2497 = vsub.s32 1, %v2496
          %v2498 = vrot.slane %v2456, %v2497
          %v2499 = vlaneseq
          %v2500 = vshrl.u32 %v2499, 7
          %v2501 = vsub.s32 2, %v2500
          %v2502 = vrot.slane %v2456, %v2501
          %v2503 = vlaneseq
          %v2504 = vshrl.u32 %v2503, 7
          %v2505 = vsub.s32 3, %v2504
          %v2506 = vrot.slane %v2456, %v2505
          %v2507 = vlaneseq
          %v2508 = vshrl.u32 %v2507, 7
          %v2509 = vsub.s32 4, %v2508
          %v2510 = vrot.slane %v2456, %v2509
          %v2511 = vlaneseq
          %v2512 = vshrl.u32 %v2511, 7
          %v2513 = vsub.s32 5, %v2512
          %v2514 = vrot.slane %v2456, %v2513
          %v2515 = vlaneseq
          %v2516 = vshrl.u32 %v2515, 7
          %v2517 = vsub.s32 6, %v2516
          %v2518 = vrot.slane %v2456, %v2517
          %v2519 = vlaneseq
          %v2520 = vshrl.u32 %v2519, 7
          %v2521 = vsub.s32 7, %v2520
          %v2522 = vrot.slane %v2456, %v2521
          %v2539 = vpack.c.bf16 %v2462, %v2462
          %v2540 = vpack.c.bf16 %v2466, %v2466
          %v2541 = vpack.c.bf16 %v2470, %v2470
          %v2542 = vpack.c.bf16 %v2474, %v2474
          %v2543 = vpack.c.bf16 %v2478, %v2478
          %v2544 = vpack.c.bf16 %v2482, %v2482
          %v2545 = vpack.c.bf16 %v2486, %v2486
          %v2546 = vpack.c.bf16 %v2490, %v2490
          %v2547 = vpack.c.bf16 %v2494, %v2494
          %v2548 = vpack.c.bf16 %v2498, %v2498
          %v2549 = vpack.c.bf16 %v2502, %v2502
          %v2550 = vpack.c.bf16 %v2506, %v2506
          %v2551 = vpack.c.bf16 %v2510, %v2510
          %v2552 = vpack.c.bf16 %v2514, %v2514
          %v2553 = vpack.c.bf16 %v2518, %v2518
          %v2554 = vpack.c.bf16 %v2522, %v2522
          %v2555 = vld [vmem:[#allocation8] sm:$0xff]
          %v2556 = vld [vmem:[#allocation8 + $0x8] sm:$0xff]
          %v2557 = vld [vmem:[#allocation8 + $0x10] sm:$0xff]
          %v2558 = vld [vmem:[#allocation8 + $0x18] sm:$0xff]
          %v2559 = vld [vmem:[#allocation8 + $0x20] sm:$0xff]
          %v2560 = vld [vmem:[#allocation8 + $0x28] sm:$0xff]
          %v2561 = vld [vmem:[#allocation8 + $0x30] sm:$0xff]
          %v2562 = vld [vmem:[#allocation8 + $0x38] sm:$0xff]
          %v2563 = vld [vmem:[#allocation8 + $0x40] sm:$0xff]
          %v2564 = vld [vmem:[#allocation8 + $0x48] sm:$0xff]
          %v2565 = vld [vmem:[#allocation8 + $0x50] sm:$0xff]
          %v2566 = vld [vmem:[#allocation8 + $0x58] sm:$0xff]
          %v2567 = vld [vmem:[#allocation8 + $0x60] sm:$0xff]
          %v2568 = vld [vmem:[#allocation8 + $0x68] sm:$0xff]
          %v2569 = vld [vmem:[#allocation8 + $0x70] sm:$0xff]
          %v2570 = vld [vmem:[#allocation8 + $0x78] sm:$0xff]
          %v2571 = vld [vmem:[#allocation8 + $0x80] sm:$0xff]
          %v2572 = vld [vmem:[#allocation8 + $0x88] sm:$0xff]
          %v2573 = vld [vmem:[#allocation8 + $0x90] sm:$0xff]
          %v2574 = vld [vmem:[#allocation8 + $0x98] sm:$0xff]
          %v2575 = vld [vmem:[#allocation8 + $0xa0] sm:$0xff]
          %v2576 = vld [vmem:[#allocation8 + $0xa8] sm:$0xff]
          %v2577 = vld [vmem:[#allocation8 + $0xb0] sm:$0xff]
          %v2578 = vld [vmem:[#allocation8 + $0xb8] sm:$0xff]
          %v2579 = vld [vmem:[#allocation8 + $0xc0] sm:$0xff]
          %v2580 = vld [vmem:[#allocation8 + $0xc8] sm:$0xff]
          %v2581 = vld [vmem:[#allocation8 + $0xd0] sm:$0xff]
          %v2582 = vld [vmem:[#allocation8 + $0xd8] sm:$0xff]
          %v2583 = vld [vmem:[#allocation8 + $0xe0] sm:$0xff]
          %v2584 = vld [vmem:[#allocation8 + $0xe8] sm:$0xff]
          %v2585 = vld [vmem:[#allocation8 + $0xf0] sm:$0xff]
          %v2586 = vld [vmem:[#allocation8 + $0xf8] sm:$0xff]
          %v2587 = vld [vmem:[#allocation8 + $0x100] sm:$0xff]
          %v2588 = vld [vmem:[#allocation8 + $0x108] sm:$0xff]
          %v2589 = vld [vmem:[#allocation8 + $0x110] sm:$0xff]
          %v2590 = vld [vmem:[#allocation8 + $0x118] sm:$0xff]
          %v2591 = vld [vmem:[#allocation8 + $0x120] sm:$0xff]
          %v2592 = vld [vmem:[#allocation8 + $0x128] sm:$0xff]
          %v2593 = vld [vmem:[#allocation8 + $0x130] sm:$0xff]
          %v2594 = vld [vmem:[#allocation8 + $0x138] sm:$0xff]
          %v2595 = vld [vmem:[#allocation8 + $0x140] sm:$0xff]
          %v2596 = vld [vmem:[#allocation8 + $0x148] sm:$0xff]
          %v2597 = vld [vmem:[#allocation8 + $0x150] sm:$0xff]
          %v2598 = vld [vmem:[#allocation8 + $0x158] sm:$0xff]
          %v2599 = vld [vmem:[#allocation8 + $0x160] sm:$0xff]
          %v2600 = vld [vmem:[#allocation8 + $0x168] sm:$0xff]
          %v2601 = vld [vmem:[#allocation8 + $0x170] sm:$0xff]
          %v2602 = vld [vmem:[#allocation8 + $0x178] sm:$0xff]
          %v2603 = vld [vmem:[#allocation8 + $0x180] sm:$0xff]
          %v2604 = vld [vmem:[#allocation8 + $0x188] sm:$0xff]
          %v2605 = vld [vmem:[#allocation8 + $0x190] sm:$0xff]
          %v2606 = vld [vmem:[#allocation8 + $0x198] sm:$0xff]
          %v2607 = vld [vmem:[#allocation8 + $0x1a0] sm:$0xff]
          %v2608 = vld [vmem:[#allocation8 + $0x1a8] sm:$0xff]
          %v2609 = vld [vmem:[#allocation8 + $0x1b0] sm:$0xff]
          %v2610 = vld [vmem:[#allocation8 + $0x1b8] sm:$0xff]
          %v2611 = vld [vmem:[#allocation8 + $0x1c0] sm:$0xff]
          %v2612 = vld [vmem:[#allocation8 + $0x1c8] sm:$0xff]
          %v2613 = vld [vmem:[#allocation8 + $0x1d0] sm:$0xff]
          %v2614 = vld [vmem:[#allocation8 + $0x1d8] sm:$0xff]
          %v2615 = vld [vmem:[#allocation8 + $0x1e0] sm:$0xff]
          %v2616 = vld [vmem:[#allocation8 + $0x1e8] sm:$0xff]
          %v2617 = vld [vmem:[#allocation8 + $0x1f0] sm:$0xff]
          %v2618 = vld [vmem:[#allocation8 + $0x1f8] sm:$0xff]
          %v2619 = vld [vmem:[#allocation8 + $0x200] sm:$0xff]
          %v2620 = vld [vmem:[#allocation8 + $0x208] sm:$0xff]
          %v2621 = vld [vmem:[#allocation8 + $0x210] sm:$0xff]
          %v2622 = vld [vmem:[#allocation8 + $0x218] sm:$0xff]
          %v2623 = vld [vmem:[#allocation8 + $0x220] sm:$0xff]
          %v2624 = vld [vmem:[#allocation8 + $0x228] sm:$0xff]
          %v2625 = vld [vmem:[#allocation8 + $0x230] sm:$0xff]
          %v2626 = vld [vmem:[#allocation8 + $0x238] sm:$0xff]
          %v2627 = vld [vmem:[#allocation8 + $0x240] sm:$0xff]
          %v2628 = vld [vmem:[#allocation8 + $0x248] sm:$0xff]
          %v2629 = vld [vmem:[#allocation8 + $0x250] sm:$0xff]
          %v2630 = vld [vmem:[#allocation8 + $0x258] sm:$0xff]
          %v2631 = vld [vmem:[#allocation8 + $0x260] sm:$0xff]
          %v2632 = vld [vmem:[#allocation8 + $0x268] sm:$0xff]
          %v2633 = vld [vmem:[#allocation8 + $0x270] sm:$0xff]
          %v2634 = vld [vmem:[#allocation8 + $0x278] sm:$0xff]
          %v2635 = vld [vmem:[#allocation8 + $0x280] sm:$0xff]
          %v2636 = vld [vmem:[#allocation8 + $0x288] sm:$0xff]
          %v2637 = vld [vmem:[#allocation8 + $0x290] sm:$0xff]
          %v2638 = vld [vmem:[#allocation8 + $0x298] sm:$0xff]
          %v2639 = vld [vmem:[#allocation8 + $0x2a0] sm:$0xff]
          %v2640 = vld [vmem:[#allocation8 + $0x2a8] sm:$0xff]
          %v2641 = vld [vmem:[#allocation8 + $0x2b0] sm:$0xff]
          %v2642 = vld [vmem:[#allocation8 + $0x2b8] sm:$0xff]
          %v2643 = vld [vmem:[#allocation8 + $0x2c0] sm:$0xff]
          %v2644 = vld [vmem:[#allocation8 + $0x2c8] sm:$0xff]
          %v2645 = vld [vmem:[#allocation8 + $0x2d0] sm:$0xff]
          %v2646 = vld [vmem:[#allocation8 + $0x2d8] sm:$0xff]
          %v2647 = vld [vmem:[#allocation8 + $0x2e0] sm:$0xff]
          %v2648 = vld [vmem:[#allocation8 + $0x2e8] sm:$0xff]
          %v2649 = vld [vmem:[#allocation8 + $0x2f0] sm:$0xff]
          %v2650 = vld [vmem:[#allocation8 + $0x2f8] sm:$0xff]
          %v2651 = vld [vmem:[#allocation8 + $0x300] sm:$0xff]
          %v2652 = vld [vmem:[#allocation8 + $0x308] sm:$0xff]
          %v2653 = vld [vmem:[#allocation8 + $0x310] sm:$0xff]
          %v2654 = vld [vmem:[#allocation8 + $0x318] sm:$0xff]
          %v2655 = vld [vmem:[#allocation8 + $0x320] sm:$0xff]
          %v2656 = vld [vmem:[#allocation8 + $0x328] sm:$0xff]
          %v2657 = vld [vmem:[#allocation8 + $0x330] sm:$0xff]
          %v2658 = vld [vmem:[#allocation8 + $0x338] sm:$0xff]
          %v2659 = vld [vmem:[#allocation8 + $0x340] sm:$0xff]
          %v2660 = vld [vmem:[#allocation8 + $0x348] sm:$0xff]
          %v2661 = vld [vmem:[#allocation8 + $0x350] sm:$0xff]
          %v2662 = vld [vmem:[#allocation8 + $0x358] sm:$0xff]
          %v2663 = vld [vmem:[#allocation8 + $0x360] sm:$0xff]
          %v2664 = vld [vmem:[#allocation8 + $0x368] sm:$0xff]
          %v2665 = vld [vmem:[#allocation8 + $0x370] sm:$0xff]
          %v2666 = vld [vmem:[#allocation8 + $0x378] sm:$0xff]
          %v2667 = vld [vmem:[#allocation8 + $0x380] sm:$0xff]
          %v2668 = vld [vmem:[#allocation8 + $0x388] sm:$0xff]
          %v2669 = vld [vmem:[#allocation8 + $0x390] sm:$0xff]
          %v2670 = vld [vmem:[#allocation8 + $0x398] sm:$0xff]
          %v2671 = vld [vmem:[#allocation8 + $0x3a0] sm:$0xff]
          %v2672 = vld [vmem:[#allocation8 + $0x3a8] sm:$0xff]
          %v2673 = vld [vmem:[#allocation8 + $0x3b0] sm:$0xff]
          %v2674 = vld [vmem:[#allocation8 + $0x3b8] sm:$0xff]
          %v2675 = vld [vmem:[#allocation8 + $0x3c0] sm:$0xff]
          %v2676 = vld [vmem:[#allocation8 + $0x3c8] sm:$0xff]
          %v2677 = vld [vmem:[#allocation8 + $0x3d0] sm:$0xff]
          %v2678 = vld [vmem:[#allocation8 + $0x3d8] sm:$0xff]
          %v2679 = vld [vmem:[#allocation8 + $0x3e0] sm:$0xff]
          %v2680 = vld [vmem:[#allocation8 + $0x3e8] sm:$0xff]
          %v2681 = vld [vmem:[#allocation8 + $0x3f0] sm:$0xff]
          %v2682 = vld [vmem:[#allocation8 + $0x3f8] sm:$0xff]
          %v2683 = vld [vmem:[#allocation8 + $0x400] sm:$0xff]
          %v2684 = vld [vmem:[#allocation8 + $0x408] sm:$0xff]
          %v2685 = vld [vmem:[#allocation8 + $0x410] sm:$0xff]
          %v2686 = vld [vmem:[#allocation8 + $0x418] sm:$0xff]
          %v2687 = vld [vmem:[#allocation8 + $0x420] sm:$0xff]
          %v2688 = vld [vmem:[#allocation8 + $0x428] sm:$0xff]
          %v2689 = vld [vmem:[#allocation8 + $0x430] sm:$0xff]
          %v2690 = vld [vmem:[#allocation8 + $0x438] sm:$0xff]
          %v2691 = vld [vmem:[#allocation8 + $0x440] sm:$0xff]
          %v2692 = vld [vmem:[#allocation8 + $0x448] sm:$0xff]
          %v2693 = vld [vmem:[#allocation8 + $0x450] sm:$0xff]
          %v2694 = vld [vmem:[#allocation8 + $0x458] sm:$0xff]
          %v2695 = vld [vmem:[#allocation8 + $0x460] sm:$0xff]
          %v2696 = vld [vmem:[#allocation8 + $0x468] sm:$0xff]
          %v2697 = vld [vmem:[#allocation8 + $0x470] sm:$0xff]
          %v2698 = vld [vmem:[#allocation8 + $0x478] sm:$0xff]
          %v2699 = vld [vmem:[#allocation8 + $0x480] sm:$0xff]
          %v2700 = vld [vmem:[#allocation8 + $0x488] sm:$0xff]
          %v2701 = vld [vmem:[#allocation8 + $0x490] sm:$0xff]
          %v2702 = vld [vmem:[#allocation8 + $0x498] sm:$0xff]
          %v2703 = vld [vmem:[#allocation8 + $0x4a0] sm:$0xff]
          %v2704 = vld [vmem:[#allocation8 + $0x4a8] sm:$0xff]
          %v2705 = vld [vmem:[#allocation8 + $0x4b0] sm:$0xff]
          %v2706 = vld [vmem:[#allocation8 + $0x4b8] sm:$0xff]
          %v2707 = vld [vmem:[#allocation8 + $0x4c0] sm:$0xff]
          %v2708 = vld [vmem:[#allocation8 + $0x4c8] sm:$0xff]
          %v2709 = vld [vmem:[#allocation8 + $0x4d0] sm:$0xff]
          %v2710 = vld [vmem:[#allocation8 + $0x4d8] sm:$0xff]
          %v2711 = vld [vmem:[#allocation8 + $0x4e0] sm:$0xff]
          %v2712 = vld [vmem:[#allocation8 + $0x4e8] sm:$0xff]
          %v2713 = vld [vmem:[#allocation8 + $0x4f0] sm:$0xff]
          %v2714 = vld [vmem:[#allocation8 + $0x4f8] sm:$0xff]
          %v2715 = vld [vmem:[#allocation8 + $0x500] sm:$0xff]
          %v2716 = vld [vmem:[#allocation8 + $0x508] sm:$0xff]
          %v2717 = vld [vmem:[#allocation8 + $0x510] sm:$0xff]
          %v2718 = vld [vmem:[#allocation8 + $0x518] sm:$0xff]
          %v2719 = vld [vmem:[#allocation8 + $0x520] sm:$0xff]
          %v2720 = vld [vmem:[#allocation8 + $0x528] sm:$0xff]
          %v2721 = vld [vmem:[#allocation8 + $0x530] sm:$0xff]
          %v2722 = vld [vmem:[#allocation8 + $0x538] sm:$0xff]
          %v2723 = vld [vmem:[#allocation8 + $0x540] sm:$0xff]
          %v2724 = vld [vmem:[#allocation8 + $0x548] sm:$0xff]
          %v2725 = vld [vmem:[#allocation8 + $0x550] sm:$0xff]
          %v2726 = vld [vmem:[#allocation8 + $0x558] sm:$0xff]
          %v2727 = vld [vmem:[#allocation8 + $0x560] sm:$0xff]
          %v2728 = vld [vmem:[#allocation8 + $0x568] sm:$0xff]
          %v2729 = vld [vmem:[#allocation8 + $0x570] sm:$0xff]
          %v2730 = vld [vmem:[#allocation8 + $0x578] sm:$0xff]
          %v2731 = vld [vmem:[#allocation8 + $0x580] sm:$0xff]
          %v2732 = vld [vmem:[#allocation8 + $0x588] sm:$0xff]
          %v2733 = vld [vmem:[#allocation8 + $0x590] sm:$0xff]
          %v2734 = vld [vmem:[#allocation8 + $0x598] sm:$0xff]
          %v2735 = vld [vmem:[#allocation8 + $0x5a0] sm:$0xff]
          %v2736 = vld [vmem:[#allocation8 + $0x5a8] sm:$0xff]
          %v2737 = vld [vmem:[#allocation8 + $0x5b0] sm:$0xff]
          %v2738 = vld [vmem:[#allocation8 + $0x5b8] sm:$0xff]
          %v2739 = vld [vmem:[#allocation8 + $0x5c0] sm:$0xff]
          %v2740 = vld [vmem:[#allocation8 + $0x5c8] sm:$0xff]
          %v2741 = vld [vmem:[#allocation8 + $0x5d0] sm:$0xff]
          %v2742 = vld [vmem:[#allocation8 + $0x5d8] sm:$0xff]
          %v2743 = vld [vmem:[#allocation8 + $0x5e0] sm:$0xff]
          %v2744 = vld [vmem:[#allocation8 + $0x5e8] sm:$0xff]
          %v2745 = vld [vmem:[#allocation8 + $0x5f0] sm:$0xff]
          %v2746 = vld [vmem:[#allocation8 + $0x5f8] sm:$0xff]
          %v2747 = vld [vmem:[#allocation8 + $0x600] sm:$0xff]
          %v2748 = vld [vmem:[#allocation8 + $0x608] sm:$0xff]
          %v2749 = vld [vmem:[#allocation8 + $0x610] sm:$0xff]
          %v2750 = vld [vmem:[#allocation8 + $0x618] sm:$0xff]
          %v2751 = vld [vmem:[#allocation8 + $0x620] sm:$0xff]
          %v2752 = vld [vmem:[#allocation8 + $0x628] sm:$0xff]
          %v2753 = vld [vmem:[#allocation8 + $0x630] sm:$0xff]
          %v2754 = vld [vmem:[#allocation8 + $0x638] sm:$0xff]
          %v2755 = vld [vmem:[#allocation8 + $0x640] sm:$0xff]
          %v2756 = vld [vmem:[#allocation8 + $0x648] sm:$0xff]
          %v2757 = vld [vmem:[#allocation8 + $0x650] sm:$0xff]
          %v2758 = vld [vmem:[#allocation8 + $0x658] sm:$0xff]
          %v2759 = vld [vmem:[#allocation8 + $0x660] sm:$0xff]
          %v2760 = vld [vmem:[#allocation8 + $0x668] sm:$0xff]
          %v2761 = vld [vmem:[#allocation8 + $0x670] sm:$0xff]
          %v2762 = vld [vmem:[#allocation8 + $0x678] sm:$0xff]
          %v2763 = vld [vmem:[#allocation8 + $0x680] sm:$0xff]
          %v2764 = vld [vmem:[#allocation8 + $0x688] sm:$0xff]
          %v2765 = vld [vmem:[#allocation8 + $0x690] sm:$0xff]
          %v2766 = vld [vmem:[#allocation8 + $0x698] sm:$0xff]
          %v2767 = vld [vmem:[#allocation8 + $0x6a0] sm:$0xff]
          %v2768 = vld [vmem:[#allocation8 + $0x6a8] sm:$0xff]
          %v2769 = vld [vmem:[#allocation8 + $0x6b0] sm:$0xff]
          %v2770 = vld [vmem:[#allocation8 + $0x6b8] sm:$0xff]
          %v2771 = vld [vmem:[#allocation8 + $0x6c0] sm:$0xff]
          %v2772 = vld [vmem:[#allocation8 + $0x6c8] sm:$0xff]
          %v2773 = vld [vmem:[#allocation8 + $0x6d0] sm:$0xff]
          %v2774 = vld [vmem:[#allocation8 + $0x6d8] sm:$0xff]
          %v2775 = vld [vmem:[#allocation8 + $0x6e0] sm:$0xff]
          %v2776 = vld [vmem:[#allocation8 + $0x6e8] sm:$0xff]
          %v2777 = vld [vmem:[#allocation8 + $0x6f0] sm:$0xff]
          %v2778 = vld [vmem:[#allocation8 + $0x6f8] sm:$0xff]
          %v2779 = vld [vmem:[#allocation8 + $0x700] sm:$0xff]
          %v2780 = vld [vmem:[#allocation8 + $0x708] sm:$0xff]
          %v2781 = vld [vmem:[#allocation8 + $0x710] sm:$0xff]
          %v2782 = vld [vmem:[#allocation8 + $0x718] sm:$0xff]
          %v2783 = vld [vmem:[#allocation8 + $0x720] sm:$0xff]
          %v2784 = vld [vmem:[#allocation8 + $0x728] sm:$0xff]
          %v2785 = vld [vmem:[#allocation8 + $0x730] sm:$0xff]
          %v2786 = vld [vmem:[#allocation8 + $0x738] sm:$0xff]
          %v2787 = vld [vmem:[#allocation8 + $0x740] sm:$0xff]
          %v2788 = vld [vmem:[#allocation8 + $0x748] sm:$0xff]
          %v2789 = vld [vmem:[#allocation8 + $0x750] sm:$0xff]
          %v2790 = vld [vmem:[#allocation8 + $0x758] sm:$0xff]
          %v2791 = vld [vmem:[#allocation8 + $0x760] sm:$0xff]
          %v2792 = vld [vmem:[#allocation8 + $0x768] sm:$0xff]
          %v2793 = vld [vmem:[#allocation8 + $0x770] sm:$0xff]
          %v2794 = vld [vmem:[#allocation8 + $0x778] sm:$0xff]
          %v2795 = vld [vmem:[#allocation8 + $0x780] sm:$0xff]
          %v2796 = vld [vmem:[#allocation8 + $0x788] sm:$0xff]
          %v2797 = vld [vmem:[#allocation8 + $0x790] sm:$0xff]
          %v2798 = vld [vmem:[#allocation8 + $0x798] sm:$0xff]
          %v2799 = vld [vmem:[#allocation8 + $0x7a0] sm:$0xff]
          %v2800 = vld [vmem:[#allocation8 + $0x7a8] sm:$0xff]
          %v2801 = vld [vmem:[#allocation8 + $0x7b0] sm:$0xff]
          %v2802 = vld [vmem:[#allocation8 + $0x7b8] sm:$0xff]
          %v2803 = vld [vmem:[#allocation8 + $0x7c0] sm:$0xff]
          %v2804 = vld [vmem:[#allocation8 + $0x7c8] sm:$0xff]
          %v2805 = vld [vmem:[#allocation8 + $0x7d0] sm:$0xff]
          %v2806 = vld [vmem:[#allocation8 + $0x7d8] sm:$0xff]
          %v2807 = vld [vmem:[#allocation8 + $0x7e0] sm:$0xff]
          %v2808 = vld [vmem:[#allocation8 + $0x7e8] sm:$0xff]
          %v2809 = vld [vmem:[#allocation8 + $0x7f0] sm:$0xff]
          %v2810 = vld [vmem:[#allocation8 + $0x7f8] sm:$0xff]
          %v2811 = vld [vmem:[#allocation8 + $0x800] sm:$0xff]
          %v2812 = vld [vmem:[#allocation8 + $0x808] sm:$0xff]
          %v2813 = vld [vmem:[#allocation8 + $0x810] sm:$0xff]
          %v2814 = vld [vmem:[#allocation8 + $0x818] sm:$0xff]
          %v2815 = vld [vmem:[#allocation8 + $0x820] sm:$0xff]
          %v2816 = vld [vmem:[#allocation8 + $0x828] sm:$0xff]
          %v2817 = vld [vmem:[#allocation8 + $0x830] sm:$0xff]
          %v2818 = vld [vmem:[#allocation8 + $0x838] sm:$0xff]
          %v2819 = vld [vmem:[#allocation8 + $0x840] sm:$0xff]
          %v2820 = vld [vmem:[#allocation8 + $0x848] sm:$0xff]
          %v2821 = vld [vmem:[#allocation8 + $0x850] sm:$0xff]
          %v2822 = vld [vmem:[#allocation8 + $0x858] sm:$0xff]
          %v2823 = vld [vmem:[#allocation8 + $0x860] sm:$0xff]
          %v2824 = vld [vmem:[#allocation8 + $0x868] sm:$0xff]
          %v2825 = vld [vmem:[#allocation8 + $0x870] sm:$0xff]
          %v2826 = vld [vmem:[#allocation8 + $0x878] sm:$0xff]
          %v2827 = vld [vmem:[#allocation8 + $0x880] sm:$0xff]
          %v2828 = vld [vmem:[#allocation8 + $0x888] sm:$0xff]
          %v2829 = vld [vmem:[#allocation8 + $0x890] sm:$0xff]
          %v2830 = vld [vmem:[#allocation8 + $0x898] sm:$0xff]
          %v2831 = vld [vmem:[#allocation8 + $0x8a0] sm:$0xff]
          %v2832 = vld [vmem:[#allocation8 + $0x8a8] sm:$0xff]
          %v2833 = vld [vmem:[#allocation8 + $0x8b0] sm:$0xff]
          %v2834 = vld [vmem:[#allocation8 + $0x8b8] sm:$0xff]
          %v2835 = vld [vmem:[#allocation8 + $0x8c0] sm:$0xff]
          %v2836 = vld [vmem:[#allocation8 + $0x8c8] sm:$0xff]
          %v2837 = vld [vmem:[#allocation8 + $0x8d0] sm:$0xff]
          %v2838 = vld [vmem:[#allocation8 + $0x8d8] sm:$0xff]
          %v2839 = vld [vmem:[#allocation8 + $0x8e0] sm:$0xff]
          %v2840 = vld [vmem:[#allocation8 + $0x8e8] sm:$0xff]
          %v2841 = vld [vmem:[#allocation8 + $0x8f0] sm:$0xff]
          %v2842 = vld [vmem:[#allocation8 + $0x8f8] sm:$0xff]
          %v2843 = vld [vmem:[#allocation8 + $0x900] sm:$0xff]
          %v2844 = vld [vmem:[#allocation8 + $0x908] sm:$0xff]
          %v2845 = vld [vmem:[#allocation8 + $0x910] sm:$0xff]
          %v2846 = vld [vmem:[#allocation8 + $0x918] sm:$0xff]
          %v2847 = vld [vmem:[#allocation8 + $0x920] sm:$0xff]
          %v2848 = vld [vmem:[#allocation8 + $0x928] sm:$0xff]
          %v2849 = vld [vmem:[#allocation8 + $0x930] sm:$0xff]
          %v2850 = vld [vmem:[#allocation8 + $0x938] sm:$0xff]
          %v2851 = vld [vmem:[#allocation8 + $0x940] sm:$0xff]
          %v2852 = vld [vmem:[#allocation8 + $0x948] sm:$0xff]
          %v2853 = vld [vmem:[#allocation8 + $0x950] sm:$0xff]
          %v2854 = vld [vmem:[#allocation8 + $0x958] sm:$0xff]
          %v2855 = vld [vmem:[#allocation8 + $0x960] sm:$0xff]
          %v2856 = vld [vmem:[#allocation8 + $0x968] sm:$0xff]
          %v2857 = vld [vmem:[#allocation8 + $0x970] sm:$0xff]
          %v2858 = vld [vmem:[#allocation8 + $0x978] sm:$0xff]
          %v2859 = vld [vmem:[#allocation8 + $0x980] sm:$0xff]
          %v2860 = vld [vmem:[#allocation8 + $0x988] sm:$0xff]
          %v2861 = vld [vmem:[#allocation8 + $0x990] sm:$0xff]
          %v2862 = vld [vmem:[#allocation8 + $0x998] sm:$0xff]
          %v2863 = vld [vmem:[#allocation8 + $0x9a0] sm:$0xff]
          %v2864 = vld [vmem:[#allocation8 + $0x9a8] sm:$0xff]
          %v2865 = vld [vmem:[#allocation8 + $0x9b0] sm:$0xff]
          %v2866 = vld [vmem:[#allocation8 + $0x9b8] sm:$0xff]
          %v2867 = vld [vmem:[#allocation8 + $0x9c0] sm:$0xff]
          %v2868 = vld [vmem:[#allocation8 + $0x9c8] sm:$0xff]
          %v2869 = vld [vmem:[#allocation8 + $0x9d0] sm:$0xff]
          %v2870 = vld [vmem:[#allocation8 + $0x9d8] sm:$0xff]
          %v2871 = vld [vmem:[#allocation8 + $0x9e0] sm:$0xff]
          %v2872 = vld [vmem:[#allocation8 + $0x9e8] sm:$0xff]
          %v2873 = vld [vmem:[#allocation8 + $0x9f0] sm:$0xff]
          %v2874 = vld [vmem:[#allocation8 + $0x9f8] sm:$0xff]
          %v2875 = vld [vmem:[#allocation8 + $0xa00] sm:$0xff]
          %v2876 = vld [vmem:[#allocation8 + $0xa08] sm:$0xff]
          %v2877 = vld [vmem:[#allocation8 + $0xa10] sm:$0xff]
          %v2878 = vld [vmem:[#allocation8 + $0xa18] sm:$0xff]
          %v2879 = vld [vmem:[#allocation8 + $0xa20] sm:$0xff]
          %v2880 = vld [vmem:[#allocation8 + $0xa28] sm:$0xff]
          %v2881 = vld [vmem:[#allocation8 + $0xa30] sm:$0xff]
          %v2882 = vld [vmem:[#allocation8 + $0xa38] sm:$0xff]
          %v2883 = vld [vmem:[#allocation8 + $0xa40] sm:$0xff]
          %v2884 = vld [vmem:[#allocation8 + $0xa48] sm:$0xff]
          %v2885 = vld [vmem:[#allocation8 + $0xa50] sm:$0xff]
          %v2886 = vld [vmem:[#allocation8 + $0xa58] sm:$0xff]
          %v2887 = vld [vmem:[#allocation8 + $0xa60] sm:$0xff]
          %v2888 = vld [vmem:[#allocation8 + $0xa68] sm:$0xff]
          %v2889 = vld [vmem:[#allocation8 + $0xa70] sm:$0xff]
          %v2890 = vld [vmem:[#allocation8 + $0xa78] sm:$0xff]
          %v2891 = vld [vmem:[#allocation8 + $0xa80] sm:$0xff]
          %v2892 = vld [vmem:[#allocation8 + $0xa88] sm:$0xff]
          %v2893 = vld [vmem:[#allocation8 + $0xa90] sm:$0xff]
          %v2894 = vld [vmem:[#allocation8 + $0xa98] sm:$0xff]
          %v2895 = vld [vmem:[#allocation8 + $0xaa0] sm:$0xff]
          %v2896 = vld [vmem:[#allocation8 + $0xaa8] sm:$0xff]
          %v2897 = vld [vmem:[#allocation8 + $0xab0] sm:$0xff]
          %v2898 = vld [vmem:[#allocation8 + $0xab8] sm:$0xff]
          %v2899 = vld [vmem:[#allocation8 + $0xac0] sm:$0xff]
          %v2900 = vld [vmem:[#allocation8 + $0xac8] sm:$0xff]
          %v2901 = vld [vmem:[#allocation8 + $0xad0] sm:$0xff]
          %v2902 = vld [vmem:[#allocation8 + $0xad8] sm:$0xff]
          %v2903 = vld [vmem:[#allocation8 + $0xae0] sm:$0xff]
          %v2904 = vld [vmem:[#allocation8 + $0xae8] sm:$0xff]
          %v2905 = vld [vmem:[#allocation8 + $0xaf0] sm:$0xff]
          %v2906 = vld [vmem:[#allocation8 + $0xaf8] sm:$0xff]
          %v2907 = vld [vmem:[#allocation8 + $0xb00] sm:$0xff]
          %v2908 = vld [vmem:[#allocation8 + $0xb08] sm:$0xff]
          %v2909 = vld [vmem:[#allocation8 + $0xb10] sm:$0xff]
          %v2910 = vld [vmem:[#allocation8 + $0xb18] sm:$0xff]
          %v2911 = vld [vmem:[#allocation8 + $0xb20] sm:$0xff]
          %v2912 = vld [vmem:[#allocation8 + $0xb28] sm:$0xff]
          %v2913 = vld [vmem:[#allocation8 + $0xb30] sm:$0xff]
          %v2914 = vld [vmem:[#allocation8 + $0xb38] sm:$0xff]
          %v2915 = vld [vmem:[#allocation8 + $0xb40] sm:$0xff]
          %v2916 = vld [vmem:[#allocation8 + $0xb48] sm:$0xff]
          %v2917 = vld [vmem:[#allocation8 + $0xb50] sm:$0xff]
          %v2918 = vld [vmem:[#allocation8 + $0xb58] sm:$0xff]
          %v2919 = vld [vmem:[#allocation8 + $0xb60] sm:$0xff]
          %v2920 = vld [vmem:[#allocation8 + $0xb68] sm:$0xff]
          %v2921 = vld [vmem:[#allocation8 + $0xb70] sm:$0xff]
          %v2922 = vld [vmem:[#allocation8 + $0xb78] sm:$0xff]
          %v2923 = vld [vmem:[#allocation8 + $0xb80] sm:$0xff]
          %v2924 = vld [vmem:[#allocation8 + $0xb88] sm:$0xff]
          %v2925 = vld [vmem:[#allocation8 + $0xb90] sm:$0xff]
          %v2926 = vld [vmem:[#allocation8 + $0xb98] sm:$0xff]
          %v2927 = vld [vmem:[#allocation8 + $0xba0] sm:$0xff]
          %v2928 = vld [vmem:[#allocation8 + $0xba8] sm:$0xff]
          %v2929 = vld [vmem:[#allocation8 + $0xbb0] sm:$0xff]
          %v2930 = vld [vmem:[#allocation8 + $0xbb8] sm:$0xff]
          %v2931 = vld [vmem:[#allocation8 + $0xbc0] sm:$0xff]
          %v2932 = vld [vmem:[#allocation8 + $0xbc8] sm:$0xff]
          %v2933 = vld [vmem:[#allocation8 + $0xbd0] sm:$0xff]
          %v2934 = vld [vmem:[#allocation8 + $0xbd8] sm:$0xff]
          %v2935 = vld [vmem:[#allocation8 + $0xbe0] sm:$0xff]
          %v2936 = vld [vmem:[#allocation8 + $0xbe8] sm:$0xff]
          %v2937 = vld [vmem:[#allocation8 + $0xbf0] sm:$0xff]
          %v2938 = vld [vmem:[#allocation8 + $0xbf8] sm:$0xff]
          %v2939 = vld [vmem:[#allocation8 + $0xc00] sm:$0xff]
          %v2940 = vld [vmem:[#allocation8 + $0xc08] sm:$0xff]
          %v2941 = vld [vmem:[#allocation8 + $0xc10] sm:$0xff]
          %v2942 = vld [vmem:[#allocation8 + $0xc18] sm:$0xff]
          %v2943 = vld [vmem:[#allocation8 + $0xc20] sm:$0xff]
          %v2944 = vld [vmem:[#allocation8 + $0xc28] sm:$0xff]
          %v2945 = vld [vmem:[#allocation8 + $0xc30] sm:$0xff]
          %v2946 = vld [vmem:[#allocation8 + $0xc38] sm:$0xff]
          %v2947 = vld [vmem:[#allocation8 + $0xc40] sm:$0xff]
          %v2948 = vld [vmem:[#allocation8 + $0xc48] sm:$0xff]
          %v2949 = vld [vmem:[#allocation8 + $0xc50] sm:$0xff]
          %v2950 = vld [vmem:[#allocation8 + $0xc58] sm:$0xff]
          %v2951 = vld [vmem:[#allocation8 + $0xc60] sm:$0xff]
          %v2952 = vld [vmem:[#allocation8 + $0xc68] sm:$0xff]
          %v2953 = vld [vmem:[#allocation8 + $0xc70] sm:$0xff]
          %v2954 = vld [vmem:[#allocation8 + $0xc78] sm:$0xff]
          %v2955 = vld [vmem:[#allocation8 + $0xc80] sm:$0xff]
          %v2956 = vld [vmem:[#allocation8 + $0xc88] sm:$0xff]
          %v2957 = vld [vmem:[#allocation8 + $0xc90] sm:$0xff]
          %v2958 = vld [vmem:[#allocation8 + $0xc98] sm:$0xff]
          %v2959 = vld [vmem:[#allocation8 + $0xca0] sm:$0xff]
          %v2960 = vld [vmem:[#allocation8 + $0xca8] sm:$0xff]
          %v2961 = vld [vmem:[#allocation8 + $0xcb0] sm:$0xff]
          %v2962 = vld [vmem:[#allocation8 + $0xcb8] sm:$0xff]
          %v2963 = vld [vmem:[#allocation8 + $0xcc0] sm:$0xff]
          %v2964 = vld [vmem:[#allocation8 + $0xcc8] sm:$0xff]
          %v2965 = vld [vmem:[#allocation8 + $0xcd0] sm:$0xff]
          %v2966 = vld [vmem:[#allocation8 + $0xcd8] sm:$0xff]
          %v2967 = vld [vmem:[#allocation8 + $0xce0] sm:$0xff]
          %v2968 = vld [vmem:[#allocation8 + $0xce8] sm:$0xff]
          %v2969 = vld [vmem:[#allocation8 + $0xcf0] sm:$0xff]
          %v2970 = vld [vmem:[#allocation8 + $0xcf8] sm:$0xff]
          %v2971 = vld [vmem:[#allocation8 + $0xd00] sm:$0xff]
          %v2972 = vld [vmem:[#allocation8 + $0xd08] sm:$0xff]
          %v2973 = vld [vmem:[#allocation8 + $0xd10] sm:$0xff]
          %v2974 = vld [vmem:[#allocation8 + $0xd18] sm:$0xff]
          %v2975 = vld [vmem:[#allocation8 + $0xd20] sm:$0xff]
          %v2976 = vld [vmem:[#allocation8 + $0xd28] sm:$0xff]
          %v2977 = vld [vmem:[#allocation8 + $0xd30] sm:$0xff]
          %v2978 = vld [vmem:[#allocation8 + $0xd38] sm:$0xff]
          %v2979 = vld [vmem:[#allocation8 + $0xd40] sm:$0xff]
          %v2980 = vld [vmem:[#allocation8 + $0xd48] sm:$0xff]
          %v2981 = vld [vmem:[#allocation8 + $0xd50] sm:$0xff]
          %v2982 = vld [vmem:[#allocation8 + $0xd58] sm:$0xff]
          %v2983 = vld [vmem:[#allocation8 + $0xd60] sm:$0xff]
          %v2984 = vld [vmem:[#allocation8 + $0xd68] sm:$0xff]
          %v2985 = vld [vmem:[#allocation8 + $0xd70] sm:$0xff]
          %v2986 = vld [vmem:[#allocation8 + $0xd78] sm:$0xff]
          %v2987 = vld [vmem:[#allocation8 + $0xd80] sm:$0xff]
          %v2988 = vld [vmem:[#allocation8 + $0xd88] sm:$0xff]
          %v2989 = vld [vmem:[#allocation8 + $0xd90] sm:$0xff]
          %v2990 = vld [vmem:[#allocation8 + $0xd98] sm:$0xff]
          %v2991 = vld [vmem:[#allocation8 + $0xda0] sm:$0xff]
          %v2992 = vld [vmem:[#allocation8 + $0xda8] sm:$0xff]
          %v2993 = vld [vmem:[#allocation8 + $0xdb0] sm:$0xff]
          %v2994 = vld [vmem:[#allocation8 + $0xdb8] sm:$0xff]
          %v2995 = vld [vmem:[#allocation8 + $0xdc0] sm:$0xff]
          %v2996 = vld [vmem:[#allocation8 + $0xdc8] sm:$0xff]
          %v2997 = vld [vmem:[#allocation8 + $0xdd0] sm:$0xff]
          %v2998 = vld [vmem:[#allocation8 + $0xdd8] sm:$0xff]
          %v2999 = vld [vmem:[#allocation8 + $0xde0] sm:$0xff]
          %v3000 = vld [vmem:[#allocation8 + $0xde8] sm:$0xff]
          %v3001 = vld [vmem:[#allocation8 + $0xdf0] sm:$0xff]
          %v3002 = vld [vmem:[#allocation8 + $0xdf8] sm:$0xff]
          %v3003 = vld [vmem:[#allocation8 + $0xe00] sm:$0xff]
          %v3004 = vld [vmem:[#allocation8 + $0xe08] sm:$0xff]
          %v3005 = vld [vmem:[#allocation8 + $0xe10] sm:$0xff]
          %v3006 = vld [vmem:[#allocation8 + $0xe18] sm:$0xff]
          %v3007 = vld [vmem:[#allocation8 + $0xe20] sm:$0xff]
          %v3008 = vld [vmem:[#allocation8 + $0xe28] sm:$0xff]
          %v3009 = vld [vmem:[#allocation8 + $0xe30] sm:$0xff]
          %v3010 = vld [vmem:[#allocation8 + $0xe38] sm:$0xff]
          %v3011 = vld [vmem:[#allocation8 + $0xe40] sm:$0xff]
          %v3012 = vld [vmem:[#allocation8 + $0xe48] sm:$0xff]
          %v3013 = vld [vmem:[#allocation8 + $0xe50] sm:$0xff]
          %v3014 = vld [vmem:[#allocation8 + $0xe58] sm:$0xff]
          %v3015 = vld [vmem:[#allocation8 + $0xe60] sm:$0xff]
          %v3016 = vld [vmem:[#allocation8 + $0xe68] sm:$0xff]
          %v3017 = vld [vmem:[#allocation8 + $0xe70] sm:$0xff]
          %v3018 = vld [vmem:[#allocation8 + $0xe78] sm:$0xff]
          %v3019 = vld [vmem:[#allocation8 + $0xe80] sm:$0xff]
          %v3020 = vld [vmem:[#allocation8 + $0xe88] sm:$0xff]
          %v3021 = vld [vmem:[#allocation8 + $0xe90] sm:$0xff]
          %v3022 = vld [vmem:[#allocation8 + $0xe98] sm:$0xff]
          %v3023 = vld [vmem:[#allocation8 + $0xea0] sm:$0xff]
          %v3024 = vld [vmem:[#allocation8 + $0xea8] sm:$0xff]
          %v3025 = vld [vmem:[#allocation8 + $0xeb0] sm:$0xff]
          %v3026 = vld [vmem:[#allocation8 + $0xeb8] sm:$0xff]
          %v3027 = vld [vmem:[#allocation8 + $0xec0] sm:$0xff]
          %v3028 = vld [vmem:[#allocation8 + $0xec8] sm:$0xff]
          %v3029 = vld [vmem:[#allocation8 + $0xed0] sm:$0xff]
          %v3030 = vld [vmem:[#allocation8 + $0xed8] sm:$0xff]
          %v3031 = vld [vmem:[#allocation8 + $0xee0] sm:$0xff]
          %v3032 = vld [vmem:[#allocation8 + $0xee8] sm:$0xff]
          %v3033 = vld [vmem:[#allocation8 + $0xef0] sm:$0xff]
          %v3034 = vld [vmem:[#allocation8 + $0xef8] sm:$0xff]
          %v3035 = vld [vmem:[#allocation8 + $0xf00] sm:$0xff]
          %v3036 = vld [vmem:[#allocation8 + $0xf08] sm:$0xff]
          %v3037 = vld [vmem:[#allocation8 + $0xf10] sm:$0xff]
          %v3038 = vld [vmem:[#allocation8 + $0xf18] sm:$0xff]
          %v3039 = vld [vmem:[#allocation8 + $0xf20] sm:$0xff]
          %v3040 = vld [vmem:[#allocation8 + $0xf28] sm:$0xff]
          %v3041 = vld [vmem:[#allocation8 + $0xf30] sm:$0xff]
          %v3042 = vld [vmem:[#allocation8 + $0xf38] sm:$0xff]
          %v3043 = vld [vmem:[#allocation8 + $0xf40] sm:$0xff]
          %v3044 = vld [vmem:[#allocation8 + $0xf48] sm:$0xff]
          %v3045 = vld [vmem:[#allocation8 + $0xf50] sm:$0xff]
          %v3046 = vld [vmem:[#allocation8 + $0xf58] sm:$0xff]
          %v3047 = vld [vmem:[#allocation8 + $0xf60] sm:$0xff]
          %v3048 = vld [vmem:[#allocation8 + $0xf68] sm:$0xff]
          %v3049 = vld [vmem:[#allocation8 + $0xf70] sm:$0xff]
          %v3050 = vld [vmem:[#allocation8 + $0xf78] sm:$0xff]
          %v3051 = vld [vmem:[#allocation8 + $0xf80] sm:$0xff]
          %v3052 = vld [vmem:[#allocation8 + $0xf88] sm:$0xff]
          %v3053 = vld [vmem:[#allocation8 + $0xf90] sm:$0xff]
          %v3054 = vld [vmem:[#allocation8 + $0xf98] sm:$0xff]
          %v3055 = vld [vmem:[#allocation8 + $0xfa0] sm:$0xff]
          %v3056 = vld [vmem:[#allocation8 + $0xfa8] sm:$0xff]
          %v3057 = vld [vmem:[#allocation8 + $0xfb0] sm:$0xff]
          %v3058 = vld [vmem:[#allocation8 + $0xfb8] sm:$0xff]
          %v3059 = vld [vmem:[#allocation8 + $0xfc0] sm:$0xff]
          %v3060 = vld [vmem:[#allocation8 + $0xfc8] sm:$0xff]
          %v3061 = vld [vmem:[#allocation8 + $0xfd0] sm:$0xff]
          %v3062 = vld [vmem:[#allocation8 + $0xfd8] sm:$0xff]
          %v3063 = vld [vmem:[#allocation8 + $0xfe0] sm:$0xff]
          %v3064 = vld [vmem:[#allocation8 + $0xfe8] sm:$0xff]
          %v3065 = vld [vmem:[#allocation8 + $0xff0] sm:$0xff]
          %v3066 = vld [vmem:[#allocation8 + $0xff8] sm:$0xff]
          %v3067 = vld [vmem:[#allocation9] sm:$0xf]
          %v3580 = vunpack.c.l.b16 %v2555
          %v3581 = vunpack.c.h.b16 %v2555
          %v3582 = vunpack.c.l.b16 %v2556
          %v3583 = vunpack.c.h.b16 %v2556
          %v3584 = vunpack.c.l.b16 %v2557
          %v3585 = vunpack.c.h.b16 %v2557
          %v3586 = vunpack.c.l.b16 %v2558
          %v3587 = vunpack.c.h.b16 %v2558
          %v3588 = vunpack.c.l.b16 %v2559
          %v3589 = vunpack.c.h.b16 %v2559
          %v3590 = vunpack.c.l.b16 %v2560
          %v3591 = vunpack.c.h.b16 %v2560
          %v3592 = vunpack.c.l.b16 %v2561
          %v3593 = vunpack.c.h.b16 %v2561
          %v3594 = vunpack.c.l.b16 %v2562
          %v3595 = vunpack.c.h.b16 %v2562
          %v3596 = vunpack.c.l.b16 %v2563
          %v3597 = vunpack.c.h.b16 %v2563
          %v3598 = vunpack.c.l.b16 %v2564
          %v3599 = vunpack.c.h.b16 %v2564
          %v3600 = vunpack.c.l.b16 %v2565
          %v3601 = vunpack.c.h.b16 %v2565
          %v3602 = vunpack.c.l.b16 %v2566
          %v3603 = vunpack.c.h.b16 %v2566
          %v3604 = vunpack.c.l.b16 %v2567
          %v3605 = vunpack.c.h.b16 %v2567
          %v3606 = vunpack.c.l.b16 %v2568
          %v3607 = vunpack.c.h.b16 %v2568
          %v3608 = vunpack.c.l.b16 %v2569
          %v3609 = vunpack.c.h.b16 %v2569
          %v3610 = vunpack.c.l.b16 %v2570
          %v3611 = vunpack.c.h.b16 %v2570
          %v3612 = vunpack.c.l.b16 %v2571
          %v3613 = vunpack.c.h.b16 %v2571
          %v3614 = vunpack.c.l.b16 %v2572
          %v3615 = vunpack.c.h.b16 %v2572
          %v3616 = vunpack.c.l.b16 %v2573
          %v3617 = vunpack.c.h.b16 %v2573
          %v3618 = vunpack.c.l.b16 %v2574
          %v3619 = vunpack.c.h.b16 %v2574
          %v3620 = vunpack.c.l.b16 %v2575
          %v3621 = vunpack.c.h.b16 %v2575
          %v3622 = vunpack.c.l.b16 %v2576
          %v3623 = vunpack.c.h.b16 %v2576
          %v3624 = vunpack.c.l.b16 %v2577
          %v3625 = vunpack.c.h.b16 %v2577
          %v3626 = vunpack.c.l.b16 %v2578
          %v3627 = vunpack.c.h.b16 %v2578
          %v3628 = vunpack.c.l.b16 %v2579
          %v3629 = vunpack.c.h.b16 %v2579
          %v3630 = vunpack.c.l.b16 %v2580
          %v3631 = vunpack.c.h.b16 %v2580
          %v3632 = vunpack.c.l.b16 %v2581
          %v3633 = vunpack.c.h.b16 %v2581
          %v3634 = vunpack.c.l.b16 %v2582
          %v3635 = vunpack.c.h.b16 %v2582
          %v3636 = vunpack.c.l.b16 %v2583
          %v3637 = vunpack.c.h.b16 %v2583
          %v3638 = vunpack.c.l.b16 %v2584
          %v3639 = vunpack.c.h.b16 %v2584
          %v3640 = vunpack.c.l.b16 %v2585
          %v3641 = vunpack.c.h.b16 %v2585
          %v3642 = vunpack.c.l.b16 %v2586
          %v3643 = vunpack.c.h.b16 %v2586
          %v3644 = vunpack.c.l.b16 %v2587
          %v3645 = vunpack.c.h.b16 %v2587
          %v3646 = vunpack.c.l.b16 %v2588
          %v3647 = vunpack.c.h.b16 %v2588
          %v3648 = vunpack.c.l.b16 %v2589
          %v3649 = vunpack.c.h.b16 %v2589
          %v3650 = vunpack.c.l.b16 %v2590
          %v3651 = vunpack.c.h.b16 %v2590
          %v3652 = vunpack.c.l.b16 %v2591
          %v3653 = vunpack.c.h.b16 %v2591
          %v3654 = vunpack.c.l.b16 %v2592
          %v3655 = vunpack.c.h.b16 %v2592
          %v3656 = vunpack.c.l.b16 %v2593
          %v3657 = vunpack.c.h.b16 %v2593
          %v3658 = vunpack.c.l.b16 %v2594
          %v3659 = vunpack.c.h.b16 %v2594
          %v3660 = vunpack.c.l.b16 %v2595
          %v3661 = vunpack.c.h.b16 %v2595
          %v3662 = vunpack.c.l.b16 %v2596
          %v3663 = vunpack.c.h.b16 %v2596
          %v3664 = vunpack.c.l.b16 %v2597
          %v3665 = vunpack.c.h.b16 %v2597
          %v3666 = vunpack.c.l.b16 %v2598
          %v3667 = vunpack.c.h.b16 %v2598
          %v3668 = vunpack.c.l.b16 %v2599
          %v3669 = vunpack.c.h.b16 %v2599
          %v3670 = vunpack.c.l.b16 %v2600
          %v3671 = vunpack.c.h.b16 %v2600
          %v3672 = vunpack.c.l.b16 %v2601
          %v3673 = vunpack.c.h.b16 %v2601
          %v3674 = vunpack.c.l.b16 %v2602
          %v3675 = vunpack.c.h.b16 %v2602
          %v3676 = vunpack.c.l.b16 %v2603
          %v3677 = vunpack.c.h.b16 %v2603
          %v3678 = vunpack.c.l.b16 %v2604
          %v3679 = vunpack.c.h.b16 %v2604
          %v3680 = vunpack.c.l.b16 %v2605
          %v3681 = vunpack.c.h.b16 %v2605
          %v3682 = vunpack.c.l.b16 %v2606
          %v3683 = vunpack.c.h.b16 %v2606
          %v3684 = vunpack.c.l.b16 %v2607
          %v3685 = vunpack.c.h.b16 %v2607
          %v3686 = vunpack.c.l.b16 %v2608
          %v3687 = vunpack.c.h.b16 %v2608
          %v3688 = vunpack.c.l.b16 %v2609
          %v3689 = vunpack.c.h.b16 %v2609
          %v3690 = vunpack.c.l.b16 %v2610
          %v3691 = vunpack.c.h.b16 %v2610
          %v3692 = vunpack.c.l.b16 %v2611
          %v3693 = vunpack.c.h.b16 %v2611
          %v3694 = vunpack.c.l.b16 %v2612
          %v3695 = vunpack.c.h.b16 %v2612
          %v3696 = vunpack.c.l.b16 %v2613
          %v3697 = vunpack.c.h.b16 %v2613
          %v3698 = vunpack.c.l.b16 %v2614
          %v3699 = vunpack.c.h.b16 %v2614
          %v3700 = vunpack.c.l.b16 %v2615
          %v3701 = vunpack.c.h.b16 %v2615
          %v3702 = vunpack.c.l.b16 %v2616
          %v3703 = vunpack.c.h.b16 %v2616
          %v3704 = vunpack.c.l.b16 %v2617
          %v3705 = vunpack.c.h.b16 %v2617
          %v3706 = vunpack.c.l.b16 %v2618
          %v3707 = vunpack.c.h.b16 %v2618
          %v3708 = vunpack.c.l.b16 %v2619
          %v3709 = vunpack.c.h.b16 %v2619
          %v3710 = vunpack.c.l.b16 %v2620
          %v3711 = vunpack.c.h.b16 %v2620
          %v3712 = vunpack.c.l.b16 %v2621
          %v3713 = vunpack.c.h.b16 %v2621
          %v3714 = vunpack.c.l.b16 %v2622
          %v3715 = vunpack.c.h.b16 %v2622
          %v3716 = vunpack.c.l.b16 %v2623
          %v3717 = vunpack.c.h.b16 %v2623
          %v3718 = vunpack.c.l.b16 %v2624
          %v3719 = vunpack.c.h.b16 %v2624
          %v3720 = vunpack.c.l.b16 %v2625
          %v3721 = vunpack.c.h.b16 %v2625
          %v3722 = vunpack.c.l.b16 %v2626
          %v3723 = vunpack.c.h.b16 %v2626
          %v3724 = vunpack.c.l.b16 %v2627
          %v3725 = vunpack.c.h.b16 %v2627
          %v3726 = vunpack.c.l.b16 %v2628
          %v3727 = vunpack.c.h.b16 %v2628
          %v3728 = vunpack.c.l.b16 %v2629
          %v3729 = vunpack.c.h.b16 %v2629
          %v3730 = vunpack.c.l.b16 %v2630
          %v3731 = vunpack.c.h.b16 %v2630
          %v3732 = vunpack.c.l.b16 %v2631
          %v3733 = vunpack.c.h.b16 %v2631
          %v3734 = vunpack.c.l.b16 %v2632
          %v3735 = vunpack.c.h.b16 %v2632
          %v3736 = vunpack.c.l.b16 %v2633
          %v3737 = vunpack.c.h.b16 %v2633
          %v3738 = vunpack.c.l.b16 %v2634
          %v3739 = vunpack.c.h.b16 %v2634
          %v3740 = vunpack.c.l.b16 %v2635
          %v3741 = vunpack.c.h.b16 %v2635
          %v3742 = vunpack.c.l.b16 %v2636
          %v3743 = vunpack.c.h.b16 %v2636
          %v3744 = vunpack.c.l.b16 %v2637
          %v3745 = vunpack.c.h.b16 %v2637
          %v3746 = vunpack.c.l.b16 %v2638
          %v3747 = vunpack.c.h.b16 %v2638
          %v3748 = vunpack.c.l.b16 %v2639
          %v3749 = vunpack.c.h.b16 %v2639
          %v3750 = vunpack.c.l.b16 %v2640
          %v3751 = vunpack.c.h.b16 %v2640
          %v3752 = vunpack.c.l.b16 %v2641
          %v3753 = vunpack.c.h.b16 %v2641
          %v3754 = vunpack.c.l.b16 %v2642
          %v3755 = vunpack.c.h.b16 %v2642
          %v3756 = vunpack.c.l.b16 %v2643
          %v3757 = vunpack.c.h.b16 %v2643
          %v3758 = vunpack.c.l.b16 %v2644
          %v3759 = vunpack.c.h.b16 %v2644
          %v3760 = vunpack.c.l.b16 %v2645
          %v3761 = vunpack.c.h.b16 %v2645
          %v3762 = vunpack.c.l.b16 %v2646
          %v3763 = vunpack.c.h.b16 %v2646
          %v3764 = vunpack.c.l.b16 %v2647
          %v3765 = vunpack.c.h.b16 %v2647
          %v3766 = vunpack.c.l.b16 %v2648
          %v3767 = vunpack.c.h.b16 %v2648
          %v3768 = vunpack.c.l.b16 %v2649
          %v3769 = vunpack.c.h.b16 %v2649
          %v3770 = vunpack.c.l.b16 %v2650
          %v3771 = vunpack.c.h.b16 %v2650
          %v3772 = vunpack.c.l.b16 %v2651
          %v3773 = vunpack.c.h.b16 %v2651
          %v3774 = vunpack.c.l.b16 %v2652
          %v3775 = vunpack.c.h.b16 %v2652
          %v3776 = vunpack.c.l.b16 %v2653
          %v3777 = vunpack.c.h.b16 %v2653
          %v3778 = vunpack.c.l.b16 %v2654
          %v3779 = vunpack.c.h.b16 %v2654
          %v3780 = vunpack.c.l.b16 %v2655
          %v3781 = vunpack.c.h.b16 %v2655
          %v3782 = vunpack.c.l.b16 %v2656
          %v3783 = vunpack.c.h.b16 %v2656
          %v3784 = vunpack.c.l.b16 %v2657
          %v3785 = vunpack.c.h.b16 %v2657
          %v3786 = vunpack.c.l.b16 %v2658
          %v3787 = vunpack.c.h.b16 %v2658
          %v3788 = vunpack.c.l.b16 %v2659
          %v3789 = vunpack.c.h.b16 %v2659
          %v3790 = vunpack.c.l.b16 %v2660
          %v3791 = vunpack.c.h.b16 %v2660
          %v3792 = vunpack.c.l.b16 %v2661
          %v3793 = vunpack.c.h.b16 %v2661
          %v3794 = vunpack.c.l.b16 %v2662
          %v3795 = vunpack.c.h.b16 %v2662
          %v3796 = vunpack.c.l.b16 %v2663
          %v3797 = vunpack.c.h.b16 %v2663
          %v3798 = vunpack.c.l.b16 %v2664
          %v3799 = vunpack.c.h.b16 %v2664
          %v3800 = vunpack.c.l.b16 %v2665
          %v3801 = vunpack.c.h.b16 %v2665
          %v3802 = vunpack.c.l.b16 %v2666
          %v3803 = vunpack.c.h.b16 %v2666
          %v3804 = vunpack.c.l.b16 %v2667
          %v3805 = vunpack.c.h.b16 %v2667
          %v3806 = vunpack.c.l.b16 %v2668
          %v3807 = vunpack.c.h.b16 %v2668
          %v3808 = vunpack.c.l.b16 %v2669
          %v3809 = vunpack.c.h.b16 %v2669
          %v3810 = vunpack.c.l.b16 %v2670
          %v3811 = vunpack.c.h.b16 %v2670
          %v3812 = vunpack.c.l.b16 %v2671
          %v3813 = vunpack.c.h.b16 %v2671
          %v3814 = vunpack.c.l.b16 %v2672
          %v3815 = vunpack.c.h.b16 %v2672
          %v3816 = vunpack.c.l.b16 %v2673
          %v3817 = vunpack.c.h.b16 %v2673
          %v3818 = vunpack.c.l.b16 %v2674
          %v3819 = vunpack.c.h.b16 %v2674
          %v3820 = vunpack.c.l.b16 %v2675
          %v3821 = vunpack.c.h.b16 %v2675
          %v3822 = vunpack.c.l.b16 %v2676
          %v3823 = vunpack.c.h.b16 %v2676
          %v3824 = vunpack.c.l.b16 %v2677
          %v3825 = vunpack.c.h.b16 %v2677
          %v3826 = vunpack.c.l.b16 %v2678
          %v3827 = vunpack.c.h.b16 %v2678
          %v3828 = vunpack.c.l.b16 %v2679
          %v3829 = vunpack.c.h.b16 %v2679
          %v3830 = vunpack.c.l.b16 %v2680
          %v3831 = vunpack.c.h.b16 %v2680
          %v3832 = vunpack.c.l.b16 %v2681
          %v3833 = vunpack.c.h.b16 %v2681
          %v3834 = vunpack.c.l.b16 %v2682
          %v3835 = vunpack.c.h.b16 %v2682
          %v3836 = vunpack.c.l.b16 %v2683
          %v3837 = vunpack.c.h.b16 %v2683
          %v3838 = vunpack.c.l.b16 %v2684
          %v3839 = vunpack.c.h.b16 %v2684
          %v3840 = vunpack.c.l.b16 %v2685
          %v3841 = vunpack.c.h.b16 %v2685
          %v3842 = vunpack.c.l.b16 %v2686
          %v3843 = vunpack.c.h.b16 %v2686
          %v3844 = vunpack.c.l.b16 %v2687
          %v3845 = vunpack.c.h.b16 %v2687
          %v3846 = vunpack.c.l.b16 %v2688
          %v3847 = vunpack.c.h.b16 %v2688
          %v3848 = vunpack.c.l.b16 %v2689
          %v3849 = vunpack.c.h.b16 %v2689
          %v3850 = vunpack.c.l.b16 %v2690
          %v3851 = vunpack.c.h.b16 %v2690
          %v3852 = vunpack.c.l.b16 %v2691
          %v3853 = vunpack.c.h.b16 %v2691
          %v3854 = vunpack.c.l.b16 %v2692
          %v3855 = vunpack.c.h.b16 %v2692
          %v3856 = vunpack.c.l.b16 %v2693
          %v3857 = vunpack.c.h.b16 %v2693
          %v3858 = vunpack.c.l.b16 %v2694
          %v3859 = vunpack.c.h.b16 %v2694
          %v3860 = vunpack.c.l.b16 %v2695
          %v3861 = vunpack.c.h.b16 %v2695
          %v3862 = vunpack.c.l.b16 %v2696
          %v3863 = vunpack.c.h.b16 %v2696
          %v3864 = vunpack.c.l.b16 %v2697
          %v3865 = vunpack.c.h.b16 %v2697
          %v3866 = vunpack.c.l.b16 %v2698
          %v3867 = vunpack.c.h.b16 %v2698
          %v3868 = vunpack.c.l.b16 %v2699
          %v3869 = vunpack.c.h.b16 %v2699
          %v3870 = vunpack.c.l.b16 %v2700
          %v3871 = vunpack.c.h.b16 %v2700
          %v3872 = vunpack.c.l.b16 %v2701
          %v3873 = vunpack.c.h.b16 %v2701
          %v3874 = vunpack.c.l.b16 %v2702
          %v3875 = vunpack.c.h.b16 %v2702
          %v3876 = vunpack.c.l.b16 %v2703
          %v3877 = vunpack.c.h.b16 %v2703
          %v3878 = vunpack.c.l.b16 %v2704
          %v3879 = vunpack.c.h.b16 %v2704
          %v3880 = vunpack.c.l.b16 %v2705
          %v3881 = vunpack.c.h.b16 %v2705
          %v3882 = vunpack.c.l.b16 %v2706
          %v3883 = vunpack.c.h.b16 %v2706
          %v3884 = vunpack.c.l.b16 %v2707
          %v3885 = vunpack.c.h.b16 %v2707
          %v3886 = vunpack.c.l.b16 %v2708
          %v3887 = vunpack.c.h.b16 %v2708
          %v3888 = vunpack.c.l.b16 %v2709
          %v3889 = vunpack.c.h.b16 %v2709
          %v3890 = vunpack.c.l.b16 %v2710
          %v3891 = vunpack.c.h.b16 %v2710
          %v3892 = vunpack.c.l.b16 %v2711
          %v3893 = vunpack.c.h.b16 %v2711
          %v3894 = vunpack.c.l.b16 %v2712
          %v3895 = vunpack.c.h.b16 %v2712
          %v3896 = vunpack.c.l.b16 %v2713
          %v3897 = vunpack.c.h.b16 %v2713
          %v3898 = vunpack.c.l.b16 %v2714
          %v3899 = vunpack.c.h.b16 %v2714
          %v3900 = vunpack.c.l.b16 %v2715
          %v3901 = vunpack.c.h.b16 %v2715
          %v3902 = vunpack.c.l.b16 %v2716
          %v3903 = vunpack.c.h.b16 %v2716
          %v3904 = vunpack.c.l.b16 %v2717
          %v3905 = vunpack.c.h.b16 %v2717
          %v3906 = vunpack.c.l.b16 %v2718
          %v3907 = vunpack.c.h.b16 %v2718
          %v3908 = vunpack.c.l.b16 %v2719
          %v3909 = vunpack.c.h.b16 %v2719
          %v3910 = vunpack.c.l.b16 %v2720
          %v3911 = vunpack.c.h.b16 %v2720
          %v3912 = vunpack.c.l.b16 %v2721
          %v3913 = vunpack.c.h.b16 %v2721
          %v3914 = vunpack.c.l.b16 %v2722
          %v3915 = vunpack.c.h.b16 %v2722
          %v3916 = vunpack.c.l.b16 %v2723
          %v3917 = vunpack.c.h.b16 %v2723
          %v3918 = vunpack.c.l.b16 %v2724
          %v3919 = vunpack.c.h.b16 %v2724
          %v3920 = vunpack.c.l.b16 %v2725
          %v3921 = vunpack.c.h.b16 %v2725
          %v3922 = vunpack.c.l.b16 %v2726
          %v3923 = vunpack.c.h.b16 %v2726
          %v3924 = vunpack.c.l.b16 %v2727
          %v3925 = vunpack.c.h.b16 %v2727
          %v3926 = vunpack.c.l.b16 %v2728
          %v3927 = vunpack.c.h.b16 %v2728
          %v3928 = vunpack.c.l.b16 %v2729
          %v3929 = vunpack.c.h.b16 %v2729
          %v3930 = vunpack.c.l.b16 %v2730
          %v3931 = vunpack.c.h.b16 %v2730
          %v3932 = vunpack.c.l.b16 %v2731
          %v3933 = vunpack.c.h.b16 %v2731
          %v3934 = vunpack.c.l.b16 %v2732
          %v3935 = vunpack.c.h.b16 %v2732
          %v3936 = vunpack.c.l.b16 %v2733
          %v3937 = vunpack.c.h.b16 %v2733
          %v3938 = vunpack.c.l.b16 %v2734
          %v3939 = vunpack.c.h.b16 %v2734
          %v3940 = vunpack.c.l.b16 %v2735
          %v3941 = vunpack.c.h.b16 %v2735
          %v3942 = vunpack.c.l.b16 %v2736
          %v3943 = vunpack.c.h.b16 %v2736
          %v3944 = vunpack.c.l.b16 %v2737
          %v3945 = vunpack.c.h.b16 %v2737
          %v3946 = vunpack.c.l.b16 %v2738
          %v3947 = vunpack.c.h.b16 %v2738
          %v3948 = vunpack.c.l.b16 %v2739
          %v3949 = vunpack.c.h.b16 %v2739
          %v3950 = vunpack.c.l.b16 %v2740
          %v3951 = vunpack.c.h.b16 %v2740
          %v3952 = vunpack.c.l.b16 %v2741
          %v3953 = vunpack.c.h.b16 %v2741
          %v3954 = vunpack.c.l.b16 %v2742
          %v3955 = vunpack.c.h.b16 %v2742
          %v3956 = vunpack.c.l.b16 %v2743
          %v3957 = vunpack.c.h.b16 %v2743
          %v3958 = vunpack.c.l.b16 %v2744
          %v3959 = vunpack.c.h.b16 %v2744
          %v3960 = vunpack.c.l.b16 %v2745
          %v3961 = vunpack.c.h.b16 %v2745
          %v3962 = vunpack.c.l.b16 %v2746
          %v3963 = vunpack.c.h.b16 %v2746
          %v3964 = vunpack.c.l.b16 %v2747
          %v3965 = vunpack.c.h.b16 %v2747
          %v3966 = vunpack.c.l.b16 %v2748
          %v3967 = vunpack.c.h.b16 %v2748
          %v3968 = vunpack.c.l.b16 %v2749
          %v3969 = vunpack.c.h.b16 %v2749
          %v3970 = vunpack.c.l.b16 %v2750
          %v3971 = vunpack.c.h.b16 %v2750
          %v3972 = vunpack.c.l.b16 %v2751
          %v3973 = vunpack.c.h.b16 %v2751
          %v3974 = vunpack.c.l.b16 %v2752
          %v3975 = vunpack.c.h.b16 %v2752
          %v3976 = vunpack.c.l.b16 %v2753
          %v3977 = vunpack.c.h.b16 %v2753
          %v3978 = vunpack.c.l.b16 %v2754
          %v3979 = vunpack.c.h.b16 %v2754
          %v3980 = vunpack.c.l.b16 %v2755
          %v3981 = vunpack.c.h.b16 %v2755
          %v3982 = vunpack.c.l.b16 %v2756
          %v3983 = vunpack.c.h.b16 %v2756
          %v3984 = vunpack.c.l.b16 %v2757
          %v3985 = vunpack.c.h.b16 %v2757
          %v3986 = vunpack.c.l.b16 %v2758
          %v3987 = vunpack.c.h.b16 %v2758
          %v3988 = vunpack.c.l.b16 %v2759
          %v3989 = vunpack.c.h.b16 %v2759
          %v3990 = vunpack.c.l.b16 %v2760
          %v3991 = vunpack.c.h.b16 %v2760
          %v3992 = vunpack.c.l.b16 %v2761
          %v3993 = vunpack.c.h.b16 %v2761
          %v3994 = vunpack.c.l.b16 %v2762
          %v3995 = vunpack.c.h.b16 %v2762
          %v3996 = vunpack.c.l.b16 %v2763
          %v3997 = vunpack.c.h.b16 %v2763
          %v3998 = vunpack.c.l.b16 %v2764
          %v3999 = vunpack.c.h.b16 %v2764
          %v4000 = vunpack.c.l.b16 %v2765
          %v4001 = vunpack.c.h.b16 %v2765
          %v4002 = vunpack.c.l.b16 %v2766
          %v4003 = vunpack.c.h.b16 %v2766
          %v4004 = vunpack.c.l.b16 %v2767
          %v4005 = vunpack.c.h.b16 %v2767
          %v4006 = vunpack.c.l.b16 %v2768
          %v4007 = vunpack.c.h.b16 %v2768
          %v4008 = vunpack.c.l.b16 %v2769
          %v4009 = vunpack.c.h.b16 %v2769
          %v4010 = vunpack.c.l.b16 %v2770
          %v4011 = vunpack.c.h.b16 %v2770
          %v4012 = vunpack.c.l.b16 %v2771
          %v4013 = vunpack.c.h.b16 %v2771
          %v4014 = vunpack.c.l.b16 %v2772
          %v4015 = vunpack.c.h.b16 %v2772
          %v4016 = vunpack.c.l.b16 %v2773
          %v4017 = vunpack.c.h.b16 %v2773
          %v4018 = vunpack.c.l.b16 %v2774
          %v4019 = vunpack.c.h.b16 %v2774
          %v4020 = vunpack.c.l.b16 %v2775
          %v4021 = vunpack.c.h.b16 %v2775
          %v4022 = vunpack.c.l.b16 %v2776
          %v4023 = vunpack.c.h.b16 %v2776
          %v4024 = vunpack.c.l.b16 %v2777
          %v4025 = vunpack.c.h.b16 %v2777
          %v4026 = vunpack.c.l.b16 %v2778
          %v4027 = vunpack.c.h.b16 %v2778
          %v4028 = vunpack.c.l.b16 %v2779
          %v4029 = vunpack.c.h.b16 %v2779
          %v4030 = vunpack.c.l.b16 %v2780
          %v4031 = vunpack.c.h.b16 %v2780
          %v4032 = vunpack.c.l.b16 %v2781
          %v4033 = vunpack.c.h.b16 %v2781
          %v4034 = vunpack.c.l.b16 %v2782
          %v4035 = vunpack.c.h.b16 %v2782
          %v4036 = vunpack.c.l.b16 %v2783
          %v4037 = vunpack.c.h.b16 %v2783
          %v4038 = vunpack.c.l.b16 %v2784
          %v4039 = vunpack.c.h.b16 %v2784
          %v4040 = vunpack.c.l.b16 %v2785
          %v4041 = vunpack.c.h.b16 %v2785
          %v4042 = vunpack.c.l.b16 %v2786
          %v4043 = vunpack.c.h.b16 %v2786
          %v4044 = vunpack.c.l.b16 %v2787
          %v4045 = vunpack.c.h.b16 %v2787
          %v4046 = vunpack.c.l.b16 %v2788
          %v4047 = vunpack.c.h.b16 %v2788
          %v4048 = vunpack.c.l.b16 %v2789
          %v4049 = vunpack.c.h.b16 %v2789
          %v4050 = vunpack.c.l.b16 %v2790
          %v4051 = vunpack.c.h.b16 %v2790
          %v4052 = vunpack.c.l.b16 %v2791
          %v4053 = vunpack.c.h.b16 %v2791
          %v4054 = vunpack.c.l.b16 %v2792
          %v4055 = vunpack.c.h.b16 %v2792
          %v4056 = vunpack.c.l.b16 %v2793
          %v4057 = vunpack.c.h.b16 %v2793
          %v4058 = vunpack.c.l.b16 %v2794
          %v4059 = vunpack.c.h.b16 %v2794
          %v4060 = vunpack.c.l.b16 %v2795
          %v4061 = vunpack.c.h.b16 %v2795
          %v4062 = vunpack.c.l.b16 %v2796
          %v4063 = vunpack.c.h.b16 %v2796
          %v4064 = vunpack.c.l.b16 %v2797
          %v4065 = vunpack.c.h.b16 %v2797
          %v4066 = vunpack.c.l.b16 %v2798
          %v4067 = vunpack.c.h.b16 %v2798
          %v4068 = vunpack.c.l.b16 %v2799
          %v4069 = vunpack.c.h.b16 %v2799
          %v4070 = vunpack.c.l.b16 %v2800
          %v4071 = vunpack.c.h.b16 %v2800
          %v4072 = vunpack.c.l.b16 %v2801
          %v4073 = vunpack.c.h.b16 %v2801
          %v4074 = vunpack.c.l.b16 %v2802
          %v4075 = vunpack.c.h.b16 %v2802
          %v4076 = vunpack.c.l.b16 %v2803
          %v4077 = vunpack.c.h.b16 %v2803
          %v4078 = vunpack.c.l.b16 %v2804
          %v4079 = vunpack.c.h.b16 %v2804
          %v4080 = vunpack.c.l.b16 %v2805
          %v4081 = vunpack.c.h.b16 %v2805
          %v4082 = vunpack.c.l.b16 %v2806
          %v4083 = vunpack.c.h.b16 %v2806
          %v4084 = vunpack.c.l.b16 %v2807
          %v4085 = vunpack.c.h.b16 %v2807
          %v4086 = vunpack.c.l.b16 %v2808
          %v4087 = vunpack.c.h.b16 %v2808
          %v4088 = vunpack.c.l.b16 %v2809
          %v4089 = vunpack.c.h.b16 %v2809
          %v4090 = vunpack.c.l.b16 %v2810
          %v4091 = vunpack.c.h.b16 %v2810
          %v4092 = vunpack.c.l.b16 %v2811
          %v4093 = vunpack.c.h.b16 %v2811
          %v4094 = vunpack.c.l.b16 %v2812
          %v4095 = vunpack.c.h.b16 %v2812
          %v4096 = vunpack.c.l.b16 %v2813
          %v4097 = vunpack.c.h.b16 %v2813
          %v4098 = vunpack.c.l.b16 %v2814
          %v4099 = vunpack.c.h.b16 %v2814
          %v4100 = vunpack.c.l.b16 %v2815
          %v4101 = vunpack.c.h.b16 %v2815
          %v4102 = vunpack.c.l.b16 %v2816
          %v4103 = vunpack.c.h.b16 %v2816
          %v4104 = vunpack.c.l.b16 %v2817
          %v4105 = vunpack.c.h.b16 %v2817
          %v4106 = vunpack.c.l.b16 %v2818
          %v4107 = vunpack.c.h.b16 %v2818
          %v4108 = vunpack.c.l.b16 %v2819
          %v4109 = vunpack.c.h.b16 %v2819
          %v4110 = vunpack.c.l.b16 %v2820
          %v4111 = vunpack.c.h.b16 %v2820
          %v4112 = vunpack.c.l.b16 %v2821
          %v4113 = vunpack.c.h.b16 %v2821
          %v4114 = vunpack.c.l.b16 %v2822
          %v4115 = vunpack.c.h.b16 %v2822
          %v4116 = vunpack.c.l.b16 %v2823
          %v4117 = vunpack.c.h.b16 %v2823
          %v4118 = vunpack.c.l.b16 %v2824
          %v4119 = vunpack.c.h.b16 %v2824
          %v4120 = vunpack.c.l.b16 %v2825
          %v4121 = vunpack.c.h.b16 %v2825
          %v4122 = vunpack.c.l.b16 %v2826
          %v4123 = vunpack.c.h.b16 %v2826
          %v4124 = vunpack.c.l.b16 %v2827
          %v4125 = vunpack.c.h.b16 %v2827
          %v4126 = vunpack.c.l.b16 %v2828
          %v4127 = vunpack.c.h.b16 %v2828
          %v4128 = vunpack.c.l.b16 %v2829
          %v4129 = vunpack.c.h.b16 %v2829
          %v4130 = vunpack.c.l.b16 %v2830
          %v4131 = vunpack.c.h.b16 %v2830
          %v4132 = vunpack.c.l.b16 %v2831
          %v4133 = vunpack.c.h.b16 %v2831
          %v4134 = vunpack.c.l.b16 %v2832
          %v4135 = vunpack.c.h.b16 %v2832
          %v4136 = vunpack.c.l.b16 %v2833
          %v4137 = vunpack.c.h.b16 %v2833
          %v4138 = vunpack.c.l.b16 %v2834
          %v4139 = vunpack.c.h.b16 %v2834
          %v4140 = vunpack.c.l.b16 %v2835
          %v4141 = vunpack.c.h.b16 %v2835
          %v4142 = vunpack.c.l.b16 %v2836
          %v4143 = vunpack.c.h.b16 %v2836
          %v4144 = vunpack.c.l.b16 %v2837
          %v4145 = vunpack.c.h.b16 %v2837
          %v4146 = vunpack.c.l.b16 %v2838
          %v4147 = vunpack.c.h.b16 %v2838
          %v4148 = vunpack.c.l.b16 %v2839
          %v4149 = vunpack.c.h.b16 %v2839
          %v4150 = vunpack.c.l.b16 %v2840
          %v4151 = vunpack.c.h.b16 %v2840
          %v4152 = vunpack.c.l.b16 %v2841
          %v4153 = vunpack.c.h.b16 %v2841
          %v4154 = vunpack.c.l.b16 %v2842
          %v4155 = vunpack.c.h.b16 %v2842
          %v4156 = vunpack.c.l.b16 %v2843
          %v4157 = vunpack.c.h.b16 %v2843
          %v4158 = vunpack.c.l.b16 %v2844
          %v4159 = vunpack.c.h.b16 %v2844
          %v4160 = vunpack.c.l.b16 %v2845
          %v4161 = vunpack.c.h.b16 %v2845
          %v4162 = vunpack.c.l.b16 %v2846
          %v4163 = vunpack.c.h.b16 %v2846
          %v4164 = vunpack.c.l.b16 %v2847
          %v4165 = vunpack.c.h.b16 %v2847
          %v4166 = vunpack.c.l.b16 %v2848
          %v4167 = vunpack.c.h.b16 %v2848
          %v4168 = vunpack.c.l.b16 %v2849
          %v4169 = vunpack.c.h.b16 %v2849
          %v4170 = vunpack.c.l.b16 %v2850
          %v4171 = vunpack.c.h.b16 %v2850
          %v4172 = vunpack.c.l.b16 %v2851
          %v4173 = vunpack.c.h.b16 %v2851
          %v4174 = vunpack.c.l.b16 %v2852
          %v4175 = vunpack.c.h.b16 %v2852
          %v4176 = vunpack.c.l.b16 %v2853
          %v4177 = vunpack.c.h.b16 %v2853
          %v4178 = vunpack.c.l.b16 %v2854
          %v4179 = vunpack.c.h.b16 %v2854
          %v4180 = vunpack.c.l.b16 %v2855
          %v4181 = vunpack.c.h.b16 %v2855
          %v4182 = vunpack.c.l.b16 %v2856
          %v4183 = vunpack.c.h.b16 %v2856
          %v4184 = vunpack.c.l.b16 %v2857
          %v4185 = vunpack.c.h.b16 %v2857
          %v4186 = vunpack.c.l.b16 %v2858
          %v4187 = vunpack.c.h.b16 %v2858
          %v4188 = vunpack.c.l.b16 %v2859
          %v4189 = vunpack.c.h.b16 %v2859
          %v4190 = vunpack.c.l.b16 %v2860
          %v4191 = vunpack.c.h.b16 %v2860
          %v4192 = vunpack.c.l.b16 %v2861
          %v4193 = vunpack.c.h.b16 %v2861
          %v4194 = vunpack.c.l.b16 %v2862
          %v4195 = vunpack.c.h.b16 %v2862
          %v4196 = vunpack.c.l.b16 %v2863
          %v4197 = vunpack.c.h.b16 %v2863
          %v4198 = vunpack.c.l.b16 %v2864
          %v4199 = vunpack.c.h.b16 %v2864
          %v4200 = vunpack.c.l.b16 %v2865
          %v4201 = vunpack.c.h.b16 %v2865
          %v4202 = vunpack.c.l.b16 %v2866
          %v4203 = vunpack.c.h.b16 %v2866
          %v4204 = vunpack.c.l.b16 %v2867
          %v4205 = vunpack.c.h.b16 %v2867
          %v4206 = vunpack.c.l.b16 %v2868
          %v4207 = vunpack.c.h.b16 %v2868
          %v4208 = vunpack.c.l.b16 %v2869
          %v4209 = vunpack.c.h.b16 %v2869
          %v4210 = vunpack.c.l.b16 %v2870
          %v4211 = vunpack.c.h.b16 %v2870
          %v4212 = vunpack.c.l.b16 %v2871
          %v4213 = vunpack.c.h.b16 %v2871
          %v4214 = vunpack.c.l.b16 %v2872
          %v4215 = vunpack.c.h.b16 %v2872
          %v4216 = vunpack.c.l.b16 %v2873
          %v4217 = vunpack.c.h.b16 %v2873
          %v4218 = vunpack.c.l.b16 %v2874
          %v4219 = vunpack.c.h.b16 %v2874
          %v4220 = vunpack.c.l.b16 %v2875
          %v4221 = vunpack.c.h.b16 %v2875
          %v4222 = vunpack.c.l.b16 %v2876
          %v4223 = vunpack.c.h.b16 %v2876
          %v4224 = vunpack.c.l.b16 %v2877
          %v4225 = vunpack.c.h.b16 %v2877
          %v4226 = vunpack.c.l.b16 %v2878
          %v4227 = vunpack.c.h.b16 %v2878
          %v4228 = vunpack.c.l.b16 %v2879
          %v4229 = vunpack.c.h.b16 %v2879
          %v4230 = vunpack.c.l.b16 %v2880
          %v4231 = vunpack.c.h.b16 %v2880
          %v4232 = vunpack.c.l.b16 %v2881
          %v4233 = vunpack.c.h.b16 %v2881
          %v4234 = vunpack.c.l.b16 %v2882
          %v4235 = vunpack.c.h.b16 %v2882
          %v4236 = vunpack.c.l.b16 %v2883
          %v4237 = vunpack.c.h.b16 %v2883
          %v4238 = vunpack.c.l.b16 %v2884
          %v4239 = vunpack.c.h.b16 %v2884
          %v4240 = vunpack.c.l.b16 %v2885
          %v4241 = vunpack.c.h.b16 %v2885
          %v4242 = vunpack.c.l.b16 %v2886
          %v4243 = vunpack.c.h.b16 %v2886
          %v4244 = vunpack.c.l.b16 %v2887
          %v4245 = vunpack.c.h.b16 %v2887
          %v4246 = vunpack.c.l.b16 %v2888
          %v4247 = vunpack.c.h.b16 %v2888
          %v4248 = vunpack.c.l.b16 %v2889
          %v4249 = vunpack.c.h.b16 %v2889
          %v4250 = vunpack.c.l.b16 %v2890
          %v4251 = vunpack.c.h.b16 %v2890
          %v4252 = vunpack.c.l.b16 %v2891
          %v4253 = vunpack.c.h.b16 %v2891
          %v4254 = vunpack.c.l.b16 %v2892
          %v4255 = vunpack.c.h.b16 %v2892
          %v4256 = vunpack.c.l.b16 %v2893
          %v4257 = vunpack.c.h.b16 %v2893
          %v4258 = vunpack.c.l.b16 %v2894
          %v4259 = vunpack.c.h.b16 %v2894
          %v4260 = vunpack.c.l.b16 %v2895
          %v4261 = vunpack.c.h.b16 %v2895
          %v4262 = vunpack.c.l.b16 %v2896
          %v4263 = vunpack.c.h.b16 %v2896
          %v4264 = vunpack.c.l.b16 %v2897
          %v4265 = vunpack.c.h.b16 %v2897
          %v4266 = vunpack.c.l.b16 %v2898
          %v4267 = vunpack.c.h.b16 %v2898
          %v4268 = vunpack.c.l.b16 %v2899
          %v4269 = vunpack.c.h.b16 %v2899
          %v4270 = vunpack.c.l.b16 %v2900
          %v4271 = vunpack.c.h.b16 %v2900
          %v4272 = vunpack.c.l.b16 %v2901
          %v4273 = vunpack.c.h.b16 %v2901
          %v4274 = vunpack.c.l.b16 %v2902
          %v4275 = vunpack.c.h.b16 %v2902
          %v4276 = vunpack.c.l.b16 %v2903
          %v4277 = vunpack.c.h.b16 %v2903
          %v4278 = vunpack.c.l.b16 %v2904
          %v4279 = vunpack.c.h.b16 %v2904
          %v4280 = vunpack.c.l.b16 %v2905
          %v4281 = vunpack.c.h.b16 %v2905
          %v4282 = vunpack.c.l.b16 %v2906
          %v4283 = vunpack.c.h.b16 %v2906
          %v4284 = vunpack.c.l.b16 %v2907
          %v4285 = vunpack.c.h.b16 %v2907
          %v4286 = vunpack.c.l.b16 %v2908
          %v4287 = vunpack.c.h.b16 %v2908
          %v4288 = vunpack.c.l.b16 %v2909
          %v4289 = vunpack.c.h.b16 %v2909
          %v4290 = vunpack.c.l.b16 %v2910
          %v4291 = vunpack.c.h.b16 %v2910
          %v4292 = vunpack.c.l.b16 %v2911
          %v4293 = vunpack.c.h.b16 %v2911
          %v4294 = vunpack.c.l.b16 %v2912
          %v4295 = vunpack.c.h.b16 %v2912
          %v4296 = vunpack.c.l.b16 %v2913
          %v4297 = vunpack.c.h.b16 %v2913
          %v4298 = vunpack.c.l.b16 %v2914
          %v4299 = vunpack.c.h.b16 %v2914
          %v4300 = vunpack.c.l.b16 %v2915
          %v4301 = vunpack.c.h.b16 %v2915
          %v4302 = vunpack.c.l.b16 %v2916
          %v4303 = vunpack.c.h.b16 %v2916
          %v4304 = vunpack.c.l.b16 %v2917
          %v4305 = vunpack.c.h.b16 %v2917
          %v4306 = vunpack.c.l.b16 %v2918
          %v4307 = vunpack.c.h.b16 %v2918
          %v4308 = vunpack.c.l.b16 %v2919
          %v4309 = vunpack.c.h.b16 %v2919
          %v4310 = vunpack.c.l.b16 %v2920
          %v4311 = vunpack.c.h.b16 %v2920
          %v4312 = vunpack.c.l.b16 %v2921
          %v4313 = vunpack.c.h.b16 %v2921
          %v4314 = vunpack.c.l.b16 %v2922
          %v4315 = vunpack.c.h.b16 %v2922
          %v4316 = vunpack.c.l.b16 %v2923
          %v4317 = vunpack.c.h.b16 %v2923
          %v4318 = vunpack.c.l.b16 %v2924
          %v4319 = vunpack.c.h.b16 %v2924
          %v4320 = vunpack.c.l.b16 %v2925
          %v4321 = vunpack.c.h.b16 %v2925
          %v4322 = vunpack.c.l.b16 %v2926
          %v4323 = vunpack.c.h.b16 %v2926
          %v4324 = vunpack.c.l.b16 %v2927
          %v4325 = vunpack.c.h.b16 %v2927
          %v4326 = vunpack.c.l.b16 %v2928
          %v4327 = vunpack.c.h.b16 %v2928
          %v4328 = vunpack.c.l.b16 %v2929
          %v4329 = vunpack.c.h.b16 %v2929
          %v4330 = vunpack.c.l.b16 %v2930
          %v4331 = vunpack.c.h.b16 %v2930
          %v4332 = vunpack.c.l.b16 %v2931
          %v4333 = vunpack.c.h.b16 %v2931
          %v4334 = vunpack.c.l.b16 %v2932
          %v4335 = vunpack.c.h.b16 %v2932
          %v4336 = vunpack.c.l.b16 %v2933
          %v4337 = vunpack.c.h.b16 %v2933
          %v4338 = vunpack.c.l.b16 %v2934
          %v4339 = vunpack.c.h.b16 %v2934
          %v4340 = vunpack.c.l.b16 %v2935
          %v4341 = vunpack.c.h.b16 %v2935
          %v4342 = vunpack.c.l.b16 %v2936
          %v4343 = vunpack.c.h.b16 %v2936
          %v4344 = vunpack.c.l.b16 %v2937
          %v4345 = vunpack.c.h.b16 %v2937
          %v4346 = vunpack.c.l.b16 %v2938
          %v4347 = vunpack.c.h.b16 %v2938
          %v4348 = vunpack.c.l.b16 %v2939
          %v4349 = vunpack.c.h.b16 %v2939
          %v4350 = vunpack.c.l.b16 %v2940
          %v4351 = vunpack.c.h.b16 %v2940
          %v4352 = vunpack.c.l.b16 %v2941
          %v4353 = vunpack.c.h.b16 %v2941
          %v4354 = vunpack.c.l.b16 %v2942
          %v4355 = vunpack.c.h.b16 %v2942
          %v4356 = vunpack.c.l.b16 %v2943
          %v4357 = vunpack.c.h.b16 %v2943
          %v4358 = vunpack.c.l.b16 %v2944
          %v4359 = vunpack.c.h.b16 %v2944
          %v4360 = vunpack.c.l.b16 %v2945
          %v4361 = vunpack.c.h.b16 %v2945
          %v4362 = vunpack.c.l.b16 %v2946
          %v4363 = vunpack.c.h.b16 %v2946
          %v4364 = vunpack.c.l.b16 %v2947
          %v4365 = vunpack.c.h.b16 %v2947
          %v4366 = vunpack.c.l.b16 %v2948
          %v4367 = vunpack.c.h.b16 %v2948
          %v4368 = vunpack.c.l.b16 %v2949
          %v4369 = vunpack.c.h.b16 %v2949
          %v4370 = vunpack.c.l.b16 %v2950
          %v4371 = vunpack.c.h.b16 %v2950
          %v4372 = vunpack.c.l.b16 %v2951
          %v4373 = vunpack.c.h.b16 %v2951
          %v4374 = vunpack.c.l.b16 %v2952
          %v4375 = vunpack.c.h.b16 %v2952
          %v4376 = vunpack.c.l.b16 %v2953
          %v4377 = vunpack.c.h.b16 %v2953
          %v4378 = vunpack.c.l.b16 %v2954
          %v4379 = vunpack.c.h.b16 %v2954
          %v4380 = vunpack.c.l.b16 %v2955
          %v4381 = vunpack.c.h.b16 %v2955
          %v4382 = vunpack.c.l.b16 %v2956
          %v4383 = vunpack.c.h.b16 %v2956
          %v4384 = vunpack.c.l.b16 %v2957
          %v4385 = vunpack.c.h.b16 %v2957
          %v4386 = vunpack.c.l.b16 %v2958
          %v4387 = vunpack.c.h.b16 %v2958
          %v4388 = vunpack.c.l.b16 %v2959
          %v4389 = vunpack.c.h.b16 %v2959
          %v4390 = vunpack.c.l.b16 %v2960
          %v4391 = vunpack.c.h.b16 %v2960
          %v4392 = vunpack.c.l.b16 %v2961
          %v4393 = vunpack.c.h.b16 %v2961
          %v4394 = vunpack.c.l.b16 %v2962
          %v4395 = vunpack.c.h.b16 %v2962
          %v4396 = vunpack.c.l.b16 %v2963
          %v4397 = vunpack.c.h.b16 %v2963
          %v4398 = vunpack.c.l.b16 %v2964
          %v4399 = vunpack.c.h.b16 %v2964
          %v4400 = vunpack.c.l.b16 %v2965
          %v4401 = vunpack.c.h.b16 %v2965
          %v4402 = vunpack.c.l.b16 %v2966
          %v4403 = vunpack.c.h.b16 %v2966
          %v4404 = vunpack.c.l.b16 %v2967
          %v4405 = vunpack.c.h.b16 %v2967
          %v4406 = vunpack.c.l.b16 %v2968
          %v4407 = vunpack.c.h.b16 %v2968
          %v4408 = vunpack.c.l.b16 %v2969
          %v4409 = vunpack.c.h.b16 %v2969
          %v4410 = vunpack.c.l.b16 %v2970
          %v4411 = vunpack.c.h.b16 %v2970
          %v4412 = vunpack.c.l.b16 %v2971
          %v4413 = vunpack.c.h.b16 %v2971
          %v4414 = vunpack.c.l.b16 %v2972
          %v4415 = vunpack.c.h.b16 %v2972
          %v4416 = vunpack.c.l.b16 %v2973
          %v4417 = vunpack.c.h.b16 %v2973
          %v4418 = vunpack.c.l.b16 %v2974
          %v4419 = vunpack.c.h.b16 %v2974
          %v4420 = vunpack.c.l.b16 %v2975
          %v4421 = vunpack.c.h.b16 %v2975
          %v4422 = vunpack.c.l.b16 %v2976
          %v4423 = vunpack.c.h.b16 %v2976
          %v4424 = vunpack.c.l.b16 %v2977
          %v4425 = vunpack.c.h.b16 %v2977
          %v4426 = vunpack.c.l.b16 %v2978
          %v4427 = vunpack.c.h.b16 %v2978
          %v4428 = vunpack.c.l.b16 %v2979
          %v4429 = vunpack.c.h.b16 %v2979
          %v4430 = vunpack.c.l.b16 %v2980
          %v4431 = vunpack.c.h.b16 %v2980
          %v4432 = vunpack.c.l.b16 %v2981
          %v4433 = vunpack.c.h.b16 %v2981
          %v4434 = vunpack.c.l.b16 %v2982
          %v4435 = vunpack.c.h.b16 %v2982
          %v4436 = vunpack.c.l.b16 %v2983
          %v4437 = vunpack.c.h.b16 %v2983
          %v4438 = vunpack.c.l.b16 %v2984
          %v4439 = vunpack.c.h.b16 %v2984
          %v4440 = vunpack.c.l.b16 %v2985
          %v4441 = vunpack.c.h.b16 %v2985
          %v4442 = vunpack.c.l.b16 %v2986
          %v4443 = vunpack.c.h.b16 %v2986
          %v4444 = vunpack.c.l.b16 %v2987
          %v4445 = vunpack.c.h.b16 %v2987
          %v4446 = vunpack.c.l.b16 %v2988
          %v4447 = vunpack.c.h.b16 %v2988
          %v4448 = vunpack.c.l.b16 %v2989
          %v4449 = vunpack.c.h.b16 %v2989
          %v4450 = vunpack.c.l.b16 %v2990
          %v4451 = vunpack.c.h.b16 %v2990
          %v4452 = vunpack.c.l.b16 %v2991
          %v4453 = vunpack.c.h.b16 %v2991
          %v4454 = vunpack.c.l.b16 %v2992
          %v4455 = vunpack.c.h.b16 %v2992
          %v4456 = vunpack.c.l.b16 %v2993
          %v4457 = vunpack.c.h.b16 %v2993
          %v4458 = vunpack.c.l.b16 %v2994
          %v4459 = vunpack.c.h.b16 %v2994
          %v4460 = vunpack.c.l.b16 %v2995
          %v4461 = vunpack.c.h.b16 %v2995
          %v4462 = vunpack.c.l.b16 %v2996
          %v4463 = vunpack.c.h.b16 %v2996
          %v4464 = vunpack.c.l.b16 %v2997
          %v4465 = vunpack.c.h.b16 %v2997
          %v4466 = vunpack.c.l.b16 %v2998
          %v4467 = vunpack.c.h.b16 %v2998
          %v4468 = vunpack.c.l.b16 %v2999
          %v4469 = vunpack.c.h.b16 %v2999
          %v4470 = vunpack.c.l.b16 %v3000
          %v4471 = vunpack.c.h.b16 %v3000
          %v4472 = vunpack.c.l.b16 %v3001
          %v4473 = vunpack.c.h.b16 %v3001
          %v4474 = vunpack.c.l.b16 %v3002
          %v4475 = vunpack.c.h.b16 %v3002
          %v4476 = vunpack.c.l.b16 %v3003
          %v4477 = vunpack.c.h.b16 %v3003
          %v4478 = vunpack.c.l.b16 %v3004
          %v4479 = vunpack.c.h.b16 %v3004
          %v4480 = vunpack.c.l.b16 %v3005
          %v4481 = vunpack.c.h.b16 %v3005
          %v4482 = vunpack.c.l.b16 %v3006
          %v4483 = vunpack.c.h.b16 %v3006
          %v4484 = vunpack.c.l.b16 %v3007
          %v4485 = vunpack.c.h.b16 %v3007
          %v4486 = vunpack.c.l.b16 %v3008
          %v4487 = vunpack.c.h.b16 %v3008
          %v4488 = vunpack.c.l.b16 %v3009
          %v4489 = vunpack.c.h.b16 %v3009
          %v4490 = vunpack.c.l.b16 %v3010
          %v4491 = vunpack.c.h.b16 %v3010
          %v4492 = vunpack.c.l.b16 %v3011
          %v4493 = vunpack.c.h.b16 %v3011
          %v4494 = vunpack.c.l.b16 %v3012
          %v4495 = vunpack.c.h.b16 %v3012
          %v4496 = vunpack.c.l.b16 %v3013
          %v4497 = vunpack.c.h.b16 %v3013
          %v4498 = vunpack.c.l.b16 %v3014
          %v4499 = vunpack.c.h.b16 %v3014
          %v4500 = vunpack.c.l.b16 %v3015
          %v4501 = vunpack.c.h.b16 %v3015
          %v4502 = vunpack.c.l.b16 %v3016
          %v4503 = vunpack.c.h.b16 %v3016
          %v4504 = vunpack.c.l.b16 %v3017
          %v4505 = vunpack.c.h.b16 %v3017
          %v4506 = vunpack.c.l.b16 %v3018
          %v4507 = vunpack.c.h.b16 %v3018
          %v4508 = vunpack.c.l.b16 %v3019
          %v4509 = vunpack.c.h.b16 %v3019
          %v4510 = vunpack.c.l.b16 %v3020
          %v4511 = vunpack.c.h.b16 %v3020
          %v4512 = vunpack.c.l.b16 %v3021
          %v4513 = vunpack.c.h.b16 %v3021
          %v4514 = vunpack.c.l.b16 %v3022
          %v4515 = vunpack.c.h.b16 %v3022
          %v4516 = vunpack.c.l.b16 %v3023
          %v4517 = vunpack.c.h.b16 %v3023
          %v4518 = vunpack.c.l.b16 %v3024
          %v4519 = vunpack.c.h.b16 %v3024
          %v4520 = vunpack.c.l.b16 %v3025
          %v4521 = vunpack.c.h.b16 %v3025
          %v4522 = vunpack.c.l.b16 %v3026
          %v4523 = vunpack.c.h.b16 %v3026
          %v4524 = vunpack.c.l.b16 %v3027
          %v4525 = vunpack.c.h.b16 %v3027
          %v4526 = vunpack.c.l.b16 %v3028
          %v4527 = vunpack.c.h.b16 %v3028
          %v4528 = vunpack.c.l.b16 %v3029
          %v4529 = vunpack.c.h.b16 %v3029
          %v4530 = vunpack.c.l.b16 %v3030
          %v4531 = vunpack.c.h.b16 %v3030
          %v4532 = vunpack.c.l.b16 %v3031
          %v4533 = vunpack.c.h.b16 %v3031
          %v4534 = vunpack.c.l.b16 %v3032
          %v4535 = vunpack.c.h.b16 %v3032
          %v4536 = vunpack.c.l.b16 %v3033
          %v4537 = vunpack.c.h.b16 %v3033
          %v4538 = vunpack.c.l.b16 %v3034
          %v4539 = vunpack.c.h.b16 %v3034
          %v4540 = vunpack.c.l.b16 %v3035
          %v4541 = vunpack.c.h.b16 %v3035
          %v4542 = vunpack.c.l.b16 %v3036
          %v4543 = vunpack.c.h.b16 %v3036
          %v4544 = vunpack.c.l.b16 %v3037
          %v4545 = vunpack.c.h.b16 %v3037
          %v4546 = vunpack.c.l.b16 %v3038
          %v4547 = vunpack.c.h.b16 %v3038
          %v4548 = vunpack.c.l.b16 %v3039
          %v4549 = vunpack.c.h.b16 %v3039
          %v4550 = vunpack.c.l.b16 %v3040
          %v4551 = vunpack.c.h.b16 %v3040
          %v4552 = vunpack.c.l.b16 %v3041
          %v4553 = vunpack.c.h.b16 %v3041
          %v4554 = vunpack.c.l.b16 %v3042
          %v4555 = vunpack.c.h.b16 %v3042
          %v4556 = vunpack.c.l.b16 %v3043
          %v4557 = vunpack.c.h.b16 %v3043
          %v4558 = vunpack.c.l.b16 %v3044
          %v4559 = vunpack.c.h.b16 %v3044
          %v4560 = vunpack.c.l.b16 %v3045
          %v4561 = vunpack.c.h.b16 %v3045
          %v4562 = vunpack.c.l.b16 %v3046
          %v4563 = vunpack.c.h.b16 %v3046
          %v4564 = vunpack.c.l.b16 %v3047
          %v4565 = vunpack.c.h.b16 %v3047
          %v4566 = vunpack.c.l.b16 %v3048
          %v4567 = vunpack.c.h.b16 %v3048
          %v4568 = vunpack.c.l.b16 %v3049
          %v4569 = vunpack.c.h.b16 %v3049
          %v4570 = vunpack.c.l.b16 %v3050
          %v4571 = vunpack.c.h.b16 %v3050
          %v4572 = vunpack.c.l.b16 %v3051
          %v4573 = vunpack.c.h.b16 %v3051
          %v4574 = vunpack.c.l.b16 %v3052
          %v4575 = vunpack.c.h.b16 %v3052
          %v4576 = vunpack.c.l.b16 %v3053
          %v4577 = vunpack.c.h.b16 %v3053
          %v4578 = vunpack.c.l.b16 %v3054
          %v4579 = vunpack.c.h.b16 %v3054
          %v4580 = vunpack.c.l.b16 %v3055
          %v4581 = vunpack.c.h.b16 %v3055
          %v4582 = vunpack.c.l.b16 %v3056
          %v4583 = vunpack.c.h.b16 %v3056
          %v4584 = vunpack.c.l.b16 %v3057
          %v4585 = vunpack.c.h.b16 %v3057
          %v4586 = vunpack.c.l.b16 %v3058
          %v4587 = vunpack.c.h.b16 %v3058
          %v4588 = vunpack.c.l.b16 %v3059
          %v4589 = vunpack.c.h.b16 %v3059
          %v4590 = vunpack.c.l.b16 %v3060
          %v4591 = vunpack.c.h.b16 %v3060
          %v4592 = vunpack.c.l.b16 %v3061
          %v4593 = vunpack.c.h.b16 %v3061
          %v4594 = vunpack.c.l.b16 %v3062
          %v4595 = vunpack.c.h.b16 %v3062
          %v4596 = vunpack.c.l.b16 %v3063
          %v4597 = vunpack.c.h.b16 %v3063
          %v4598 = vunpack.c.l.b16 %v3064
          %v4599 = vunpack.c.h.b16 %v3064
          %v4600 = vunpack.c.l.b16 %v3065
          %v4601 = vunpack.c.h.b16 %v3065
          %v4602 = vunpack.c.l.b16 %v3066
          %v4603 = vunpack.c.h.b16 %v3066
          %v4604 = vpack.c.b16 %v3584, %v3580
          %v4605 = vpack.c.b16 %v3585, %v3581
          %v4606 = vpack.c.b16 %v3586, %v3582
          %v4607 = vpack.c.b16 %v3587, %v3583
          %v4608 = vpack.c.b16 %v3592, %v3588
          %v4609 = vpack.c.b16 %v3593, %v3589
          %v4610 = vpack.c.b16 %v3594, %v3590
          %v4611 = vpack.c.b16 %v3595, %v3591
          %v4612 = vpack.c.b16 %v3600, %v3596
          %v4613 = vpack.c.b16 %v3601, %v3597
          %v4614 = vpack.c.b16 %v3602, %v3598
          %v4615 = vpack.c.b16 %v3603, %v3599
          %v4616 = vpack.c.b16 %v3608, %v3604
          %v4617 = vpack.c.b16 %v3609, %v3605
          %v4618 = vpack.c.b16 %v3610, %v3606
          %v4619 = vpack.c.b16 %v3611, %v3607
          %v4620 = vpack.c.b16 %v3616, %v3612
          %v4621 = vpack.c.b16 %v3617, %v3613
          %v4622 = vpack.c.b16 %v3618, %v3614
          %v4623 = vpack.c.b16 %v3619, %v3615
          %v4624 = vpack.c.b16 %v3624, %v3620
          %v4625 = vpack.c.b16 %v3625, %v3621
          %v4626 = vpack.c.b16 %v3626, %v3622
          %v4627 = vpack.c.b16 %v3627, %v3623
          %v4628 = vpack.c.b16 %v3632, %v3628
          %v4629 = vpack.c.b16 %v3633, %v3629
          %v4630 = vpack.c.b16 %v3634, %v3630
          %v4631 = vpack.c.b16 %v3635, %v3631
          %v4632 = vpack.c.b16 %v3640, %v3636
          %v4633 = vpack.c.b16 %v3641, %v3637
          %v4634 = vpack.c.b16 %v3642, %v3638
          %v4635 = vpack.c.b16 %v3643, %v3639
          %v4636 = vpack.c.b16 %v3648, %v3644
          %v4637 = vpack.c.b16 %v3649, %v3645
          %v4638 = vpack.c.b16 %v3650, %v3646
          %v4639 = vpack.c.b16 %v3651, %v3647
          %v4640 = vpack.c.b16 %v3656, %v3652
          %v4641 = vpack.c.b16 %v3657, %v3653
          %v4642 = vpack.c.b16 %v3658, %v3654
          %v4643 = vpack.c.b16 %v3659, %v3655
          %v4644 = vpack.c.b16 %v3664, %v3660
          %v4645 = vpack.c.b16 %v3665, %v3661
          %v4646 = vpack.c.b16 %v3666, %v3662
          %v4647 = vpack.c.b16 %v3667, %v3663
          %v4648 = vpack.c.b16 %v3672, %v3668
          %v4649 = vpack.c.b16 %v3673, %v3669
          %v4650 = vpack.c.b16 %v3674, %v3670
          %v4651 = vpack.c.b16 %v3675, %v3671
          %v4652 = vpack.c.b16 %v3680, %v3676
          %v4653 = vpack.c.b16 %v3681, %v3677
          %v4654 = vpack.c.b16 %v3682, %v3678
          %v4655 = vpack.c.b16 %v3683, %v3679
          %v4656 = vpack.c.b16 %v3688, %v3684
          %v4657 = vpack.c.b16 %v3689, %v3685
          %v4658 = vpack.c.b16 %v3690, %v3686
          %v4659 = vpack.c.b16 %v3691, %v3687
          %v4660 = vpack.c.b16 %v3696, %v3692
          %v4661 = vpack.c.b16 %v3697, %v3693
          %v4662 = vpack.c.b16 %v3698, %v3694
          %v4663 = vpack.c.b16 %v3699, %v3695
          %v4664 = vpack.c.b16 %v3704, %v3700
          %v4665 = vpack.c.b16 %v3705, %v3701
          %v4666 = vpack.c.b16 %v3706, %v3702
          %v4667 = vpack.c.b16 %v3707, %v3703
          %v4668 = vpack.c.b16 %v3712, %v3708
          %v4669 = vpack.c.b16 %v3713, %v3709
          %v4670 = vpack.c.b16 %v3714, %v3710
          %v4671 = vpack.c.b16 %v3715, %v3711
          %v4672 = vpack.c.b16 %v3720, %v3716
          %v4673 = vpack.c.b16 %v3721, %v3717
          %v4674 = vpack.c.b16 %v3722, %v3718
          %v4675 = vpack.c.b16 %v3723, %v3719
          %v4676 = vpack.c.b16 %v3728, %v3724
          %v4677 = vpack.c.b16 %v3729, %v3725
          %v4678 = vpack.c.b16 %v3730, %v3726
          %v4679 = vpack.c.b16 %v3731, %v3727
          %v4680 = vpack.c.b16 %v3736, %v3732
          %v4681 = vpack.c.b16 %v3737, %v3733
          %v4682 = vpack.c.b16 %v3738, %v3734
          %v4683 = vpack.c.b16 %v3739, %v3735
          %v4684 = vpack.c.b16 %v3744, %v3740
          %v4685 = vpack.c.b16 %v3745, %v3741
          %v4686 = vpack.c.b16 %v3746, %v3742
          %v4687 = vpack.c.b16 %v3747, %v3743
          %v4688 = vpack.c.b16 %v3752, %v3748
          %v4689 = vpack.c.b16 %v3753, %v3749
          %v4690 = vpack.c.b16 %v3754, %v3750
          %v4691 = vpack.c.b16 %v3755, %v3751
          %v4692 = vpack.c.b16 %v3760, %v3756
          %v4693 = vpack.c.b16 %v3761, %v3757
          %v4694 = vpack.c.b16 %v3762, %v3758
          %v4695 = vpack.c.b16 %v3763, %v3759
          %v4696 = vpack.c.b16 %v3768, %v3764
          %v4697 = vpack.c.b16 %v3769, %v3765
          %v4698 = vpack.c.b16 %v3770, %v3766
          %v4699 = vpack.c.b16 %v3771, %v3767
          %v4700 = vpack.c.b16 %v3776, %v3772
          %v4701 = vpack.c.b16 %v3777, %v3773
          %v4702 = vpack.c.b16 %v3778, %v3774
          %v4703 = vpack.c.b16 %v3779, %v3775
          %v4704 = vpack.c.b16 %v3784, %v3780
          %v4705 = vpack.c.b16 %v3785, %v3781
          %v4706 = vpack.c.b16 %v3786, %v3782
          %v4707 = vpack.c.b16 %v3787, %v3783
          %v4708 = vpack.c.b16 %v3792, %v3788
          %v4709 = vpack.c.b16 %v3793, %v3789
          %v4710 = vpack.c.b16 %v3794, %v3790
          %v4711 = vpack.c.b16 %v3795, %v3791
          %v4712 = vpack.c.b16 %v3800, %v3796
          %v4713 = vpack.c.b16 %v3801, %v3797
          %v4714 = vpack.c.b16 %v3802, %v3798
          %v4715 = vpack.c.b16 %v3803, %v3799
          %v4716 = vpack.c.b16 %v3808, %v3804
          %v4717 = vpack.c.b16 %v3809, %v3805
          %v4718 = vpack.c.b16 %v3810, %v3806
          %v4719 = vpack.c.b16 %v3811, %v3807
          %v4720 = vpack.c.b16 %v3816, %v3812
          %v4721 = vpack.c.b16 %v3817, %v3813
          %v4722 = vpack.c.b16 %v3818, %v3814
          %v4723 = vpack.c.b16 %v3819, %v3815
          %v4724 = vpack.c.b16 %v3824, %v3820
          %v4725 = vpack.c.b16 %v3825, %v3821
          %v4726 = vpack.c.b16 %v3826, %v3822
          %v4727 = vpack.c.b16 %v3827, %v3823
          %v4728 = vpack.c.b16 %v3832, %v3828
          %v4729 = vpack.c.b16 %v3833, %v3829
          %v4730 = vpack.c.b16 %v3834, %v3830
          %v4731 = vpack.c.b16 %v3835, %v3831
          %v4732 = vpack.c.b16 %v3840, %v3836
          %v4733 = vpack.c.b16 %v3841, %v3837
          %v4734 = vpack.c.b16 %v3842, %v3838
          %v4735 = vpack.c.b16 %v3843, %v3839
          %v4736 = vpack.c.b16 %v3848, %v3844
          %v4737 = vpack.c.b16 %v3849, %v3845
          %v4738 = vpack.c.b16 %v3850, %v3846
          %v4739 = vpack.c.b16 %v3851, %v3847
          %v4740 = vpack.c.b16 %v3856, %v3852
          %v4741 = vpack.c.b16 %v3857, %v3853
          %v4742 = vpack.c.b16 %v3858, %v3854
          %v4743 = vpack.c.b16 %v3859, %v3855
          %v4744 = vpack.c.b16 %v3864, %v3860
          %v4745 = vpack.c.b16 %v3865, %v3861
          %v4746 = vpack.c.b16 %v3866, %v3862
          %v4747 = vpack.c.b16 %v3867, %v3863
          %v4748 = vpack.c.b16 %v3872, %v3868
          %v4749 = vpack.c.b16 %v3873, %v3869
          %v4750 = vpack.c.b16 %v3874, %v3870
          %v4751 = vpack.c.b16 %v3875, %v3871
          %v4752 = vpack.c.b16 %v3880, %v3876
          %v4753 = vpack.c.b16 %v3881, %v3877
          %v4754 = vpack.c.b16 %v3882, %v3878
          %v4755 = vpack.c.b16 %v3883, %v3879
          %v4756 = vpack.c.b16 %v3888, %v3884
          %v4757 = vpack.c.b16 %v3889, %v3885
          %v4758 = vpack.c.b16 %v3890, %v3886
          %v4759 = vpack.c.b16 %v3891, %v3887
          %v4760 = vpack.c.b16 %v3896, %v3892
          %v4761 = vpack.c.b16 %v3897, %v3893
          %v4762 = vpack.c.b16 %v3898, %v3894
          %v4763 = vpack.c.b16 %v3899, %v3895
          %v4764 = vpack.c.b16 %v3904, %v3900
          %v4765 = vpack.c.b16 %v3905, %v3901
          %v4766 = vpack.c.b16 %v3906, %v3902
          %v4767 = vpack.c.b16 %v3907, %v3903
          %v4768 = vpack.c.b16 %v3912, %v3908
          %v4769 = vpack.c.b16 %v3913, %v3909
          %v4770 = vpack.c.b16 %v3914, %v3910
          %v4771 = vpack.c.b16 %v3915, %v3911
          %v4772 = vpack.c.b16 %v3920, %v3916
          %v4773 = vpack.c.b16 %v3921, %v3917
          %v4774 = vpack.c.b16 %v3922, %v3918
          %v4775 = vpack.c.b16 %v3923, %v3919
          %v4776 = vpack.c.b16 %v3928, %v3924
          %v4777 = vpack.c.b16 %v3929, %v3925
          %v4778 = vpack.c.b16 %v3930, %v3926
          %v4779 = vpack.c.b16 %v3931, %v3927
          %v4780 = vpack.c.b16 %v3936, %v3932
          %v4781 = vpack.c.b16 %v3937, %v3933
          %v4782 = vpack.c.b16 %v3938, %v3934
          %v4783 = vpack.c.b16 %v3939, %v3935
          %v4784 = vpack.c.b16 %v3944, %v3940
          %v4785 = vpack.c.b16 %v3945, %v3941
          %v4786 = vpack.c.b16 %v3946, %v3942
          %v4787 = vpack.c.b16 %v3947, %v3943
          %v4788 = vpack.c.b16 %v3952, %v3948
          %v4789 = vpack.c.b16 %v3953, %v3949
          %v4790 = vpack.c.b16 %v3954, %v3950
          %v4791 = vpack.c.b16 %v3955, %v3951
          %v4792 = vpack.c.b16 %v3960, %v3956
          %v4793 = vpack.c.b16 %v3961, %v3957
          %v4794 = vpack.c.b16 %v3962, %v3958
          %v4795 = vpack.c.b16 %v3963, %v3959
          %v4796 = vpack.c.b16 %v3968, %v3964
          %v4797 = vpack.c.b16 %v3969, %v3965
          %v4798 = vpack.c.b16 %v3970, %v3966
          %v4799 = vpack.c.b16 %v3971, %v3967
          %v4800 = vpack.c.b16 %v3976, %v3972
          %v4801 = vpack.c.b16 %v3977, %v3973
          %v4802 = vpack.c.b16 %v3978, %v3974
          %v4803 = vpack.c.b16 %v3979, %v3975
          %v4804 = vpack.c.b16 %v3984, %v3980
          %v4805 = vpack.c.b16 %v3985, %v3981
          %v4806 = vpack.c.b16 %v3986, %v3982
          %v4807 = vpack.c.b16 %v3987, %v3983
          %v4808 = vpack.c.b16 %v3992, %v3988
          %v4809 = vpack.c.b16 %v3993, %v3989
          %v4810 = vpack.c.b16 %v3994, %v3990
          %v4811 = vpack.c.b16 %v3995, %v3991
          %v4812 = vpack.c.b16 %v4000, %v3996
          %v4813 = vpack.c.b16 %v4001, %v3997
          %v4814 = vpack.c.b16 %v4002, %v3998
          %v4815 = vpack.c.b16 %v4003, %v3999
          %v4816 = vpack.c.b16 %v4008, %v4004
          %v4817 = vpack.c.b16 %v4009, %v4005
          %v4818 = vpack.c.b16 %v4010, %v4006
          %v4819 = vpack.c.b16 %v4011, %v4007
          %v4820 = vpack.c.b16 %v4016, %v4012
          %v4821 = vpack.c.b16 %v4017, %v4013
          %v4822 = vpack.c.b16 %v4018, %v4014
          %v4823 = vpack.c.b16 %v4019, %v4015
          %v4824 = vpack.c.b16 %v4024, %v4020
          %v4825 = vpack.c.b16 %v4025, %v4021
          %v4826 = vpack.c.b16 %v4026, %v4022
          %v4827 = vpack.c.b16 %v4027, %v4023
          %v4828 = vpack.c.b16 %v4032, %v4028
          %v4829 = vpack.c.b16 %v4033, %v4029
          %v4830 = vpack.c.b16 %v4034, %v4030
          %v4831 = vpack.c.b16 %v4035, %v4031
          %v4832 = vpack.c.b16 %v4040, %v4036
          %v4833 = vpack.c.b16 %v4041, %v4037
          %v4834 = vpack.c.b16 %v4042, %v4038
          %v4835 = vpack.c.b16 %v4043, %v4039
          %v4836 = vpack.c.b16 %v4048, %v4044
          %v4837 = vpack.c.b16 %v4049, %v4045
          %v4838 = vpack.c.b16 %v4050, %v4046
          %v4839 = vpack.c.b16 %v4051, %v4047
          %v4840 = vpack.c.b16 %v4056, %v4052
          %v4841 = vpack.c.b16 %v4057, %v4053
          %v4842 = vpack.c.b16 %v4058, %v4054
          %v4843 = vpack.c.b16 %v4059, %v4055
          %v4844 = vpack.c.b16 %v4064, %v4060
          %v4845 = vpack.c.b16 %v4065, %v4061
          %v4846 = vpack.c.b16 %v4066, %v4062
          %v4847 = vpack.c.b16 %v4067, %v4063
          %v4848 = vpack.c.b16 %v4072, %v4068
          %v4849 = vpack.c.b16 %v4073, %v4069
          %v4850 = vpack.c.b16 %v4074, %v4070
          %v4851 = vpack.c.b16 %v4075, %v4071
          %v4852 = vpack.c.b16 %v4080, %v4076
          %v4853 = vpack.c.b16 %v4081, %v4077
          %v4854 = vpack.c.b16 %v4082, %v4078
          %v4855 = vpack.c.b16 %v4083, %v4079
          %v4856 = vpack.c.b16 %v4088, %v4084
          %v4857 = vpack.c.b16 %v4089, %v4085
          %v4858 = vpack.c.b16 %v4090, %v4086
          %v4859 = vpack.c.b16 %v4091, %v4087
          %v4860 = vpack.c.b16 %v4096, %v4092
          %v4861 = vpack.c.b16 %v4097, %v4093
          %v4862 = vpack.c.b16 %v4098, %v4094
          %v4863 = vpack.c.b16 %v4099, %v4095
          %v4864 = vpack.c.b16 %v4104, %v4100
          %v4865 = vpack.c.b16 %v4105, %v4101
          %v4866 = vpack.c.b16 %v4106, %v4102
          %v4867 = vpack.c.b16 %v4107, %v4103
          %v4868 = vpack.c.b16 %v4112, %v4108
          %v4869 = vpack.c.b16 %v4113, %v4109
          %v4870 = vpack.c.b16 %v4114, %v4110
          %v4871 = vpack.c.b16 %v4115, %v4111
          %v4872 = vpack.c.b16 %v4120, %v4116
          %v4873 = vpack.c.b16 %v4121, %v4117
          %v4874 = vpack.c.b16 %v4122, %v4118
          %v4875 = vpack.c.b16 %v4123, %v4119
          %v4876 = vpack.c.b16 %v4128, %v4124
          %v4877 = vpack.c.b16 %v4129, %v4125
          %v4878 = vpack.c.b16 %v4130, %v4126
          %v4879 = vpack.c.b16 %v4131, %v4127
          %v4880 = vpack.c.b16 %v4136, %v4132
          %v4881 = vpack.c.b16 %v4137, %v4133
          %v4882 = vpack.c.b16 %v4138, %v4134
          %v4883 = vpack.c.b16 %v4139, %v4135
          %v4884 = vpack.c.b16 %v4144, %v4140
          %v4885 = vpack.c.b16 %v4145, %v4141
          %v4886 = vpack.c.b16 %v4146, %v4142
          %v4887 = vpack.c.b16 %v4147, %v4143
          %v4888 = vpack.c.b16 %v4152, %v4148
          %v4889 = vpack.c.b16 %v4153, %v4149
          %v4890 = vpack.c.b16 %v4154, %v4150
          %v4891 = vpack.c.b16 %v4155, %v4151
          %v4892 = vpack.c.b16 %v4160, %v4156
          %v4893 = vpack.c.b16 %v4161, %v4157
          %v4894 = vpack.c.b16 %v4162, %v4158
          %v4895 = vpack.c.b16 %v4163, %v4159
          %v4896 = vpack.c.b16 %v4168, %v4164
          %v4897 = vpack.c.b16 %v4169, %v4165
          %v4898 = vpack.c.b16 %v4170, %v4166
          %v4899 = vpack.c.b16 %v4171, %v4167
          %v4900 = vpack.c.b16 %v4176, %v4172
          %v4901 = vpack.c.b16 %v4177, %v4173
          %v4902 = vpack.c.b16 %v4178, %v4174
          %v4903 = vpack.c.b16 %v4179, %v4175
          %v4904 = vpack.c.b16 %v4184, %v4180
          %v4905 = vpack.c.b16 %v4185, %v4181
          %v4906 = vpack.c.b16 %v4186, %v4182
          %v4907 = vpack.c.b16 %v4187, %v4183
          %v4908 = vpack.c.b16 %v4192, %v4188
          %v4909 = vpack.c.b16 %v4193, %v4189
          %v4910 = vpack.c.b16 %v4194, %v4190
          %v4911 = vpack.c.b16 %v4195, %v4191
          %v4912 = vpack.c.b16 %v4200, %v4196
          %v4913 = vpack.c.b16 %v4201, %v4197
          %v4914 = vpack.c.b16 %v4202, %v4198
          %v4915 = vpack.c.b16 %v4203, %v4199
          %v4916 = vpack.c.b16 %v4208, %v4204
          %v4917 = vpack.c.b16 %v4209, %v4205
          %v4918 = vpack.c.b16 %v4210, %v4206
          %v4919 = vpack.c.b16 %v4211, %v4207
          %v4920 = vpack.c.b16 %v4216, %v4212
          %v4921 = vpack.c.b16 %v4217, %v4213
          %v4922 = vpack.c.b16 %v4218, %v4214
          %v4923 = vpack.c.b16 %v4219, %v4215
          %v4924 = vpack.c.b16 %v4224, %v4220
          %v4925 = vpack.c.b16 %v4225, %v4221
          %v4926 = vpack.c.b16 %v4226, %v4222
          %v4927 = vpack.c.b16 %v4227, %v4223
          %v4928 = vpack.c.b16 %v4232, %v4228
          %v4929 = vpack.c.b16 %v4233, %v4229
          %v4930 = vpack.c.b16 %v4234, %v4230
          %v4931 = vpack.c.b16 %v4235, %v4231
          %v4932 = vpack.c.b16 %v4240, %v4236
          %v4933 = vpack.c.b16 %v4241, %v4237
          %v4934 = vpack.c.b16 %v4242, %v4238
          %v4935 = vpack.c.b16 %v4243, %v4239
          %v4936 = vpack.c.b16 %v4248, %v4244
          %v4937 = vpack.c.b16 %v4249, %v4245
          %v4938 = vpack.c.b16 %v4250, %v4246
          %v4939 = vpack.c.b16 %v4251, %v4247
          %v4940 = vpack.c.b16 %v4256, %v4252
          %v4941 = vpack.c.b16 %v4257, %v4253
          %v4942 = vpack.c.b16 %v4258, %v4254
          %v4943 = vpack.c.b16 %v4259, %v4255
          %v4944 = vpack.c.b16 %v4264, %v4260
          %v4945 = vpack.c.b16 %v4265, %v4261
          %v4946 = vpack.c.b16 %v4266, %v4262
          %v4947 = vpack.c.b16 %v4267, %v4263
          %v4948 = vpack.c.b16 %v4272, %v4268
          %v4949 = vpack.c.b16 %v4273, %v4269
          %v4950 = vpack.c.b16 %v4274, %v4270
          %v4951 = vpack.c.b16 %v4275, %v4271
          %v4952 = vpack.c.b16 %v4280, %v4276
          %v4953 = vpack.c.b16 %v4281, %v4277
          %v4954 = vpack.c.b16 %v4282, %v4278
          %v4955 = vpack.c.b16 %v4283, %v4279
          %v4956 = vpack.c.b16 %v4288, %v4284
          %v4957 = vpack.c.b16 %v4289, %v4285
          %v4958 = vpack.c.b16 %v4290, %v4286
          %v4959 = vpack.c.b16 %v4291, %v4287
          %v4960 = vpack.c.b16 %v4296, %v4292
          %v4961 = vpack.c.b16 %v4297, %v4293
          %v4962 = vpack.c.b16 %v4298, %v4294
          %v4963 = vpack.c.b16 %v4299, %v4295
          %v4964 = vpack.c.b16 %v4304, %v4300
          %v4965 = vpack.c.b16 %v4305, %v4301
          %v4966 = vpack.c.b16 %v4306, %v4302
          %v4967 = vpack.c.b16 %v4307, %v4303
          %v4968 = vpack.c.b16 %v4312, %v4308
          %v4969 = vpack.c.b16 %v4313, %v4309
          %v4970 = vpack.c.b16 %v4314, %v4310
          %v4971 = vpack.c.b16 %v4315, %v4311
          %v4972 = vpack.c.b16 %v4320, %v4316
          %v4973 = vpack.c.b16 %v4321, %v4317
          %v4974 = vpack.c.b16 %v4322, %v4318
          %v4975 = vpack.c.b16 %v4323, %v4319
          %v4976 = vpack.c.b16 %v4328, %v4324
          %v4977 = vpack.c.b16 %v4329, %v4325
          %v4978 = vpack.c.b16 %v4330, %v4326
          %v4979 = vpack.c.b16 %v4331, %v4327
          %v4980 = vpack.c.b16 %v4336, %v4332
          %v4981 = vpack.c.b16 %v4337, %v4333
          %v4982 = vpack.c.b16 %v4338, %v4334
          %v4983 = vpack.c.b16 %v4339, %v4335
          %v4984 = vpack.c.b16 %v4344, %v4340
          %v4985 = vpack.c.b16 %v4345, %v4341
          %v4986 = vpack.c.b16 %v4346, %v4342
          %v4987 = vpack.c.b16 %v4347, %v4343
          %v4988 = vpack.c.b16 %v4352, %v4348
          %v4989 = vpack.c.b16 %v4353, %v4349
          %v4990 = vpack.c.b16 %v4354, %v4350
          %v4991 = vpack.c.b16 %v4355, %v4351
          %v4992 = vpack.c.b16 %v4360, %v4356
          %v4993 = vpack.c.b16 %v4361, %v4357
          %v4994 = vpack.c.b16 %v4362, %v4358
          %v4995 = vpack.c.b16 %v4363, %v4359
          %v4996 = vpack.c.b16 %v4368, %v4364
          %v4997 = vpack.c.b16 %v4369, %v4365
          %v4998 = vpack.c.b16 %v4370, %v4366
          %v4999 = vpack.c.b16 %v4371, %v4367
          %v5000 = vpack.c.b16 %v4376, %v4372
          %v5001 = vpack.c.b16 %v4377, %v4373
          %v5002 = vpack.c.b16 %v4378, %v4374
          %v5003 = vpack.c.b16 %v4379, %v4375
          %v5004 = vpack.c.b16 %v4384, %v4380
          %v5005 = vpack.c.b16 %v4385, %v4381
          %v5006 = vpack.c.b16 %v4386, %v4382
          %v5007 = vpack.c.b16 %v4387, %v4383
          %v5008 = vpack.c.b16 %v4392, %v4388
          %v5009 = vpack.c.b16 %v4393, %v4389
          %v5010 = vpack.c.b16 %v4394, %v4390
          %v5011 = vpack.c.b16 %v4395, %v4391
          %v5012 = vpack.c.b16 %v4400, %v4396
          %v5013 = vpack.c.b16 %v4401, %v4397
          %v5014 = vpack.c.b16 %v4402, %v4398
          %v5015 = vpack.c.b16 %v4403, %v4399
          %v5016 = vpack.c.b16 %v4408, %v4404
          %v5017 = vpack.c.b16 %v4409, %v4405
          %v5018 = vpack.c.b16 %v4410, %v4406
          %v5019 = vpack.c.b16 %v4411, %v4407
          %v5020 = vpack.c.b16 %v4416, %v4412
          %v5021 = vpack.c.b16 %v4417, %v4413
          %v5022 = vpack.c.b16 %v4418, %v4414
          %v5023 = vpack.c.b16 %v4419, %v4415
          %v5024 = vpack.c.b16 %v4424, %v4420
          %v5025 = vpack.c.b16 %v4425, %v4421
          %v5026 = vpack.c.b16 %v4426, %v4422
          %v5027 = vpack.c.b16 %v4427, %v4423
          %v5028 = vpack.c.b16 %v4432, %v4428
          %v5029 = vpack.c.b16 %v4433, %v4429
          %v5030 = vpack.c.b16 %v4434, %v4430
          %v5031 = vpack.c.b16 %v4435, %v4431
          %v5032 = vpack.c.b16 %v4440, %v4436
          %v5033 = vpack.c.b16 %v4441, %v4437
          %v5034 = vpack.c.b16 %v4442, %v4438
          %v5035 = vpack.c.b16 %v4443, %v4439
          %v5036 = vpack.c.b16 %v4448, %v4444
          %v5037 = vpack.c.b16 %v4449, %v4445
          %v5038 = vpack.c.b16 %v4450, %v4446
          %v5039 = vpack.c.b16 %v4451, %v4447
          %v5040 = vpack.c.b16 %v4456, %v4452
          %v5041 = vpack.c.b16 %v4457, %v4453
          %v5042 = vpack.c.b16 %v4458, %v4454
          %v5043 = vpack.c.b16 %v4459, %v4455
          %v5044 = vpack.c.b16 %v4464, %v4460
          %v5045 = vpack.c.b16 %v4465, %v4461
          %v5046 = vpack.c.b16 %v4466, %v4462
          %v5047 = vpack.c.b16 %v4467, %v4463
          %v5048 = vpack.c.b16 %v4472, %v4468
          %v5049 = vpack.c.b16 %v4473, %v4469
          %v5050 = vpack.c.b16 %v4474, %v4470
          %v5051 = vpack.c.b16 %v4475, %v4471
          %v5052 = vpack.c.b16 %v4480, %v4476
          %v5053 = vpack.c.b16 %v4481, %v4477
          %v5054 = vpack.c.b16 %v4482, %v4478
          %v5055 = vpack.c.b16 %v4483, %v4479
          %v5056 = vpack.c.b16 %v4488, %v4484
          %v5057 = vpack.c.b16 %v4489, %v4485
          %v5058 = vpack.c.b16 %v4490, %v4486
          %v5059 = vpack.c.b16 %v4491, %v4487
          %v5060 = vpack.c.b16 %v4496, %v4492
          %v5061 = vpack.c.b16 %v4497, %v4493
          %v5062 = vpack.c.b16 %v4498, %v4494
          %v5063 = vpack.c.b16 %v4499, %v4495
          %v5064 = vpack.c.b16 %v4504, %v4500
          %v5065 = vpack.c.b16 %v4505, %v4501
          %v5066 = vpack.c.b16 %v4506, %v4502
          %v5067 = vpack.c.b16 %v4507, %v4503
          %v5068 = vpack.c.b16 %v4512, %v4508
          %v5069 = vpack.c.b16 %v4513, %v4509
          %v5070 = vpack.c.b16 %v4514, %v4510
          %v5071 = vpack.c.b16 %v4515, %v4511
          %v5072 = vpack.c.b16 %v4520, %v4516
          %v5073 = vpack.c.b16 %v4521, %v4517
          %v5074 = vpack.c.b16 %v4522, %v4518
          %v5075 = vpack.c.b16 %v4523, %v4519
          %v5076 = vpack.c.b16 %v4528, %v4524
          %v5077 = vpack.c.b16 %v4529, %v4525
          %v5078 = vpack.c.b16 %v4530, %v4526
          %v5079 = vpack.c.b16 %v4531, %v4527
          %v5080 = vpack.c.b16 %v4536, %v4532
          %v5081 = vpack.c.b16 %v4537, %v4533
          %v5082 = vpack.c.b16 %v4538, %v4534
          %v5083 = vpack.c.b16 %v4539, %v4535
          %v5084 = vpack.c.b16 %v4544, %v4540
          %v5085 = vpack.c.b16 %v4545, %v4541
          %v5086 = vpack.c.b16 %v4546, %v4542
          %v5087 = vpack.c.b16 %v4547, %v4543
          %v5088 = vpack.c.b16 %v4552, %v4548
          %v5089 = vpack.c.b16 %v4553, %v4549
          %v5090 = vpack.c.b16 %v4554, %v4550
          %v5091 = vpack.c.b16 %v4555, %v4551
          %v5092 = vpack.c.b16 %v4560, %v4556
          %v5093 = vpack.c.b16 %v4561, %v4557
          %v5094 = vpack.c.b16 %v4562, %v4558
          %v5095 = vpack.c.b16 %v4563, %v4559
          %v5096 = vpack.c.b16 %v4568, %v4564
          %v5097 = vpack.c.b16 %v4569, %v4565
          %v5098 = vpack.c.b16 %v4570, %v4566
          %v5099 = vpack.c.b16 %v4571, %v4567
          %v5100 = vpack.c.b16 %v4576, %v4572
          %v5101 = vpack.c.b16 %v4577, %v4573
          %v5102 = vpack.c.b16 %v4578, %v4574
          %v5103 = vpack.c.b16 %v4579, %v4575
          %v5104 = vpack.c.b16 %v4584, %v4580
          %v5105 = vpack.c.b16 %v4585, %v4581
          %v5106 = vpack.c.b16 %v4586, %v4582
          %v5107 = vpack.c.b16 %v4587, %v4583
          %v5108 = vpack.c.b16 %v4592, %v4588
          %v5109 = vpack.c.b16 %v4593, %v4589
          %v5110 = vpack.c.b16 %v4594, %v4590
          %v5111 = vpack.c.b16 %v4595, %v4591
          %v5112 = vpack.c.b16 %v4600, %v4596
          %v5113 = vpack.c.b16 %v4601, %v4597
          %v5114 = vpack.c.b16 %v4602, %v4598
          %v5115 = vpack.c.b16 %v4603, %v4599
          %v5629 = vlaneseq
          %v5630 = vshrl.u32 %v5629, 7
          %v5631 = vsub.s32 0, %v5630
          %v5632 = vrot.slane %v3067, %v5631
          %v5633 = vlaneseq
          %v5634 = vshrl.u32 %v5633, 7
          %v5635 = vsub.s32 1, %v5634
          %v5636 = vrot.slane %v3067, %v5635
          %v5637 = vlaneseq
          %v5638 = vshrl.u32 %v5637, 7
          %v5639 = vsub.s32 2, %v5638
          %v5640 = vrot.slane %v3067, %v5639
          %v5641 = vlaneseq
          %v5642 = vshrl.u32 %v5641, 7
          %v5643 = vsub.s32 3, %v5642
          %v5644 = vrot.slane %v3067, %v5643
          %5649 = vmatprep.subr.bf16.mxu0 %v4605
          %5650 = vmatpush1.bf16.msra.mxu0 %v4604
          %5651 = vmatprep.subr.bf16.mxu0 %v4609
          %5652 = vmatpush1.bf16.msra.mxu0 %v4608
          %5653 = vmatprep.subr.bf16.mxu0 %v4613
          %5654 = vmatpush1.bf16.msra.mxu0 %v4612
          %5655 = vmatprep.subr.bf16.mxu0 %v4617
          %5656 = vmatpush1.bf16.msra.mxu0 %v4616
          %5657 = vmatprep.subr.bf16.mxu0 %v4621
          %5658 = vmatpush1.bf16.msra.mxu0 %v4620
          %5659 = vmatprep.subr.bf16.mxu0 %v4625
          %5660 = vmatpush1.bf16.msra.mxu0 %v4624
          %5661 = vmatprep.subr.bf16.mxu0 %v4629
          %5662 = vmatpush1.bf16.msra.mxu0 %v4628
          %5663 = vmatprep.subr.bf16.mxu0 %v4633
          %5664 = vmatpush1.bf16.msra.mxu0 %v4632
          %5665 = vmatprep.subr.bf16.mxu0 %v4637
          %5666 = vmatpush1.bf16.msra.mxu0 %v4636
          %5667 = vmatprep.subr.bf16.mxu0 %v4641
          %5668 = vmatpush1.bf16.msra.mxu0 %v4640
          %5669 = vmatprep.subr.bf16.mxu0 %v4645
          %5670 = vmatpush1.bf16.msra.mxu0 %v4644
          %5671 = vmatprep.subr.bf16.mxu0 %v4649
          %5672 = vmatpush1.bf16.msra.mxu0 %v4648
          %5673 = vmatprep.subr.bf16.mxu0 %v4653
          %5674 = vmatpush1.bf16.msra.mxu0 %v4652
          %5675 = vmatprep.subr.bf16.mxu0 %v4657
          %5676 = vmatpush1.bf16.msra.mxu0 %v4656
          %5677 = vmatprep.subr.bf16.mxu0 %v4661
          %5678 = vmatpush1.bf16.msra.mxu0 %v4660
          %5679 = vmatprep.subr.bf16.mxu0 %v4665
          %5680 = vmatpush1.bf16.msra.mxu0 %v4664
          %5681 = vmatprep.mubr.bf16.mxu0 %v2540
          %5682 = vmatmul.mubr.bf16.gmra.mrb[0].mxu0 %v2539
          %v5683 = vpop.f32.mrb[0].mxu0
          %v5684 = vadd.f32 %v5632, %v5683
          %v5685 = vpop.f32.mrb[0].mxu0
          %v5686 = vadd.f32 %v5636, %v5685
          %v5687 = vpop.f32.mrb[0].mxu0
          %v5688 = vpop.f32.mrb[0].mxu0
          %5689 = vdwg.mxu0
          %5690 = vmatprep.subr.bf16.mxu0 %v4669
          %5691 = vmatpush1.bf16.msra.mxu0 %v4668
          %5692 = vmatprep.subr.bf16.mxu0 %v4673
          %5693 = vmatpush1.bf16.msra.mxu0 %v4672
          %5694 = vmatprep.subr.bf16.mxu0 %v4677
          %5695 = vmatpush1.bf16.msra.mxu0 %v4676
          %5696 = vmatprep.subr.bf16.mxu0 %v4681
          %5697 = vmatpush1.bf16.msra.mxu0 %v4680
          %5698 = vmatprep.subr.bf16.mxu0 %v4685
          %5699 = vmatpush1.bf16.msra.mxu0 %v4684
          %5700 = vmatprep.subr.bf16.mxu0 %v4689
          %5701 = vmatpush1.bf16.msra.mxu0 %v4688
          %5702 = vmatprep.subr.bf16.mxu0 %v4693
          %5703 = vmatpush1.bf16.msra.mxu0 %v4692
          %5704 = vmatprep.subr.bf16.mxu0 %v4697
          %5705 = vmatpush1.bf16.msra.mxu0 %v4696
          %5706 = vmatprep.subr.bf16.mxu0 %v4701
          %5707 = vmatpush1.bf16.msra.mxu0 %v4700
          %5708 = vmatprep.subr.bf16.mxu0 %v4705
          %5709 = vmatpush1.bf16.msra.mxu0 %v4704
          %5710 = vmatprep.subr.bf16.mxu0 %v4709
          %5711 = vmatpush1.bf16.msra.mxu0 %v4708
          %5712 = vmatprep.subr.bf16.mxu0 %v4713
          %5713 = vmatpush1.bf16.msra.mxu0 %v4712
          %5714 = vmatprep.subr.bf16.mxu0 %v4717
          %5715 = vmatpush1.bf16.msra.mxu0 %v4716
          %5716 = vmatprep.subr.bf16.mxu0 %v4721
          %5717 = vmatpush1.bf16.msra.mxu0 %v4720
          %5718 = vmatprep.subr.bf16.mxu0 %v4725
          %5719 = vmatpush1.bf16.msra.mxu0 %v4724
          %5720 = vmatprep.subr.bf16.mxu0 %v4729
          %5721 = vmatpush1.bf16.msra.mxu0 %v4728
          %5722 = vmatprep.mubr.bf16.mxu0 %v2542
          %5723 = vmatmul.mubr.bf16.gmra.mrb[0].mxu0 %v2541
          %v5724 = vpop.f32.mrb[0].mxu0
          %v5725 = vadd.f32 %v5684, %v5724
          %v5726 = vpop.f32.mrb[0].mxu0
          %v5727 = vadd.f32 %v5686, %v5726
          %v5728 = vpop.f32.mrb[0].mxu0
          %v5729 = vpop.f32.mrb[0].mxu0
          %5730 = vdwg.mxu0
          %5731 = vmatprep.subr.bf16.mxu0 %v4733
          %5732 = vmatpush1.bf16.msra.mxu0 %v4732
          %5733 = vmatprep.subr.bf16.mxu0 %v4737
          %5734 = vmatpush1.bf16.msra.mxu0 %v4736
          %5735 = vmatprep.subr.bf16.mxu0 %v4741
          %5736 = vmatpush1.bf16.msra.mxu0 %v4740
          %5737 = vmatprep.subr.bf16.mxu0 %v4745
          %5738 = vmatpush1.bf16.msra.mxu0 %v4744
          %5739 = vmatprep.subr.bf16.mxu0 %v4749
          %5740 = vmatpush1.bf16.msra.mxu0 %v4748
          %5741 = vmatprep.subr.bf16.mxu0 %v4753
          %5742 = vmatpush1.bf16.msra.mxu0 %v4752
          %5743 = vmatprep.subr.bf16.mxu0 %v4757
          %5744 = vmatpush1.bf16.msra.mxu0 %v4756
          %5745 = vmatprep.subr.bf16.mxu0 %v4761
          %5746 = vmatpush1.bf16.msra.mxu0 %v4760
          %5747 = vmatprep.subr.bf16.mxu0 %v4765
          %5748 = vmatpush1.bf16.msra.mxu0 %v4764
          %5749 = vmatprep.subr.bf16.mxu0 %v4769
          %5750 = vmatpush1.bf16.msra.mxu0 %v4768
          %5751 = vmatprep.subr.bf16.mxu0 %v4773
          %5752 = vmatpush1.bf16.msra.mxu0 %v4772
          %5753 = vmatprep.subr.bf16.mxu0 %v4777
          %5754 = vmatpush1.bf16.msra.mxu0 %v4776
          %5755 = vmatprep.subr.bf16.mxu0 %v4781
          %5756 = vmatpush1.bf16.msra.mxu0 %v4780
          %5757 = vmatprep.subr.bf16.mxu0 %v4785
          %5758 = vmatpush1.bf16.msra.mxu0 %v4784
          %5759 = vmatprep.subr.bf16.mxu0 %v4789
          %5760 = vmatpush1.bf16.msra.mxu0 %v4788
          %5761 = vmatprep.subr.bf16.mxu0 %v4793
          %5762 = vmatpush1.bf16.msra.mxu0 %v4792
          %5763 = vmatprep.mubr.bf16.mxu0 %v2544
          %5764 = vmatmul.mubr.bf16.gmra.mrb[0].mxu0 %v2543
          %v5765 = vpop.f32.mrb[0].mxu0
          %v5766 = vadd.f32 %v5725, %v5765
          %v5767 = vpop.f32.mrb[0].mxu0
          %v5768 = vadd.f32 %v5727, %v5767
          %v5769 = vpop.f32.mrb[0].mxu0
          %v5770 = vpop.f32.mrb[0].mxu0
          %5771 = vdwg.mxu0
          %5772 = vmatprep.subr.bf16.mxu0 %v4797
          %5773 = vmatpush1.bf16.msra.mxu0 %v4796
          %5774 = vmatprep.subr.bf16.mxu0 %v4801
          %5775 = vmatpush1.bf16.msra.mxu0 %v4800
          %5776 = vmatprep.subr.bf16.mxu0 %v4805
          %5777 = vmatpush1.bf16.msra.mxu0 %v4804
          %5778 = vmatprep.subr.bf16.mxu0 %v4809
          %5779 = vmatpush1.bf16.msra.mxu0 %v4808
          %5780 = vmatprep.subr.bf16.mxu0 %v4813
          %5781 = vmatpush1.bf16.msra.mxu0 %v4812
          %5782 = vmatprep.subr.bf16.mxu0 %v4817
          %5783 = vmatpush1.bf16.msra.mxu0 %v4816
          %5784 = vmatprep.subr.bf16.mxu0 %v4821
          %5785 = vmatpush1.bf16.msra.mxu0 %v4820
          %5786 = vmatprep.subr.bf16.mxu0 %v4825
          %5787 = vmatpush1.bf16.msra.mxu0 %v4824
          %5788 = vmatprep.subr.bf16.mxu0 %v4829
          %5789 = vmatpush1.bf16.msra.mxu0 %v4828
          %5790 = vmatprep.subr.bf16.mxu0 %v4833
          %5791 = vmatpush1.bf16.msra.mxu0 %v4832
          %5792 = vmatprep.subr.bf16.mxu0 %v4837
          %5793 = vmatpush1.bf16.msra.mxu0 %v4836
          %5794 = vmatprep.subr.bf16.mxu0 %v4841
          %5795 = vmatpush1.bf16.msra.mxu0 %v4840
          %5796 = vmatprep.subr.bf16.mxu0 %v4845
          %5797 = vmatpush1.bf16.msra.mxu0 %v4844
          %5798 = vmatprep.subr.bf16.mxu0 %v4849
          %5799 = vmatpush1.bf16.msra.mxu0 %v4848
          %5800 = vmatprep.subr.bf16.mxu0 %v4853
          %5801 = vmatpush1.bf16.msra.mxu0 %v4852
          %5802 = vmatprep.subr.bf16.mxu0 %v4857
          %5803 = vmatpush1.bf16.msra.mxu0 %v4856
          %5804 = vmatprep.mubr.bf16.mxu0 %v2546
          %5805 = vmatmul.mubr.bf16.gmra.mrb[0].mxu0 %v2545
          %v5806 = vpop.f32.mrb[0].mxu0
          %v5807 = vadd.f32 %v5766, %v5806
          %v5808 = vpop.f32.mrb[0].mxu0
          %v5809 = vadd.f32 %v5768, %v5808
          %v5810 = vpop.f32.mrb[0].mxu0
          %v5811 = vpop.f32.mrb[0].mxu0
          %5812 = vdwg.mxu0
          %5813 = vmatprep.subr.bf16.mxu0 %v4861
          %5814 = vmatpush1.bf16.msra.mxu0 %v4860
          %5815 = vmatprep.subr.bf16.mxu0 %v4865
          %5816 = vmatpush1.bf16.msra.mxu0 %v4864
          %5817 = vmatprep.subr.bf16.mxu0 %v4869
          %5818 = vmatpush1.bf16.msra.mxu0 %v4868
          %5819 = vmatprep.subr.bf16.mxu0 %v4873
          %5820 = vmatpush1.bf16.msra.mxu0 %v4872
          %5821 = vmatprep.subr.bf16.mxu0 %v4877
          %5822 = vmatpush1.bf16.msra.mxu0 %v4876
          %5823 = vmatprep.subr.bf16.mxu0 %v4881
          %5824 = vmatpush1.bf16.msra.mxu0 %v4880
          %5825 = vmatprep.subr.bf16.mxu0 %v4885
          %5826 = vmatpush1.bf16.msra.mxu0 %v4884
          %5827 = vmatprep.subr.bf16.mxu0 %v4889
          %5828 = vmatpush1.bf16.msra.mxu0 %v4888
          %5829 = vmatprep.subr.bf16.mxu0 %v4893
          %5830 = vmatpush1.bf16.msra.mxu0 %v4892
          %5831 = vmatprep.subr.bf16.mxu0 %v4897
          %5832 = vmatpush1.bf16.msra.mxu0 %v4896
          %5833 = vmatprep.subr.bf16.mxu0 %v4901
          %5834 = vmatpush1.bf16.msra.mxu0 %v4900
          %5835 = vmatprep.subr.bf16.mxu0 %v4905
          %5836 = vmatpush1.bf16.msra.mxu0 %v4904
          %5837 = vmatprep.subr.bf16.mxu0 %v4909
          %5838 = vmatpush1.bf16.msra.mxu0 %v4908
          %5839 = vmatprep.subr.bf16.mxu0 %v4913
          %5840 = vmatpush1.bf16.msra.mxu0 %v4912
          %5841 = vmatprep.subr.bf16.mxu0 %v4917
          %5842 = vmatpush1.bf16.msra.mxu0 %v4916
          %5843 = vmatprep.subr.bf16.mxu0 %v4921
          %5844 = vmatpush1.bf16.msra.mxu0 %v4920
          %5845 = vmatprep.mubr.bf16.mxu0 %v2548
          %5846 = vmatmul.mubr.bf16.gmra.mrb[0].mxu0 %v2547
          %v5847 = vpop.f32.mrb[0].mxu0
          %v5848 = vadd.f32 %v5807, %v5847
          %v5849 = vpop.f32.mrb[0].mxu0
          %v5850 = vadd.f32 %v5809, %v5849
          %v5851 = vpop.f32.mrb[0].mxu0
          %v5852 = vpop.f32.mrb[0].mxu0
          %5853 = vdwg.mxu0
          %5854 = vmatprep.subr.bf16.mxu0 %v4925
          %5855 = vmatpush1.bf16.msra.mxu0 %v4924
          %5856 = vmatprep.subr.bf16.mxu0 %v4929
          %5857 = vmatpush1.bf16.msra.mxu0 %v4928
          %5858 = vmatprep.subr.bf16.mxu0 %v4933
          %5859 = vmatpush1.bf16.msra.mxu0 %v4932
          %5860 = vmatprep.subr.bf16.mxu0 %v4937
          %5861 = vmatpush1.bf16.msra.mxu0 %v4936
          %5862 = vmatprep.subr.bf16.mxu0 %v4941
          %5863 = vmatpush1.bf16.msra.mxu0 %v4940
          %5864 = vmatprep.subr.bf16.mxu0 %v4945
          %5865 = vmatpush1.bf16.msra.mxu0 %v4944
          %5866 = vmatprep.subr.bf16.mxu0 %v4949
          %5867 = vmatpush1.bf16.msra.mxu0 %v4948
          %5868 = vmatprep.subr.bf16.mxu0 %v4953
          %5869 = vmatpush1.bf16.msra.mxu0 %v4952
          %5870 = vmatprep.subr.bf16.mxu0 %v4957
          %5871 = vmatpush1.bf16.msra.mxu0 %v4956
          %5872 = vmatprep.subr.bf16.mxu0 %v4961
          %5873 = vmatpush1.bf16.msra.mxu0 %v4960
          %5874 = vmatprep.subr.bf16.mxu0 %v4965
          %5875 = vmatpush1.bf16.msra.mxu0 %v4964
          %5876 = vmatprep.subr.bf16.mxu0 %v4969
          %5877 = vmatpush1.bf16.msra.mxu0 %v4968
          %5878 = vmatprep.subr.bf16.mxu0 %v4973
          %5879 = vmatpush1.bf16.msra.mxu0 %v4972
          %5880 = vmatprep.subr.bf16.mxu0 %v4977
          %5881 = vmatpush1.bf16.msra.mxu0 %v4976
          %5882 = vmatprep.subr.bf16.mxu0 %v4981
          %5883 = vmatpush1.bf16.msra.mxu0 %v4980
          %5884 = vmatprep.subr.bf16.mxu0 %v4985
          %5885 = vmatpush1.bf16.msra.mxu0 %v4984
          %5886 = vmatprep.mubr.bf16.mxu0 %v2550
          %5887 = vmatmul.mubr.bf16.gmra.mrb[0].mxu0 %v2549
          %v5888 = vpop.f32.mrb[0].mxu0
          %v5889 = vadd.f32 %v5848, %v5888
          %v5890 = vpop.f32.mrb[0].mxu0
          %v5891 = vadd.f32 %v5850, %v5890
          %v5892 = vpop.f32.mrb[0].mxu0
          %v5893 = vpop.f32.mrb[0].mxu0
          %5894 = vdwg.mxu0
          %5895 = vmatprep.subr.bf16.mxu0 %v4989
          %5896 = vmatpush1.bf16.msra.mxu0 %v4988
          %5897 = vmatprep.subr.bf16.mxu0 %v4993
          %5898 = vmatpush1.bf16.msra.mxu0 %v4992
          %5899 = vmatprep.subr.bf16.mxu0 %v4997
          %5900 = vmatpush1.bf16.msra.mxu0 %v4996
          %5901 = vmatprep.subr.bf16.mxu0 %v5001
          %5902 = vmatpush1.bf16.msra.mxu0 %v5000
          %5903 = vmatprep.subr.bf16.mxu0 %v5005
          %5904 = vmatpush1.bf16.msra.mxu0 %v5004
          %5905 = vmatprep.subr.bf16.mxu0 %v5009
          %5906 = vmatpush1.bf16.msra.mxu0 %v5008
          %5907 = vmatprep.subr.bf16.mxu0 %v5013
          %5908 = vmatpush1.bf16.msra.mxu0 %v5012
          %5909 = vmatprep.subr.bf16.mxu0 %v5017
          %5910 = vmatpush1.bf16.msra.mxu0 %v5016
          %5911 = vmatprep.subr.bf16.mxu0 %v5021
          %5912 = vmatpush1.bf16.msra.mxu0 %v5020
          %5913 = vmatprep.subr.bf16.mxu0 %v5025
          %5914 = vmatpush1.bf16.msra.mxu0 %v5024
          %5915 = vmatprep.subr.bf16.mxu0 %v5029
          %5916 = vmatpush1.bf16.msra.mxu0 %v5028
          %5917 = vmatprep.subr.bf16.mxu0 %v5033
          %5918 = vmatpush1.bf16.msra.mxu0 %v5032
          %5919 = vmatprep.subr.bf16.mxu0 %v5037
          %5920 = vmatpush1.bf16.msra.mxu0 %v5036
          %5921 = vmatprep.subr.bf16.mxu0 %v5041
          %5922 = vmatpush1.bf16.msra.mxu0 %v5040
          %5923 = vmatprep.subr.bf16.mxu0 %v5045
          %5924 = vmatpush1.bf16.msra.mxu0 %v5044
          %5925 = vmatprep.subr.bf16.mxu0 %v5049
          %5926 = vmatpush1.bf16.msra.mxu0 %v5048
          %5927 = vmatprep.mubr.bf16.mxu0 %v2552
          %5928 = vmatmul.mubr.bf16.gmra.mrb[0].mxu0 %v2551
          %v5929 = vpop.f32.mrb[0].mxu0
          %v5930 = vadd.f32 %v5889, %v5929
          %v5931 = vpop.f32.mrb[0].mxu0
          %v5932 = vadd.f32 %v5891, %v5931
          %v5933 = vpop.f32.mrb[0].mxu0
          %v5934 = vpop.f32.mrb[0].mxu0
          %5935 = vdwg.mxu0
          %5936 = vmatprep.subr.bf16.mxu0 %v5053
          %5937 = vmatpush1.bf16.msra.mxu0 %v5052
          %5938 = vmatprep.subr.bf16.mxu0 %v5057
          %5939 = vmatpush1.bf16.msra.mxu0 %v5056
          %5940 = vmatprep.subr.bf16.mxu0 %v5061
          %5941 = vmatpush1.bf16.msra.mxu0 %v5060
          %5942 = vmatprep.subr.bf16.mxu0 %v5065
          %5943 = vmatpush1.bf16.msra.mxu0 %v5064
          %5944 = vmatprep.subr.bf16.mxu0 %v5069
          %5945 = vmatpush1.bf16.msra.mxu0 %v5068
          %5946 = vmatprep.subr.bf16.mxu0 %v5073
          %5947 = vmatpush1.bf16.msra.mxu0 %v5072
          %5948 = vmatprep.subr.bf16.mxu0 %v5077
          %5949 = vmatpush1.bf16.msra.mxu0 %v5076
          %5950 = vmatprep.subr.bf16.mxu0 %v5081
          %5951 = vmatpush1.bf16.msra.mxu0 %v5080
          %5952 = vmatprep.subr.bf16.mxu0 %v5085
          %5953 = vmatpush1.bf16.msra.mxu0 %v5084
          %5954 = vmatprep.subr.bf16.mxu0 %v5089
          %5955 = vmatpush1.bf16.msra.mxu0 %v5088
          %5956 = vmatprep.subr.bf16.mxu0 %v5093
          %5957 = vmatpush1.bf16.msra.mxu0 %v5092
          %5958 = vmatprep.subr.bf16.mxu0 %v5097
          %5959 = vmatpush1.bf16.msra.mxu0 %v5096
          %5960 = vmatprep.subr.bf16.mxu0 %v5101
          %5961 = vmatpush1.bf16.msra.mxu0 %v5100
          %5962 = vmatprep.subr.bf16.mxu0 %v5105
          %5963 = vmatpush1.bf16.msra.mxu0 %v5104
          %5964 = vmatprep.subr.bf16.mxu0 %v5109
          %5965 = vmatpush1.bf16.msra.mxu0 %v5108
          %5966 = vmatprep.subr.bf16.mxu0 %v5113
          %5967 = vmatpush1.bf16.msra.mxu0 %v5112
          %5968 = vmatprep.mubr.bf16.mxu0 %v2554
          %5969 = vmatmul.mubr.bf16.gmra.mrb[0].mxu0 %v2553
          %v5970 = vpop.f32.mrb[0].mxu0
          %v5971 = vadd.f32 %v5930, %v5970
          %v5972 = vpop.f32.mrb[0].mxu0
          %v5973 = vadd.f32 %v5932, %v5972
          %v5974 = vpop.f32.mrb[0].mxu0
          %v5975 = vpop.f32.mrb[0].mxu0
          %5976 = vdwg.mxu0
          %5977 = vmatprep.subr.bf16.mxu0 %v4607
          %5978 = vmatpush1.bf16.msra.mxu0 %v4606
          %5979 = vmatprep.subr.bf16.mxu0 %v4611
          %5980 = vmatpush1.bf16.msra.mxu0 %v4610
          %5981 = vmatprep.subr.bf16.mxu0 %v4615
          %5982 = vmatpush1.bf16.msra.mxu0 %v4614
          %5983 = vmatprep.subr.bf16.mxu0 %v4619
          %5984 = vmatpush1.bf16.msra.mxu0 %v4618
          %5985 = vmatprep.subr.bf16.mxu0 %v4623
          %5986 = vmatpush1.bf16.msra.mxu0 %v4622
          %5987 = vmatprep.subr.bf16.mxu0 %v4627
          %5988 = vmatpush1.bf16.msra.mxu0 %v4626
          %5989 = vmatprep.subr.bf16.mxu0 %v4631
          %5990 = vmatpush1.bf16.msra.mxu0 %v4630
          %5991 = vmatprep.subr.bf16.mxu0 %v4635
          %5992 = vmatpush1.bf16.msra.mxu0 %v4634
          %5993 = vmatprep.subr.bf16.mxu0 %v4639
          %5994 = vmatpush1.bf16.msra.mxu0 %v4638
          %5995 = vmatprep.subr.bf16.mxu0 %v4643
          %5996 = vmatpush1.bf16.msra.mxu0 %v4642
          %5997 = vmatprep.subr.bf16.mxu0 %v4647
          %5998 = vmatpush1.bf16.msra.mxu0 %v4646
          %5999 = vmatprep.subr.bf16.mxu0 %v4651
          %6000 = vmatpush1.bf16.msra.mxu0 %v4650
          %6001 = vmatprep.subr.bf16.mxu0 %v4655
          %6002 = vmatpush1.bf16.msra.mxu0 %v4654
          %6003 = vmatprep.subr.bf16.mxu0 %v4659
          %6004 = vmatpush1.bf16.msra.mxu0 %v4658
          %6005 = vmatprep.subr.bf16.mxu0 %v4663
          %6006 = vmatpush1.bf16.msra.mxu0 %v4662
          %6007 = vmatprep.subr.bf16.mxu0 %v4667
          %6008 = vmatpush1.bf16.msra.mxu0 %v4666
          %6009 = vmatprep.mubr.bf16.mxu0 %v2540
          %6010 = vmatmul.mubr.bf16.gmra.mrb[0].mxu0 %v2539
          %v6011 = vpop.f32.mrb[0].mxu0
          %v6012 = vadd.f32 %v5640, %v6011
          %v6013 = vpop.f32.mrb[0].mxu0
          %v6014 = vadd.f32 %v5644, %v6013
          %v6015 = vpop.f32.mrb[0].mxu0
          %v6016 = vpop.f32.mrb[0].mxu0
          %6017 = vdwg.mxu0
          %6018 = vmatprep.subr.bf16.mxu0 %v4671
          %6019 = vmatpush1.bf16.msra.mxu0 %v4670
          %6020 = vmatprep.subr.bf16.mxu0 %v4675
          %6021 = vmatpush1.bf16.msra.mxu0 %v4674
          %6022 = vmatprep.subr.bf16.mxu0 %v4679
          %6023 = vmatpush1.bf16.msra.mxu0 %v4678
          %6024 = vmatprep.subr.bf16.mxu0 %v4683
          %6025 = vmatpush1.bf16.msra.mxu0 %v4682
          %6026 = vmatprep.subr.bf16.mxu0 %v4687
          %6027 = vmatpush1.bf16.msra.mxu0 %v4686
          %6028 = vmatprep.subr.bf16.mxu0 %v4691
          %6029 = vmatpush1.bf16.msra.mxu0 %v4690
          %6030 = vmatprep.subr.bf16.mxu0 %v4695
          %6031 = vmatpush1.bf16.msra.mxu0 %v4694
          %6032 = vmatprep.subr.bf16.mxu0 %v4699
          %6033 = vmatpush1.bf16.msra.mxu0 %v4698
          %6034 = vmatprep.subr.bf16.mxu0 %v4703
          %6035 = vmatpush1.bf16.msra.mxu0 %v4702
          %6036 = vmatprep.subr.bf16.mxu0 %v4707
          %6037 = vmatpush1.bf16.msra.mxu0 %v4706
          %6038 = vmatprep.subr.bf16.mxu0 %v4711
          %6039 = vmatpush1.bf16.msra.mxu0 %v4710
          %6040 = vmatprep.subr.bf16.mxu0 %v4715
          %6041 = vmatpush1.bf16.msra.mxu0 %v4714
          %6042 = vmatprep.subr.bf16.mxu0 %v4719
          %6043 = vmatpush1.bf16.msra.mxu0 %v4718
          %6044 = vmatprep.subr.bf16.mxu0 %v4723
          %6045 = vmatpush1.bf16.msra.mxu0 %v4722
          %6046 = vmatprep.subr.bf16.mxu0 %v4727
          %6047 = vmatpush1.bf16.msra.mxu0 %v4726
          %6048 = vmatprep.subr.bf16.mxu0 %v4731
          %6049 = vmatpush1.bf16.msra.mxu0 %v4730
          %6050 = vmatprep.mubr.bf16.mxu0 %v2542
          %6051 = vmatmul.mubr.bf16.gmra.mrb[0].mxu0 %v2541
          %v6052 = vpop.f32.mrb[0].mxu0
          %v6053 = vadd.f32 %v6012, %v6052
          %v6054 = vpop.f32.mrb[0].mxu0
          %v6055 = vadd.f32 %v6014, %v6054
          %v6056 = vpop.f32.mrb[0].mxu0
          %v6057 = vpop.f32.mrb[0].mxu0
          %6058 = vdwg.mxu0
          %6059 = vmatprep.subr.bf16.mxu0 %v4735
          %6060 = vmatpush1.bf16.msra.mxu0 %v4734
          %6061 = vmatprep.subr.bf16.mxu0 %v4739
          %6062 = vmatpush1.bf16.msra.mxu0 %v4738
          %6063 = vmatprep.subr.bf16.mxu0 %v4743
          %6064 = vmatpush1.bf16.msra.mxu0 %v4742
          %6065 = vmatprep.subr.bf16.mxu0 %v4747
          %6066 = vmatpush1.bf16.msra.mxu0 %v4746
          %6067 = vmatprep.subr.bf16.mxu0 %v4751
          %6068 = vmatpush1.bf16.msra.mxu0 %v4750
          %6069 = vmatprep.subr.bf16.mxu0 %v4755
          %6070 = vmatpush1.bf16.msra.mxu0 %v4754
          %6071 = vmatprep.subr.bf16.mxu0 %v4759
          %6072 = vmatpush1.bf16.msra.mxu0 %v4758
          %6073 = vmatprep.subr.bf16.mxu0 %v4763
          %6074 = vmatpush1.bf16.msra.mxu0 %v4762
          %6075 = vmatprep.subr.bf16.mxu0 %v4767
          %6076 = vmatpush1.bf16.msra.mxu0 %v4766
          %6077 = vmatprep.subr.bf16.mxu0 %v4771
          %6078 = vmatpush1.bf16.msra.mxu0 %v4770
          %6079 = vmatprep.subr.bf16.mxu0 %v4775
          %6080 = vmatpush1.bf16.msra.mxu0 %v4774
          %6081 = vmatprep.subr.bf16.mxu0 %v4779
          %6082 = vmatpush1.bf16.msra.mxu0 %v4778
          %6083 = vmatprep.subr.bf16.mxu0 %v4783
          %6084 = vmatpush1.bf16.msra.mxu0 %v4782
          %6085 = vmatprep.subr.bf16.mxu0 %v4787
          %6086 = vmatpush1.bf16.msra.mxu0 %v4786
          %6087 = vmatprep.subr.bf16.mxu0 %v4791
          %6088 = vmatpush1.bf16.msra.mxu0 %v4790
          %6089 = vmatprep.subr.bf16.mxu0 %v4795
          %6090 = vmatpush1.bf16.msra.mxu0 %v4794
          %6091 = vmatprep.mubr.bf16.mxu0 %v2544
          %6092 = vmatmul.mubr.bf16.gmra.mrb[0].mxu0 %v2543
          %v6093 = vpop.f32.mrb[0].mxu0
          %v6094 = vadd.f32 %v6053, %v6093
          %v6095 = vpop.f32.mrb[0].mxu0
          %v6096 = vadd.f32 %v6055, %v6095
          %v6097 = vpop.f32.mrb[0].mxu0
          %v6098 = vpop.f32.mrb[0].mxu0
          %6099 = vdwg.mxu0
          %6100 = vmatprep.subr.bf16.mxu0 %v4799
          %6101 = vmatpush1.bf16.msra.mxu0 %v4798
          %6102 = vmatprep.subr.bf16.mxu0 %v4803
          %6103 = vmatpush1.bf16.msra.mxu0 %v4802
          %6104 = vmatprep.subr.bf16.mxu0 %v4807
          %6105 = vmatpush1.bf16.msra.mxu0 %v4806
          %6106 = vmatprep.subr.bf16.mxu0 %v4811
          %6107 = vmatpush1.bf16.msra.mxu0 %v4810
          %6108 = vmatprep.subr.bf16.mxu0 %v4815
          %6109 = vmatpush1.bf16.msra.mxu0 %v4814
          %6110 = vmatprep.subr.bf16.mxu0 %v4819
          %6111 = vmatpush1.bf16.msra.mxu0 %v4818
          %6112 = vmatprep.subr.bf16.mxu0 %v4823
          %6113 = vmatpush1.bf16.msra.mxu0 %v4822
          %6114 = vmatprep.subr.bf16.mxu0 %v4827
          %6115 = vmatpush1.bf16.msra.mxu0 %v4826
          %6116 = vmatprep.subr.bf16.mxu0 %v4831
          %6117 = vmatpush1.bf16.msra.mxu0 %v4830
          %6118 = vmatprep.subr.bf16.mxu0 %v4835
          %6119 = vmatpush1.bf16.msra.mxu0 %v4834
          %6120 = vmatprep.subr.bf16.mxu0 %v4839
          %6121 = vmatpush1.bf16.msra.mxu0 %v4838
          %6122 = vmatprep.subr.bf16.mxu0 %v4843
          %6123 = vmatpush1.bf16.msra.mxu0 %v4842
          %6124 = vmatprep.subr.bf16.mxu0 %v4847
          %6125 = vmatpush1.bf16.msra.mxu0 %v4846
          %6126 = vmatprep.subr.bf16.mxu0 %v4851
          %6127 = vmatpush1.bf16.msra.mxu0 %v4850
          %6128 = vmatprep.subr.bf16.mxu0 %v4855
          %6129 = vmatpush1.bf16.msra.mxu0 %v4854
          %6130 = vmatprep.subr.bf16.mxu0 %v4859
          %6131 = vmatpush1.bf16.msra.mxu0 %v4858
          %6132 = vmatprep.mubr.bf16.mxu0 %v2546
          %6133 = vmatmul.mubr.bf16.gmra.mrb[0].mxu0 %v2545
          %v6134 = vpop.f32.mrb[0].mxu0
          %v6135 = vadd.f32 %v6094, %v6134
          %v6136 = vpop.f32.mrb[0].mxu0
          %v6137 = vadd.f32 %v6096, %v6136
          %v6138 = vpop.f32.mrb[0].mxu0
          %v6139 = vpop.f32.mrb[0].mxu0
          %6140 = vdwg.mxu0
          %6141 = vmatprep.subr.bf16.mxu0 %v4863
          %6142 = vmatpush1.bf16.msra.mxu0 %v4862
          %6143 = vmatprep.subr.bf16.mxu0 %v4867
          %6144 = vmatpush1.bf16.msra.mxu0 %v4866
          %6145 = vmatprep.subr.bf16.mxu0 %v4871
          %6146 = vmatpush1.bf16.msra.mxu0 %v4870
          %6147 = vmatprep.subr.bf16.mxu0 %v4875
          %6148 = vmatpush1.bf16.msra.mxu0 %v4874
          %6149 = vmatprep.subr.bf16.mxu0 %v4879
          %6150 = vmatpush1.bf16.msra.mxu0 %v4878
          %6151 = vmatprep.subr.bf16.mxu0 %v4883
          %6152 = vmatpush1.bf16.msra.mxu0 %v4882
          %6153 = vmatprep.subr.bf16.mxu0 %v4887
          %6154 = vmatpush1.bf16.msra.mxu0 %v4886
          %6155 = vmatprep.subr.bf16.mxu0 %v4891
          %6156 = vmatpush1.bf16.msra.mxu0 %v4890
          %6157 = vmatprep.subr.bf16.mxu0 %v4895
          %6158 = vmatpush1.bf16.msra.mxu0 %v4894
          %6159 = vmatprep.subr.bf16.mxu0 %v4899
          %6160 = vmatpush1.bf16.msra.mxu0 %v4898
          %6161 = vmatprep.subr.bf16.mxu0 %v4903
          %6162 = vmatpush1.bf16.msra.mxu0 %v4902
          %6163 = vmatprep.subr.bf16.mxu0 %v4907
          %6164 = vmatpush1.bf16.msra.mxu0 %v4906
          %6165 = vmatprep.subr.bf16.mxu0 %v4911
          %6166 = vmatpush1.bf16.msra.mxu0 %v4910
          %6167 = vmatprep.subr.bf16.mxu0 %v4915
          %6168 = vmatpush1.bf16.msra.mxu0 %v4914
          %6169 = vmatprep.subr.bf16.mxu0 %v4919
          %6170 = vmatpush1.bf16.msra.mxu0 %v4918
          %6171 = vmatprep.subr.bf16.mxu0 %v4923
          %6172 = vmatpush1.bf16.msra.mxu0 %v4922
          %6173 = vmatprep.mubr.bf16.mxu0 %v2548
          %6174 = vmatmul.mubr.bf16.gmra.mrb[0].mxu0 %v2547
          %v6175 = vpop.f32.mrb[0].mxu0
          %v6176 = vadd.f32 %v6135, %v6175
          %v6177 = vpop.f32.mrb[0].mxu0
          %v6178 = vadd.f32 %v6137, %v6177
          %v6179 = vpop.f32.mrb[0].mxu0
          %v6180 = vpop.f32.mrb[0].mxu0
          %6181 = vdwg.mxu0
          %6182 = vmatprep.subr.bf16.mxu0 %v4927
          %6183 = vmatpush1.bf16.msra.mxu0 %v4926
          %6184 = vmatprep.subr.bf16.mxu0 %v4931
          %6185 = vmatpush1.bf16.msra.mxu0 %v4930
          %6186 = vmatprep.subr.bf16.mxu0 %v4935
          %6187 = vmatpush1.bf16.msra.mxu0 %v4934
          %6188 = vmatprep.subr.bf16.mxu0 %v4939
          %6189 = vmatpush1.bf16.msra.mxu0 %v4938
          %6190 = vmatprep.subr.bf16.mxu0 %v4943
          %6191 = vmatpush1.bf16.msra.mxu0 %v4942
          %6192 = vmatprep.subr.bf16.mxu0 %v4947
          %6193 = vmatpush1.bf16.msra.mxu0 %v4946
          %6194 = vmatprep.subr.bf16.mxu0 %v4951
          %6195 = vmatpush1.bf16.msra.mxu0 %v4950
          %6196 = vmatprep.subr.bf16.mxu0 %v4955
          %6197 = vmatpush1.bf16.msra.mxu0 %v4954
          %6198 = vmatprep.subr.bf16.mxu0 %v4959
          %6199 = vmatpush1.bf16.msra.mxu0 %v4958
          %6200 = vmatprep.subr.bf16.mxu0 %v4963
          %6201 = vmatpush1.bf16.msra.mxu0 %v4962
          %6202 = vmatprep.subr.bf16.mxu0 %v4967
          %6203 = vmatpush1.bf16.msra.mxu0 %v4966
          %6204 = vmatprep.subr.bf16.mxu0 %v4971
          %6205 = vmatpush1.bf16.msra.mxu0 %v4970
          %6206 = vmatprep.subr.bf16.mxu0 %v4975
          %6207 = vmatpush1.bf16.msra.mxu0 %v4974
          %6208 = vmatprep.subr.bf16.mxu0 %v4979
          %6209 = vmatpush1.bf16.msra.mxu0 %v4978
          %6210 = vmatprep.subr.bf16.mxu0 %v4983
          %6211 = vmatpush1.bf16.msra.mxu0 %v4982
          %6212 = vmatprep.subr.bf16.mxu0 %v4987
          %6213 = vmatpush1.bf16.msra.mxu0 %v4986
          %6214 = vmatprep.mubr.bf16.mxu0 %v2550
          %6215 = vmatmul.mubr.bf16.gmra.mrb[0].mxu0 %v2549
          %v6216 = vpop.f32.mrb[0].mxu0
          %v6217 = vadd.f32 %v6176, %v6216
          %v6218 = vpop.f32.mrb[0].mxu0
          %v6219 = vadd.f32 %v6178, %v6218
          %v6220 = vpop.f32.mrb[0].mxu0
          %v6221 = vpop.f32.mrb[0].mxu0
          %6222 = vdwg.mxu0
          %6223 = vmatprep.subr.bf16.mxu0 %v4991
          %6224 = vmatpush1.bf16.msra.mxu0 %v4990
          %6225 = vmatprep.subr.bf16.mxu0 %v4995
          %6226 = vmatpush1.bf16.msra.mxu0 %v4994
          %6227 = vmatprep.subr.bf16.mxu0 %v4999
          %6228 = vmatpush1.bf16.msra.mxu0 %v4998
          %6229 = vmatprep.subr.bf16.mxu0 %v5003
          %6230 = vmatpush1.bf16.msra.mxu0 %v5002
          %6231 = vmatprep.subr.bf16.mxu0 %v5007
          %6232 = vmatpush1.bf16.msra.mxu0 %v5006
          %6233 = vmatprep.subr.bf16.mxu0 %v5011
          %6234 = vmatpush1.bf16.msra.mxu0 %v5010
          %6235 = vmatprep.subr.bf16.mxu0 %v5015
          %6236 = vmatpush1.bf16.msra.mxu0 %v5014
          %6237 = vmatprep.subr.bf16.mxu0 %v5019
          %6238 = vmatpush1.bf16.msra.mxu0 %v5018
          %6239 = vmatprep.subr.bf16.mxu0 %v5023
          %6240 = vmatpush1.bf16.msra.mxu0 %v5022
          %6241 = vmatprep.subr.bf16.mxu0 %v5027
          %6242 = vmatpush1.bf16.msra.mxu0 %v5026
          %6243 = vmatprep.subr.bf16.mxu0 %v5031
          %6244 = vmatpush1.bf16.msra.mxu0 %v5030
          %6245 = vmatprep.subr.bf16.mxu0 %v5035
          %6246 = vmatpush1.bf16.msra.mxu0 %v5034
          %6247 = vmatprep.subr.bf16.mxu0 %v5039
          %6248 = vmatpush1.bf16.msra.mxu0 %v5038
          %6249 = vmatprep.subr.bf16.mxu0 %v5043
          %6250 = vmatpush1.bf16.msra.mxu0 %v5042
          %6251 = vmatprep.subr.bf16.mxu0 %v5047
          %6252 = vmatpush1.bf16.msra.mxu0 %v5046
          %6253 = vmatprep.subr.bf16.mxu0 %v5051
          %6254 = vmatpush1.bf16.msra.mxu0 %v5050
          %6255 = vmatprep.mubr.bf16.mxu0 %v2552
          %6256 = vmatmul.mubr.bf16.gmra.mrb[0].mxu0 %v2551
          %v6257 = vpop.f32.mrb[0].mxu0
          %v6258 = vadd.f32 %v6217, %v6257
          %v6259 = vpop.f32.mrb[0].mxu0
          %v6260 = vadd.f32 %v6219, %v6259
          %v6261 = vpop.f32.mrb[0].mxu0
          %v6262 = vpop.f32.mrb[0].mxu0
          %6263 = vdwg.mxu0
          %6264 = vmatprep.subr.bf16.mxu0 %v5055
          %6265 = vmatpush1.bf16.msra.mxu0 %v5054
          %6266 = vmatprep.subr.bf16.mxu0 %v5059
          %6267 = vmatpush1.bf16.msra.mxu0 %v5058
          %6268 = vmatprep.subr.bf16.mxu0 %v5063
          %6269 = vmatpush1.bf16.msra.mxu0 %v5062
          %6270 = vmatprep.subr.bf16.mxu0 %v5067
          %6271 = vmatpush1.bf16.msra.mxu0 %v5066
          %6272 = vmatprep.subr.bf16.mxu0 %v5071
          %6273 = vmatpush1.bf16.msra.mxu0 %v5070
          %6274 = vmatprep.subr.bf16.mxu0 %v5075
          %6275 = vmatpush1.bf16.msra.mxu0 %v5074
          %6276 = vmatprep.subr.bf16.mxu0 %v5079
          %6277 = vmatpush1.bf16.msra.mxu0 %v5078
          %6278 = vmatprep.subr.bf16.mxu0 %v5083
          %6279 = vmatpush1.bf16.msra.mxu0 %v5082
          %6280 = vmatprep.subr.bf16.mxu0 %v5087
          %6281 = vmatpush1.bf16.msra.mxu0 %v5086
          %6282 = vmatprep.subr.bf16.mxu0 %v5091
          %6283 = vmatpush1.bf16.msra.mxu0 %v5090
          %6284 = vmatprep.subr.bf16.mxu0 %v5095
          %6285 = vmatpush1.bf16.msra.mxu0 %v5094
          %6286 = vmatprep.subr.bf16.mxu0 %v5099
          %6287 = vmatpush1.bf16.msra.mxu0 %v5098
          %6288 = vmatprep.subr.bf16.mxu0 %v5103
          %6289 = vmatpush1.bf16.msra.mxu0 %v5102
          %6290 = vmatprep.subr.bf16.mxu0 %v5107
          %6291 = vmatpush1.bf16.msra.mxu0 %v5106
          %6292 = vmatprep.subr.bf16.mxu0 %v5111
          %6293 = vmatpush1.bf16.msra.mxu0 %v5110
          %6294 = vmatprep.subr.bf16.mxu0 %v5115
          %6295 = vmatpush1.bf16.msra.mxu0 %v5114
          %6296 = vmatprep.mubr.bf16.mxu0 %v2554
          %6297 = vmatmul.mubr.bf16.gmra.mrb[0].mxu0 %v2553
          %v6298 = vpop.f32.mrb[0].mxu0
          %v6299 = vadd.f32 %v6258, %v6298
          %v6300 = vpop.f32.mrb[0].mxu0
          %v6301 = vadd.f32 %v6260, %v6300
          %v6302 = vpop.f32.mrb[0].mxu0
          %v6303 = vpop.f32.mrb[0].mxu0
          %6304 = vdwg.mxu0
          %v6305 = vmax.f32 %v5971, 0.0
          %v6306 = vmax.f32 %v5973, 0.0
          %v6307 = vmax.f32 %v6299, 0.0
          %v6308 = vmax.f32 %v6301, 0.0
          %v6309 = vpack.c.bf16 %v6305, %v6305
          %v6310 = vpack.c.bf16 %v6306, %v6306
          %v6311 = vpack.c.bf16 %v6307, %v6307
          %v6312 = vpack.c.bf16 %v6308, %v6308
          %v6313 = vld [vmem:[#allocation11] sm:$0xff]
          %v6314 = vld [vmem:[#allocation11 + $0x8] sm:$0xff]
          %v6315 = vld [vmem:[#allocation11 + $0x10] sm:$0xff]
          %v6316 = vld [vmem:[#allocation11 + $0x18] sm:$0xff]
          %v6317 = vld [vmem:[#allocation11 + $0x20] sm:$0xff]
          %v6318 = vld [vmem:[#allocation11 + $0x28] sm:$0xff]
          %v6319 = vld [vmem:[#allocation11 + $0x30] sm:$0xff]
          %v6320 = vld [vmem:[#allocation11 + $0x38] sm:$0xff]
          %v6321 = vld [vmem:[#allocation11 + $0x40] sm:$0xff]
          %v6322 = vld [vmem:[#allocation11 + $0x48] sm:$0xff]
          %v6323 = vld [vmem:[#allocation11 + $0x50] sm:$0xff]
          %v6324 = vld [vmem:[#allocation11 + $0x58] sm:$0xff]
          %v6325 = vld [vmem:[#allocation11 + $0x60] sm:$0xff]
          %v6326 = vld [vmem:[#allocation11 + $0x68] sm:$0xff]
          %v6327 = vld [vmem:[#allocation11 + $0x70] sm:$0xff]
          %v6328 = vld [vmem:[#allocation11 + $0x78] sm:$0xff]
          %v6329 = vld [vmem:[#allocation11 + $0x80] sm:$0xff]
          %v6330 = vld [vmem:[#allocation11 + $0x88] sm:$0xff]
          %v6331 = vld [vmem:[#allocation11 + $0x90] sm:$0xff]
          %v6332 = vld [vmem:[#allocation11 + $0x98] sm:$0xff]
          %v6333 = vld [vmem:[#allocation11 + $0xa0] sm:$0xff]
          %v6334 = vld [vmem:[#allocation11 + $0xa8] sm:$0xff]
          %v6335 = vld [vmem:[#allocation11 + $0xb0] sm:$0xff]
          %v6336 = vld [vmem:[#allocation11 + $0xb8] sm:$0xff]
          %v6337 = vld [vmem:[#allocation11 + $0xc0] sm:$0xff]
          %v6338 = vld [vmem:[#allocation11 + $0xc8] sm:$0xff]
          %v6339 = vld [vmem:[#allocation11 + $0xd0] sm:$0xff]
          %v6340 = vld [vmem:[#allocation11 + $0xd8] sm:$0xff]
          %v6341 = vld [vmem:[#allocation11 + $0xe0] sm:$0xff]
          %v6342 = vld [vmem:[#allocation11 + $0xe8] sm:$0xff]
          %v6343 = vld [vmem:[#allocation11 + $0xf0] sm:$0xff]
          %v6344 = vld [vmem:[#allocation11 + $0xf8] sm:$0xff]
          %v6345 = vld [vmem:[#allocation11 + $0x100] sm:$0xff]
          %v6346 = vld [vmem:[#allocation11 + $0x108] sm:$0xff]
          %v6347 = vld [vmem:[#allocation11 + $0x110] sm:$0xff]
          %v6348 = vld [vmem:[#allocation11 + $0x118] sm:$0xff]
          %v6349 = vld [vmem:[#allocation11 + $0x120] sm:$0xff]
          %v6350 = vld [vmem:[#allocation11 + $0x128] sm:$0xff]
          %v6351 = vld [vmem:[#allocation11 + $0x130] sm:$0xff]
          %v6352 = vld [vmem:[#allocation11 + $0x138] sm:$0xff]
          %v6353 = vld [vmem:[#allocation11 + $0x140] sm:$0xff]
          %v6354 = vld [vmem:[#allocation11 + $0x148] sm:$0xff]
          %v6355 = vld [vmem:[#allocation11 + $0x150] sm:$0xff]
          %v6356 = vld [vmem:[#allocation11 + $0x158] sm:$0xff]
          %v6357 = vld [vmem:[#allocation11 + $0x160] sm:$0xff]
          %v6358 = vld [vmem:[#allocation11 + $0x168] sm:$0xff]
          %v6359 = vld [vmem:[#allocation11 + $0x170] sm:$0xff]
          %v6360 = vld [vmem:[#allocation11 + $0x178] sm:$0xff]
          %v6361 = vld [vmem:[#allocation11 + $0x180] sm:$0xff]
          %v6362 = vld [vmem:[#allocation11 + $0x188] sm:$0xff]
          %v6363 = vld [vmem:[#allocation11 + $0x190] sm:$0xff]
          %v6364 = vld [vmem:[#allocation11 + $0x198] sm:$0xff]
          %v6365 = vld [vmem:[#allocation11 + $0x1a0] sm:$0xff]
          %v6366 = vld [vmem:[#allocation11 + $0x1a8] sm:$0xff]
          %v6367 = vld [vmem:[#allocation11 + $0x1b0] sm:$0xff]
          %v6368 = vld [vmem:[#allocation11 + $0x1b8] sm:$0xff]
          %v6369 = vld [vmem:[#allocation11 + $0x1c0] sm:$0xff]
          %v6370 = vld [vmem:[#allocation11 + $0x1c8] sm:$0xff]
          %v6371 = vld [vmem:[#allocation11 + $0x1d0] sm:$0xff]
          %v6372 = vld [vmem:[#allocation11 + $0x1d8] sm:$0xff]
          %v6373 = vld [vmem:[#allocation11 + $0x1e0] sm:$0xff]
          %v6374 = vld [vmem:[#allocation11 + $0x1e8] sm:$0xff]
          %v6375 = vld [vmem:[#allocation11 + $0x1f0] sm:$0xff]
          %v6376 = vld [vmem:[#allocation11 + $0x1f8] sm:$0xff]
          %v6377 = vld [vmem:[#allocation12] sm:$0x3]
          %v6442 = vunpack.c.l.b16 %v6313
          %v6443 = vunpack.c.h.b16 %v6313
          %v6444 = vunpack.c.l.b16 %v6314
          %v6445 = vunpack.c.h.b16 %v6314
          %v6446 = vunpack.c.l.b16 %v6315
          %v6447 = vunpack.c.h.b16 %v6315
          %v6448 = vunpack.c.l.b16 %v6316
          %v6449 = vunpack.c.h.b16 %v6316
          %v6450 = vunpack.c.l.b16 %v6317
          %v6451 = vunpack.c.h.b16 %v6317
          %v6452 = vunpack.c.l.b16 %v6318
          %v6453 = vunpack.c.h.b16 %v6318
          %v6454 = vunpack.c.l.b16 %v6319
          %v6455 = vunpack.c.h.b16 %v6319
          %v6456 = vunpack.c.l.b16 %v6320
          %v6457 = vunpack.c.h.b16 %v6320
          %v6458 = vunpack.c.l.b16 %v6321
          %v6459 = vunpack.c.h.b16 %v6321
          %v6460 = vunpack.c.l.b16 %v6322
          %v6461 = vunpack.c.h.b16 %v6322
          %v6462 = vunpack.c.l.b16 %v6323
          %v6463 = vunpack.c.h.b16 %v6323
          %v6464 = vunpack.c.l.b16 %v6324
          %v6465 = vunpack.c.h.b16 %v6324
          %v6466 = vunpack.c.l.b16 %v6325
          %v6467 = vunpack.c.h.b16 %v6325
          %v6468 = vunpack.c.l.b16 %v6326
          %v6469 = vunpack.c.h.b16 %v6326
          %v6470 = vunpack.c.l.b16 %v6327
          %v6471 = vunpack.c.h.b16 %v6327
          %v6472 = vunpack.c.l.b16 %v6328
          %v6473 = vunpack.c.h.b16 %v6328
          %v6474 = vunpack.c.l.b16 %v6329
          %v6475 = vunpack.c.h.b16 %v6329
          %v6476 = vunpack.c.l.b16 %v6330
          %v6477 = vunpack.c.h.b16 %v6330
          %v6478 = vunpack.c.l.b16 %v6331
          %v6479 = vunpack.c.h.b16 %v6331
          %v6480 = vunpack.c.l.b16 %v6332
          %v6481 = vunpack.c.h.b16 %v6332
          %v6482 = vunpack.c.l.b16 %v6333
          %v6483 = vunpack.c.h.b16 %v6333
          %v6484 = vunpack.c.l.b16 %v6334
          %v6485 = vunpack.c.h.b16 %v6334
          %v6486 = vunpack.c.l.b16 %v6335
          %v6487 = vunpack.c.h.b16 %v6335
          %v6488 = vunpack.c.l.b16 %v6336
          %v6489 = vunpack.c.h.b16 %v6336
          %v6490 = vunpack.c.l.b16 %v6337
          %v6491 = vunpack.c.h.b16 %v6337
          %v6492 = vunpack.c.l.b16 %v6338
          %v6493 = vunpack.c.h.b16 %v6338
          %v6494 = vunpack.c.l.b16 %v6339
          %v6495 = vunpack.c.h.b16 %v6339
          %v6496 = vunpack.c.l.b16 %v6340
          %v6497 = vunpack.c.h.b16 %v6340
          %v6498 = vunpack.c.l.b16 %v6341
          %v6499 = vunpack.c.h.b16 %v6341
          %v6500 = vunpack.c.l.b16 %v6342
          %v6501 = vunpack.c.h.b16 %v6342
          %v6502 = vunpack.c.l.b16 %v6343
          %v6503 = vunpack.c.h.b16 %v6343
          %v6504 = vunpack.c.l.b16 %v6344
          %v6505 = vunpack.c.h.b16 %v6344
          %v6506 = vunpack.c.l.b16 %v6345
          %v6507 = vunpack.c.h.b16 %v6345
          %v6508 = vunpack.c.l.b16 %v6346
          %v6509 = vunpack.c.h.b16 %v6346
          %v6510 = vunpack.c.l.b16 %v6347
          %v6511 = vunpack.c.h.b16 %v6347
          %v6512 = vunpack.c.l.b16 %v6348
          %v6513 = vunpack.c.h.b16 %v6348
          %v6514 = vunpack.c.l.b16 %v6349
          %v6515 = vunpack.c.h.b16 %v6349
          %v6516 = vunpack.c.l.b16 %v6350
          %v6517 = vunpack.c.h.b16 %v6350
          %v6518 = vunpack.c.l.b16 %v6351
          %v6519 = vunpack.c.h.b16 %v6351
          %v6520 = vunpack.c.l.b16 %v6352
          %v6521 = vunpack.c.h.b16 %v6352
          %v6522 = vunpack.c.l.b16 %v6353
          %v6523 = vunpack.c.h.b16 %v6353
          %v6524 = vunpack.c.l.b16 %v6354
          %v6525 = vunpack.c.h.b16 %v6354
          %v6526 = vunpack.c.l.b16 %v6355
          %v6527 = vunpack.c.h.b16 %v6355
          %v6528 = vunpack.c.l.b16 %v6356
          %v6529 = vunpack.c.h.b16 %v6356
          %v6530 = vunpack.c.l.b16 %v6357
          %v6531 = vunpack.c.h.b16 %v6357
          %v6532 = vunpack.c.l.b16 %v6358
          %v6533 = vunpack.c.h.b16 %v6358
          %v6534 = vunpack.c.l.b16 %v6359
          %v6535 = vunpack.c.h.b16 %v6359
          %v6536 = vunpack.c.l.b16 %v6360
          %v6537 = vunpack.c.h.b16 %v6360
          %v6538 = vunpack.c.l.b16 %v6361
          %v6539 = vunpack.c.h.b16 %v6361
          %v6540 = vunpack.c.l.b16 %v6362
          %v6541 = vunpack.c.h.b16 %v6362
          %v6542 = vunpack.c.l.b16 %v6363
          %v6543 = vunpack.c.h.b16 %v6363
          %v6544 = vunpack.c.l.b16 %v6364
          %v6545 = vunpack.c.h.b16 %v6364
          %v6546 = vunpack.c.l.b16 %v6365
          %v6547 = vunpack.c.h.b16 %v6365
          %v6548 = vunpack.c.l.b16 %v6366
          %v6549 = vunpack.c.h.b16 %v6366
          %v6550 = vunpack.c.l.b16 %v6367
          %v6551 = vunpack.c.h.b16 %v6367
          %v6552 = vunpack.c.l.b16 %v6368
          %v6553 = vunpack.c.h.b16 %v6368
          %v6554 = vunpack.c.l.b16 %v6369
          %v6555 = vunpack.c.h.b16 %v6369
          %v6556 = vunpack.c.l.b16 %v6370
          %v6557 = vunpack.c.h.b16 %v6370
          %v6558 = vunpack.c.l.b16 %v6371
          %v6559 = vunpack.c.h.b16 %v6371
          %v6560 = vunpack.c.l.b16 %v6372
          %v6561 = vunpack.c.h.b16 %v6372
          %v6562 = vunpack.c.l.b16 %v6373
          %v6563 = vunpack.c.h.b16 %v6373
          %v6564 = vunpack.c.l.b16 %v6374
          %v6565 = vunpack.c.h.b16 %v6374
          %v6566 = vunpack.c.l.b16 %v6375
          %v6567 = vunpack.c.h.b16 %v6375
          %v6568 = vunpack.c.l.b16 %v6376
          %v6569 = vunpack.c.h.b16 %v6376
          %v6570 = vpack.c.b16 %v6444, %v6442
          %v6571 = vpack.c.b16 %v6445, %v6443
          %v6572 = vpack.c.b16 %v6448, %v6446
          %v6573 = vpack.c.b16 %v6449, %v6447
          %v6574 = vpack.c.b16 %v6452, %v6450
          %v6575 = vpack.c.b16 %v6453, %v6451
          %v6576 = vpack.c.b16 %v6456, %v6454
          %v6577 = vpack.c.b16 %v6457, %v6455
          %v6578 = vpack.c.b16 %v6460, %v6458
          %v6579 = vpack.c.b16 %v6461, %v6459
          %v6580 = vpack.c.b16 %v6464, %v6462
          %v6581 = vpack.c.b16 %v6465, %v6463
          %v6582 = vpack.c.b16 %v6468, %v6466
          %v6583 = vpack.c.b16 %v6469, %v6467
          %v6584 = vpack.c.b16 %v6472, %v6470
          %v6585 = vpack.c.b16 %v6473, %v6471
          %v6586 = vpack.c.b16 %v6476, %v6474
          %v6587 = vpack.c.b16 %v6477, %v6475
          %v6588 = vpack.c.b16 %v6480, %v6478
          %v6589 = vpack.c.b16 %v6481, %v6479
          %v6590 = vpack.c.b16 %v6484, %v6482
          %v6591 = vpack.c.b16 %v6485, %v6483
          %v6592 = vpack.c.b16 %v6488, %v6486
          %v6593 = vpack.c.b16 %v6489, %v6487
          %v6594 = vpack.c.b16 %v6492, %v6490
          %v6595 = vpack.c.b16 %v6493, %v6491
          %v6596 = vpack.c.b16 %v6496, %v6494
          %v6597 = vpack.c.b16 %v6497, %v6495
          %v6598 = vpack.c.b16 %v6500, %v6498
          %v6599 = vpack.c.b16 %v6501, %v6499
          %v6600 = vpack.c.b16 %v6504, %v6502
          %v6601 = vpack.c.b16 %v6505, %v6503
          %v6602 = vpack.c.b16 %v6508, %v6506
          %v6603 = vpack.c.b16 %v6509, %v6507
          %v6604 = vpack.c.b16 %v6512, %v6510
          %v6605 = vpack.c.b16 %v6513, %v6511
          %v6606 = vpack.c.b16 %v6516, %v6514
          %v6607 = vpack.c.b16 %v6517, %v6515
          %v6608 = vpack.c.b16 %v6520, %v6518
          %v6609 = vpack.c.b16 %v6521, %v6519
          %v6610 = vpack.c.b16 %v6524, %v6522
          %v6611 = vpack.c.b16 %v6525, %v6523
          %v6612 = vpack.c.b16 %v6528, %v6526
          %v6613 = vpack.c.b16 %v6529, %v6527
          %v6614 = vpack.c.b16 %v6532, %v6530
          %v6615 = vpack.c.b16 %v6533, %v6531
          %v6616 = vpack.c.b16 %v6536, %v6534
          %v6617 = vpack.c.b16 %v6537, %v6535
          %v6618 = vpack.c.b16 %v6540, %v6538
          %v6619 = vpack.c.b16 %v6541, %v6539
          %v6620 = vpack.c.b16 %v6544, %v6542
          %v6621 = vpack.c.b16 %v6545, %v6543
          %v6622 = vpack.c.b16 %v6548, %v6546
          %v6623 = vpack.c.b16 %v6549, %v6547
          %v6624 = vpack.c.b16 %v6552, %v6550
          %v6625 = vpack.c.b16 %v6553, %v6551
          %v6626 = vpack.c.b16 %v6556, %v6554
          %v6627 = vpack.c.b16 %v6557, %v6555
          %v6628 = vpack.c.b16 %v6560, %v6558
          %v6629 = vpack.c.b16 %v6561, %v6559
          %v6630 = vpack.c.b16 %v6564, %v6562
          %v6631 = vpack.c.b16 %v6565, %v6563
          %v6632 = vpack.c.b16 %v6568, %v6566
          %v6633 = vpack.c.b16 %v6569, %v6567
          %v6699 = vlaneseq
          %v6700 = vshrl.u32 %v6699, 7
          %v6701 = vsub.s32 0, %v6700
          %v6702 = vrot.slane %v6377, %v6701
          %v6703 = vlaneseq
          %v6704 = vshrl.u32 %v6703, 7
          %v6705 = vsub.s32 1, %v6704
          %v6706 = vrot.slane %v6377, %v6705
          %6709 = vmatprep.subr.bf16.mxu0 %v6571
          %6710 = vmatpush1.bf16.msra.mxu0 %v6570
          %6711 = vmatprep.subr.bf16.mxu0 %v6573
          %6712 = vmatpush1.bf16.msra.mxu0 %v6572
          %6713 = vmatprep.subr.bf16.mxu0 %v6575
          %6714 = vmatpush1.bf16.msra.mxu0 %v6574
          %6715 = vmatprep.subr.bf16.mxu0 %v6577
          %6716 = vmatpush1.bf16.msra.mxu0 %v6576
          %6717 = vmatprep.subr.bf16.mxu0 %v6579
          %6718 = vmatpush1.bf16.msra.mxu0 %v6578
          %6719 = vmatprep.subr.bf16.mxu0 %v6581
          %6720 = vmatpush1.bf16.msra.mxu0 %v6580
          %6721 = vmatprep.subr.bf16.mxu0 %v6583
          %6722 = vmatpush1.bf16.msra.mxu0 %v6582
          %6723 = vmatprep.subr.bf16.mxu0 %v6585
          %6724 = vmatpush1.bf16.msra.mxu0 %v6584
          %6725 = vmatprep.subr.bf16.mxu0 %v6587
          %6726 = vmatpush1.bf16.msra.mxu0 %v6586
          %6727 = vmatprep.subr.bf16.mxu0 %v6589
          %6728 = vmatpush1.bf16.msra.mxu0 %v6588
          %6729 = vmatprep.subr.bf16.mxu0 %v6591
          %6730 = vmatpush1.bf16.msra.mxu0 %v6590
          %6731 = vmatprep.subr.bf16.mxu0 %v6593
          %6732 = vmatpush1.bf16.msra.mxu0 %v6592
          %6733 = vmatprep.subr.bf16.mxu0 %v6595
          %6734 = vmatpush1.bf16.msra.mxu0 %v6594
          %6735 = vmatprep.subr.bf16.mxu0 %v6597
          %6736 = vmatpush1.bf16.msra.mxu0 %v6596
          %6737 = vmatprep.subr.bf16.mxu0 %v6599
          %6738 = vmatpush1.bf16.msra.mxu0 %v6598
          %6739 = vmatprep.subr.bf16.mxu0 %v6601
          %6740 = vmatpush1.bf16.msra.mxu0 %v6600
          %6741 = vmatprep.mubr.bf16.mxu0 %v6310
          %6742 = vmatmul.mubr.bf16.gmra.mrb[0].mxu0 %v6309
          %v6743 = vpop.f32.mrb[0].mxu0
          %v6744 = vadd.f32 %v6702, %v6743
          %v6745 = vpop.f32.mrb[0].mxu0
          %v6746 = vadd.f32 %v6706, %v6745
          %v6747 = vpop.f32.mrb[0].mxu0
          %v6748 = vpop.f32.mrb[0].mxu0
          %6749 = vdwg.mxu0
          %6750 = vmatprep.subr.bf16.mxu0 %v6603
          %6751 = vmatpush1.bf16.msra.mxu0 %v6602
          %6752 = vmatprep.subr.bf16.mxu0 %v6605
          %6753 = vmatpush1.bf16.msra.mxu0 %v6604
          %6754 = vmatprep.subr.bf16.mxu0 %v6607
          %6755 = vmatpush1.bf16.msra.mxu0 %v6606
          %6756 = vmatprep.subr.bf16.mxu0 %v6609
          %6757 = vmatpush1.bf16.msra.mxu0 %v6608
          %6758 = vmatprep.subr.bf16.mxu0 %v6611
          %6759 = vmatpush1.bf16.msra.mxu0 %v6610
          %6760 = vmatprep.subr.bf16.mxu0 %v6613
          %6761 = vmatpush1.bf16.msra.mxu0 %v6612
          %6762 = vmatprep.subr.bf16.mxu0 %v6615
          %6763 = vmatpush1.bf16.msra.mxu0 %v6614
          %6764 = vmatprep.subr.bf16.mxu0 %v6617
          %6765 = vmatpush1.bf16.msra.mxu0 %v6616
          %6766 = vmatprep.subr.bf16.mxu0 %v6619
          %6767 = vmatpush1.bf16.msra.mxu0 %v6618
          %6768 = vmatprep.subr.bf16.mxu0 %v6621
          %6769 = vmatpush1.bf16.msra.mxu0 %v6620
          %6770 = vmatprep.subr.bf16.mxu0 %v6623
          %6771 = vmatpush1.bf16.msra.mxu0 %v6622
          %6772 = vmatprep.subr.bf16.mxu0 %v6625
          %6773 = vmatpush1.bf16.msra.mxu0 %v6624
          %6774 = vmatprep.subr.bf16.mxu0 %v6627
          %6775 = vmatpush1.bf16.msra.mxu0 %v6626
          %6776 = vmatprep.subr.bf16.mxu0 %v6629
          %6777 = vmatpush1.bf16.msra.mxu0 %v6628
          %6778 = vmatprep.subr.bf16.mxu0 %v6631
          %6779 = vmatpush1.bf16.msra.mxu0 %v6630
          %6780 = vmatprep.subr.bf16.mxu0 %v6633
          %6781 = vmatpush1.bf16.msra.mxu0 %v6632
          %6782 = vmatprep.mubr.bf16.mxu0 %v6312
          %6783 = vmatmul.mubr.bf16.gmra.mrb[0].mxu0 %v6311
          %v6784 = vpop.f32.mrb[0].mxu0
          %v6785 = vadd.f32 %v6744, %v6784
          %v6786 = vpop.f32.mrb[0].mxu0
          %v6787 = vadd.f32 %v6746, %v6786
          %v6788 = vpop.f32.mrb[0].mxu0
          %v6789 = vpop.f32.mrb[0].mxu0
          %6790 = vdwg.mxu0
          %v6791 = vmax.f32 %v6785, 0.0
          %v6792 = vmax.f32 %v6787, 0.0
          %v6793 = vpack.c.bf16 %v6791, %v6791
          %v6794 = vpack.c.bf16 %v6792, %v6792
          %v6795 = vld [vmem:[#allocation14] sm:$0xf]
          %v6796 = vld [vmem:[#allocation14 + $0x4] sm:$0xf]
          %v6797 = vld [vmem:[#allocation14 + $0x8] sm:$0xf]
          %v6798 = vld [vmem:[#allocation14 + $0xc] sm:$0xf]
          %v6799 = vld [vmem:[#allocation14 + $0x10] sm:$0xf]
          %v6800 = vld [vmem:[#allocation14 + $0x14] sm:$0xf]
          %v6801 = vld [vmem:[#allocation14 + $0x18] sm:$0xf]
          %v6802 = vld [vmem:[#allocation14 + $0x1c] sm:$0xf]
          %v6803 = vld [vmem:[#allocation14 + $0x20] sm:$0xf]
          %v6804 = vld [vmem:[#allocation14 + $0x24] sm:$0xf]
          %v6805 = vld [vmem:[#allocation14 + $0x28] sm:$0xf]
          %v6806 = vld [vmem:[#allocation14 + $0x2c] sm:$0xf]
          %v6807 = vld [vmem:[#allocation14 + $0x30] sm:$0xf]
          %v6808 = vld [vmem:[#allocation14 + $0x34] sm:$0xf]
          %v6809 = vld [vmem:[#allocation14 + $0x38] sm:$0xf]
          %v6810 = vld [vmem:[#allocation14 + $0x3c] sm:$0xf]
          %v6811 = vld [vmem:[#allocation14 + $0x40] sm:$0xf]
          %v6812 = vld [vmem:[#allocation14 + $0x44] sm:$0xf]
          %v6813 = vld [vmem:[#allocation14 + $0x48] sm:$0xf]
          %v6814 = vld [vmem:[#allocation14 + $0x4c] sm:$0xf]
          %v6815 = vld [vmem:[#allocation14 + $0x50] sm:$0xf]
          %v6816 = vld [vmem:[#allocation14 + $0x54] sm:$0xf]
          %v6817 = vld [vmem:[#allocation14 + $0x58] sm:$0xf]
          %v6818 = vld [vmem:[#allocation14 + $0x5c] sm:$0xf]
          %v6819 = vld [vmem:[#allocation14 + $0x60] sm:$0xf]
          %v6820 = vld [vmem:[#allocation14 + $0x64] sm:$0xf]
          %v6821 = vld [vmem:[#allocation14 + $0x68] sm:$0xf]
          %v6822 = vld [vmem:[#allocation14 + $0x6c] sm:$0xf]
          %v6823 = vld [vmem:[#allocation14 + $0x70] sm:$0xf]
          %v6824 = vld [vmem:[#allocation14 + $0x74] sm:$0xf]
          %v6825 = vld [vmem:[#allocation14 + $0x78] sm:$0xf]
          %v6826 = vld [vmem:[#allocation14 + $0x7c] sm:$0xf]
          %v6827 = vld [vmem:[#allocation15] sm:$0x1]
          %v6860 = vunpack.c.l.b16 %v6795
          %v6861 = vunpack.c.l.b16 %v6796
          %v6862 = vunpack.c.l.b16 %v6797
          %v6863 = vunpack.c.l.b16 %v6798
          %v6864 = vunpack.c.l.b16 %v6799
          %v6865 = vunpack.c.l.b16 %v6800
          %v6866 = vunpack.c.l.b16 %v6801
          %v6867 = vunpack.c.l.b16 %v6802
          %v6868 = vunpack.c.l.b16 %v6803
          %v6869 = vunpack.c.l.b16 %v6804
          %v6870 = vunpack.c.l.b16 %v6805
          %v6871 = vunpack.c.l.b16 %v6806
          %v6872 = vunpack.c.l.b16 %v6807
          %v6873 = vunpack.c.l.b16 %v6808
          %v6874 = vunpack.c.l.b16 %v6809
          %v6875 = vunpack.c.l.b16 %v6810
          %v6876 = vunpack.c.l.b16 %v6811
          %v6877 = vunpack.c.l.b16 %v6812
          %v6878 = vunpack.c.l.b16 %v6813
          %v6879 = vunpack.c.l.b16 %v6814
          %v6880 = vunpack.c.l.b16 %v6815
          %v6881 = vunpack.c.l.b16 %v6816
          %v6882 = vunpack.c.l.b16 %v6817
          %v6883 = vunpack.c.l.b16 %v6818
          %v6884 = vunpack.c.l.b16 %v6819
          %v6885 = vunpack.c.l.b16 %v6820
          %v6886 = vunpack.c.l.b16 %v6821
          %v6887 = vunpack.c.l.b16 %v6822
          %v6888 = vunpack.c.l.b16 %v6823
          %v6889 = vunpack.c.l.b16 %v6824
          %v6890 = vunpack.c.l.b16 %v6825
          %v6891 = vunpack.c.l.b16 %v6826
          %v6892 = vpack.c.b16 %v6861, %v6860
          %v6893 = vpack.c.b16 %v6863, %v6862
          %v6894 = vpack.c.b16 %v6865, %v6864
          %v6895 = vpack.c.b16 %v6867, %v6866
          %v6896 = vpack.c.b16 %v6869, %v6868
          %v6897 = vpack.c.b16 %v6871, %v6870
          %v6898 = vpack.c.b16 %v6873, %v6872
          %v6899 = vpack.c.b16 %v6875, %v6874
          %v6900 = vpack.c.b16 %v6877, %v6876
          %v6901 = vpack.c.b16 %v6879, %v6878
          %v6902 = vpack.c.b16 %v6881, %v6880
          %v6903 = vpack.c.b16 %v6883, %v6882
          %v6904 = vpack.c.b16 %v6885, %v6884
          %v6905 = vpack.c.b16 %v6887, %v6886
          %v6906 = vpack.c.b16 %v6889, %v6888
          %v6907 = vpack.c.b16 %v6891, %v6890
          %6924 = vmatprep.subr.bf16.mxu0 0
          %6925 = vmatpush1.bf16.msra.mxu0 %v6892
          %6926 = vmatprep.subr.bf16.mxu0 0
          %6927 = vmatpush1.bf16.msra.mxu0 %v6893
          %6928 = vmatprep.subr.bf16.mxu0 0
          %6929 = vmatpush1.bf16.msra.mxu0 %v6894
          %6930 = vmatprep.subr.bf16.mxu0 0
          %6931 = vmatpush1.bf16.msra.mxu0 %v6895
          %6932 = vmatprep.subr.bf16.mxu0 0
          %6933 = vmatpush1.bf16.msra.mxu0 %v6896
          %6934 = vmatprep.subr.bf16.mxu0 0
          %6935 = vmatpush1.bf16.msra.mxu0 %v6897
          %6936 = vmatprep.subr.bf16.mxu0 0
          %6937 = vmatpush1.bf16.msra.mxu0 %v6898
          %6938 = vmatprep.subr.bf16.mxu0 0
          %6939 = vmatpush1.bf16.msra.mxu0 %v6899
          %6940 = vmatprep.subr.bf16.mxu0 0
          %6941 = vmatpush1.bf16.msra.mxu0 %v6900
          %6942 = vmatprep.subr.bf16.mxu0 0
          %6943 = vmatpush1.bf16.msra.mxu0 %v6901
          %6944 = vmatprep.subr.bf16.mxu0 0
          %6945 = vmatpush1.bf16.msra.mxu0 %v6902
          %6946 = vmatprep.subr.bf16.mxu0 0
          %6947 = vmatpush1.bf16.msra.mxu0 %v6903
          %6948 = vmatprep.subr.bf16.mxu0 0
          %6949 = vmatpush1.bf16.msra.mxu0 %v6904
          %6950 = vmatprep.subr.bf16.mxu0 0
          %6951 = vmatpush1.bf16.msra.mxu0 %v6905
          %6952 = vmatprep.subr.bf16.mxu0 0
          %6953 = vmatpush1.bf16.msra.mxu0 %v6906
          %6954 = vmatprep.subr.bf16.mxu0 0
          %6955 = vmatpush1.bf16.msra.mxu0 %v6907
          %6956 = vmatprep.mubr.bf16.mxu0 %v6794
          %6957 = vmatmul.mubr.bf16.gmra.mrb[0].mxu0 %v6793
          %v6958 = vpop.f32.mrb[0].mxu0
          %v6959 = vadd.f32 %v6827, %v6958
          %v6960 = vpop.f32.mrb[0].mxu0
          %v6961 = vpop.f32.mrb[0].mxu0
          %v6962 = vpop.f32.mrb[0].mxu0
          %6963 = vdwg.mxu0
          %6964 = vst [vmem:[%s456] sm:$0x1] %v6959
        $region96: #{tpu_custom_call.1} parent=55 // pred_fallthru
          _
        %s6965 = sand.u32 %s244, 1
        %s6966 = scalar_lea.sflag [#allocation5], %s6965
        %s6967 = sand.u32 %s244, 1
        %s6968 = scalar_lea.vmem [#allocation17], %s6967
        // Predicated region
        $region97: #{tpu_custom_call.1} parent=55 // pred_check
          %p6969 = pneg %p254
        $region98: #{tpu_custom_call.1} parent=55 // pred_check_branch
          %6971 = sbr.rel (%p6969) target = $region100
        $region99: #{tpu_custom_call.1} parent=55 // pred_region
          %s6973 = ssub.s32 16, 16
          %6974 = vsyncadd %s6966, %s6973
          %s6975 = smul.addr %s32, 16
          %s6976 = scalar_lea.hbm %s9, %s6975
          %s6978 = sshll.u32 %s6968, 4
          %s6979 = int_to_ptr.vmem [resolvable:$true] %s6978
          %6981 = dma.vmem_to_hbm [thread:$0]  %s6979, 16, %s6976, %s6966
        $region100: #{tpu_custom_call.1} parent=55 // pred_fallthru
          _
      $region56: #{tpu_custom_call.1} parent=5 // pred_fallthru
        _
      %p6982 = scmp.le.s32.totalorder 2, %s23
      // Predicated region
      $region101: #{tpu_custom_call.1} parent=5 // pred_check
        %p6983 = pneg %p6982
      $region102: #{tpu_custom_call.1} parent=5 // pred_check_branch
        %6985 = sbr.rel (%p6983) target = $region104
      $region103: #{tpu_custom_call.1} parent=5 // pred_region
        %s6986 = ssub.s32 %s23, 2
        // Predicated region
        $region105: #{tpu_custom_call.1} parent=103 // pred_check
          %p6987 = pneg %p260
        $region106: #{tpu_custom_call.1} parent=103 // pred_check_branch
          %6989 = sbr.rel (%p6987) target = $region108
        $region107: #{tpu_custom_call.1} parent=103 // pred_region
          %s6990 = sand.u32 %s245, 1
          %s6991 = scalar_lea.sflag [#allocation5], %s6990
          %s6992 = sand.u32 %s245, 1
          %s6993 = scalar_lea.vmem [#allocation17], %s6992
          %6994 = dma.done %s6991, 16
        $region108: #{tpu_custom_call.1} parent=103 // pred_fallthru
          _
      $region104: #{tpu_custom_call.1} parent=5 // pred_fallthru
        _
    $region6: #{tpu_custom_call.1} parent=1 // loop_footer
      %s27 = sadd.s32 1, %s23
    $region7: #{tpu_custom_call.1} parent=1 // loop_footer_branch
      %22 = sbr.rel target = $region3
    $region8: #{tpu_custom_call.1} parent=1 // loop_exit
      _
    %6995 = vsyncpa [#allocation4], 1
    %s6996 = scalar_lea.sflag [#allocation4], 1
    %6997 = vsyncpa %s6996, 1
    %6998 = vsyncpa [#allocation7], 1
    %6999 = vsyncpa [#allocation10], 1
    %7000 = vsyncpa [#allocation13], 1
    %7001 = vsyncpa [#allocation16], 1
    %7002 = vsyncpa [#allocation5], 1
    %s7003 = scalar_lea.sflag [#allocation5], 1
    %7004 = vsyncpa %s7003, 1

</llo_original>
